<compile_context>
chip_gen: v7x
topology: tpu7x:2x2x1
jax: 0.10.0
libtpu: 0.0.40
codegen_flags: <defaults>
</compile_context>

<pallas_src>
import numpy as np

import jax
import jax.numpy as jnp
from jax.experimental import pallas as pl
from jax.experimental.pallas import tpu as pltpu

D = 50        # conv out-channels (module-level constant in the torch code)
K = 10        # conv kernel size
PAD = K // 2  # torch Conv1d padding=K//2 -> T_out = T + 1

# Attention is part of the module's return value; keep float32 for exactness.
ATTN_DTYPE = jnp.float32


# ---------------------------------------------------------------------------
# Pallas kernel: conv1d -> tanh -> label-wise attention -> softmax -> pooling
# One grid step == (one batch block, one label tile).
# ---------------------------------------------------------------------------
def caml_kernel(x_ref, wconv_ref, bconv_ref, u_ref, wfin_ref, bfin_ref,
                logits_ref, attn_ref, xp_ref, h_ref):
    # x_ref:      (BT, T, E)        un-padded embeddings for this batch block
    # wconv_ref:  (K, E, Dp)        conv weight, per-tap layout (D padded to Dp)
    # bconv_ref:  (1, Dp)
    # u_ref:      (LT, Dp)          _u.weight tile
    # wfin_ref:   (LT, Dp)          _final.weight tile
    # bfin_ref:   (1, LT)           _final.bias tile (row layout)
    # logits_ref: (BT, LT)
    # attn_ref:   (BT, LT, T_out)   torch layout, lane-dense (T_out on lanes)
    # xp_ref:     (BT, T+2*PAD, E)  VMEM scratch: zero-padded sequence
    # h_ref:      (BT, T_out, Dp)   VMEM scratch: tanh(conv), persists across
    #                               the label-tile grid axis
    BT, T, _ = x_ref.shape
    T_out = h_ref.shape[1]

    # ---- conv1d + tanh: compute once per batch block (label axis is inner) ----
    @pl.when(pl.program_id(1) == 0)
    def _compute_hidden():
        # In-kernel zero padding via a VMEM scratch (two plain stores).  The K
        # tap reads below are offset *ref* slices, so no im2col concatenation.
        xp_ref[...] = jnp.zeros_like(xp_ref)
        xp_ref[:, pl.ds(PAD, T), :] = x_ref[...].astype(xp_ref.dtype)

        bconv = bconv_ref[...]                                    # (1, Dp)
        for i in range(BT):                                       # BT <= 8, unrolled
            # Shift-accumulate conv: K (T_out, E) @ (E, Dp) matmuls accumulated
            # in f32 (cheap on v7x's MRB; fine on the v5e/v6e MRF since the
            # total conv FLOP count is tiny).
            acc = jax.lax.dot_general(
                xp_ref[i, pl.ds(0, T_out), :], wconv_ref[0],
                (((1,), (0,)), ((), ())),
                preferred_element_type=jnp.float32)
            for k in range(1, K):
                acc = acc + jax.lax.dot_general(
                    xp_ref[i, pl.ds(k, T_out), :], wconv_ref[k],
                    (((1,), (0,)), ((), ())),
                    preferred_element_type=jnp.float32)
            h_ref[i] = jnp.tanh(acc + bconv)                      # (T_out, Dp)

    # ---- label-wise attention + softmax + pooled scoring for this L tile -----
    u = u_ref[...]                                                # (LT, Dp)
    wf = wfin_ref[...]                                            # (LT, Dp)
    bf = bfin_ref[...]                                            # (1, LT)
    ones_row = jnp.ones((1, T_out), jnp.float32)                  # hoisted

    for i in range(BT):                                           # BT <= 8, unrolled
        hb = h_ref[i]                                             # (T_out, Dp)

        # a0[l, t] = u[l, :] . h[t, :]   (lane-dense torch (L, T_out) layout)
        a0 = jax.lax.dot_general(u, hb, (((1,), (1,)), ((), ())),
                                 preferred_element_type=jnp.float32)

        # softmax over the sequence axis (lane reduces on XLU, exp on EUP).
        a_max = jnp.max(a0, axis=-1, keepdims=True)
        a_exp = jnp.exp(a0 - a_max)
        a_sum = jnp.sum(a_exp, axis=-1, keepdims=True)
        a1 = a_exp / a_sum                     # exact divide: rows sum to 1
        attn_ref[i] = a1.astype(attn_ref.dtype)

        # logits[l] = sum_t a1[l,t] * (Wf @ h^T)[l,t] + b[l]
        #   (identical to sum_d (a1 @ h)[l,d] * Wf[l,d] + b[l], but avoids the
        #    (L, D) pooling matmul and lands lane-dense).
        s = jax.lax.dot_general(wf, hb, (((1,), (1,)), ((), ())),
                                preferred_element_type=jnp.float32)
        # ones-row MXU dot folds the lane reduce + sublane->lane relayout into
        # one op and produces the logits directly as a (1, LT) row.
        row = jax.lax.dot_general(ones_row, a1 * s, (((1,), (1,)), ((), ())),
                                  preferred_element_type=jnp.float32)
        logits_ref[pl.ds(i, 1), :] = row + bf


# ---------------------------------------------------------------------------
# Tiling heuristics + VMEM budget
# ---------------------------------------------------------------------------
def _pick_bt(B, T, E):
    # Fold a few batch elements per grid step (amortizes the ~0.35us/step
    # overhead when T is small) while keeping the logits block's sublane dim
    # either full-B or a multiple of 8 (BlockSpec tiling rule).
    if B <= 8:
        return B
    if B % 8 == 0 and 8 * T * E * 4 <= (4 << 20):
        return 8
    # TODO(synk): large B not divisible by 8 with large T falls back to one
    #             block; re-derive if that regime ever matters.
    return B


def _pick_lt(L):
    # Tile the label axis so the (L, Dp) weights / (L, T_out) temporaries stay
    # bounded (matters on v7x's 64 MiB VMEM long before v5e/v6e's 128 MiB).
    # Tiles must be full-L or a multiple of 128 for the lane-dense logits store.
    if L <= 256:
        return L
    for lt in (256, 128):
        if L % lt == 0:
            return lt
    return L


def _vmem_budget_bytes(BT, T, E, T_out, Dp, LT):
    f4 = 4
    attn_b = np.dtype(ATTN_DTYPE).itemsize
    dbl = 2  # Pallas double-buffers every BlockSpec-tiled operand by default
    inputs = dbl * f4 * (BT * T * E + K * E * Dp + Dp + 2 * LT * Dp + LT)
    outputs = dbl * (BT * LT * T_out * attn_b + BT * LT * f4)
    scratch = f4 * (BT * (T + 2 * PAD) * E + BT * T_out * Dp)
    temps = f4 * (6 * LT * T_out + T_out * Dp)   # softmax temps + conv accumulator
    return inputs + outputs + scratch + temps


# ---------------------------------------------------------------------------
# JAX wrapper (glue: embedding gather, weight layout, pallas_call, loss)
# ---------------------------------------------------------------------------
@jax.jit
def caml_forward(input_ids, labels, params):
    emb, w_conv, b_conv = params["emb"], params["w_conv"], params["b_conv"]
    w_u, w_final, b_final = params["w_u"], params["w_final"], params["b_final"]

    ids = jnp.squeeze(input_ids, axis=1)                          # (B, T)
    # TODO(synk): torch module's out-of-range-id early return (zero loss/logits)
    # is data-dependent Python control flow; omitted (jnp.take clamps instead).
    x0 = jnp.take(emb, ids, axis=0)                               # (B, T, E)

    B, T, E = x0.shape
    T_out = T + 2 * PAD - K + 1
    L = w_u.shape[0]
    Dp = -(-D // 64) * 64          # pad conv channels 50 -> 64 (unmasked lanes)

    BT = _pick_bt(B, T, E)
    LT = _pick_lt(L)
    assert B % BT == 0 and L % LT == 0

    # One-time weight layout prep in XLA (free, hoisted out of the kernel):
    #   torch conv weight (D, E, K) -> per-tap (K, E, Dp), zero-padded on D.
    wconv = jnp.transpose(w_conv, (2, 1, 0))                      # (K, E, D)
    wconv = jnp.pad(wconv, ((0, 0), (0, 0), (0, Dp - D)))
    bconv = jnp.pad(b_conv, (0, Dp - D)).reshape(1, Dp)
    w_u_p = jnp.pad(w_u, ((0, 0), (0, Dp - D)))
    w_f_p = jnp.pad(w_final, ((0, 0), (0, Dp - D)))
    b_f_r = b_final.reshape(1, L)

    vmem_budget = _vmem_budget_bytes(BT, T, E, T_out, Dp, LT)

    logits, attn = pl.pallas_call(
        caml_kernel,
        grid=(B // BT, L // LT),
        out_shape=(jax.ShapeDtypeStruct((B, L), jnp.float32),
                   jax.ShapeDtypeStruct((B, L, T_out), ATTN_DTYPE)),
        in_specs=[
            pl.BlockSpec((BT, T, E), lambda b, l: (b, 0, 0)),     # x (const over l)
            pl.BlockSpec((K, E, Dp), lambda b, l: (0, 0, 0)),     # conv weight
            pl.BlockSpec((1, Dp), lambda b, l: (0, 0)),           # conv bias
            pl.BlockSpec((LT, Dp), lambda b, l: (l, 0)),          # _u.weight tile
            pl.BlockSpec((LT, Dp), lambda b, l: (l, 0)),          # _final.weight tile
            pl.BlockSpec((1, LT), lambda b, l: (0, l)),           # _final.bias tile
        ],
        out_specs=(
            pl.BlockSpec((BT, LT), lambda b, l: (b, l)),          # logits
            pl.BlockSpec((BT, LT, T_out), lambda b, l: (b, l, 0)),  # attention
        ),
        scratch_shapes=[
            pltpu.VMEM((BT, T + 2 * PAD, E), jnp.float32),        # padded sequence
            pltpu.VMEM((BT, T_out, Dp), jnp.float32),             # tanh(conv) acts
        ],
        compiler_params=pltpu.CompilerParams(
            # Batch axis shards across v7x's 2 TensorCores; the label axis must
            # stay "arbitrary" because h_ref persists across it.  On v5e/v6e the
            # grid is a serial loop either way (extra steps only buy pipelining).
            dimension_semantics=("parallel", "arbitrary"),
            vmem_limit_bytes=int(min(max(2 * vmem_budget, 32 * 1024 ** 2),
                                     64 * 1024 ** 2)),
        ),
    )(x0, wconv, bconv, w_u_p, w_f_p, b_f_r)

    # CrossEntropyLoss (no conditioning layer, label_smoothing=0.0) in plain JAX.
    logz = jax.nn.logsumexp(logits, axis=-1)
    gold = jnp.take_along_axis(logits, labels[:, None], axis=-1)[:, 0]
    loss = jnp.mean(logz - gold)
    return loss, logits, attn


# ---------------------------------------------------------------------------
# Pure-JAX reference (for correctness check)
# ---------------------------------------------------------------------------
def reference_forward(input_ids, labels, params):
    ids = jnp.squeeze(input_ids, axis=1)
    x0 = jnp.take(params["emb"], ids, axis=0)                     # (B, T, E)
    x_ncl = jnp.transpose(x0, (0, 2, 1))                          # (B, E, T)
    y = jax.lax.conv_general_dilated(
        x_ncl, params["w_conv"], window_strides=(1,), padding=[(PAD, PAD)],
        dimension_numbers=("NCH", "OIH", "NCH"),
        precision=jax.lax.Precision.HIGHEST)                      # (B, D, T_out)
    y = y + params["b_conv"][None, :, None]
    x2 = jnp.tanh(jnp.transpose(y, (0, 2, 1)))                    # (B, T_out, D)
    a0 = jnp.einsum("ld,btd->blt", params["w_u"], x2,
                    precision=jax.lax.Precision.HIGHEST)
    a1 = jax.nn.softmax(a0, axis=2)
    m = jnp.einsum("blt,btd->bld", a1, x2,
                   precision=jax.lax.Precision.HIGHEST)
    logits = jnp.sum(m * params["w_final"][None], axis=2) + params["b_final"][None]
    logz = jax.nn.logsumexp(logits, axis=-1)
    gold = jnp.take_along_axis(logits, labels[:, None], axis=-1)[:, 0]
    loss = jnp.mean(logz - gold)
    return loss, logits, a1


if __name__ == "__main__":
    # Small shapes consistent with the module: vocab V, hidden E, seq T, labels L.
    B, T, V, E, L = 2, 16, 64, 32, 8

    key = jax.random.PRNGKey(0)
    k_emb, k_wc, k_bc, k_u, k_f, k_bf, k_ids, k_lab = jax.random.split(key, 8)

    # Deterministic synthetic parameters (xavier-uniform-style scales).
    emb = 0.1 * jax.random.normal(k_emb, (V, E), jnp.float32)
    bnd_c = (6.0 / (E * K + D * K)) ** 0.5
    w_conv = jax.random.uniform(k_wc, (D, E, K), jnp.float32, -bnd_c, bnd_c)
    b_conv = 0.01 * jax.random.normal(k_bc, (D,), jnp.float32)
    bnd_u = (6.0 / (D + L)) ** 0.5
    w_u = jax.random.uniform(k_u, (L, D), jnp.float32, -bnd_u, bnd_u)
    w_final = jax.random.uniform(k_f, (L, D), jnp.float32, -bnd_u, bnd_u)
    b_final = 0.01 * jax.random.normal(k_bf, (L,), jnp.float32)

    params = dict(emb=emb, w_conv=w_conv, b_conv=b_conv,
                  w_u=w_u, w_final=w_final, b_final=b_final)

    input_ids = jax.random.randint(k_ids, (B, 1, T), 0, V, dtype=jnp.int32)
    labels = jax.random.randint(k_lab, (B,), 0, L, dtype=jnp.int32)

    loss, logits, attn = caml_forward(input_ids, labels, params)
    jax.block_until_ready((loss, logits, attn))

    ref_loss, ref_logits, ref_attn = reference_forward(input_ids, labels, params)

    assert logits.shape == (B, L)
    assert attn.shape == (B, L, T + 1)          # conv with even K & pad K//2 -> T+1
    # Tolerance covers MXU pass-count differences vs the HIGHEST-precision ref.
    assert jnp.allclose(logits, ref_logits, atol=2e-3, rtol=2e-3)
    assert jnp.allclose(attn, ref_attn, atol=2e-3, rtol=2e-3)
    assert jnp.allclose(loss, ref_loss, atol=2e-3, rtol=2e-3)

    print("KERNEL_OK")
</pallas_src>

<mosaic_0001>
module attributes {stable_mosaic.version = 11 : i64} {
  func.func @caml_kernel(%arg0: i32, %arg1: i32, %arg2: memref<2x16x32xf32, #tpu.memory_space<vmem>>, %arg3: memref<10x32x64xf32, #tpu.memory_space<vmem>>, %arg4: memref<1x64xf32, #tpu.memory_space<vmem>>, %arg5: memref<8x64xf32, #tpu.memory_space<vmem>>, %arg6: memref<8x64xf32, #tpu.memory_space<vmem>>, %arg7: memref<1x8xf32, #tpu.memory_space<vmem>>, %arg8: memref<2x8xf32, #tpu.memory_space<vmem>>, %arg9: memref<2x8x17xf32, #tpu.memory_space<vmem>>, %arg10: memref<2x26x32xf32, #tpu.memory_space<vmem>>, %arg11: memref<2x17x64xf32, #tpu.memory_space<vmem>>) attributes {dimension_semantics = [#tpu.dimension_semantics<parallel>, #tpu.dimension_semantics<arbitrary>], iteration_bounds = array<i64: 1, 1>, scalar_prefetch = 0 : i64, scratch_operands = 2 : i64, tpu.core_type = #tpu.core_type<tc>, window_params = [{transform_indices = @transform_0, window_bounds = array<i64: 2, 16, 32>}, {pipeline_mode = #tpu.pipeline_mode<synchronous>, transform_indices = @transform_1, window_bounds = array<i64: 10, 32, 64>}, {pipeline_mode = #tpu.pipeline_mode<synchronous>, transform_indices = @transform_2, window_bounds = array<i64: 1, 64>}, {transform_indices = @transform_3, window_bounds = array<i64: 8, 64>}, {transform_indices = @transform_4, window_bounds = array<i64: 8, 64>}, {transform_indices = @transform_5, window_bounds = array<i64: 1, 8>}, {transform_indices = @transform_6, window_bounds = array<i64: 2, 8>}, {transform_indices = @transform_7, window_bounds = array<i64: 2, 8, 17>}]} {
    %c0_i32 = arith.constant 0 : i32
    %0 = arith.cmpi eq, %arg1, %c0_i32 : i32
    %1 = arith.extui %0 : i1 to i32
    %c0_i32_0 = arith.constant 0 : i32
    %2 = arith.cmpi ne, %1, %c0_i32_0 : i32
    scf.if %2 {
      %cst_31 = arith.constant 0.000000e+00 : f32
      %47 = vector.broadcast %cst_31 : f32 to vector<2x26x32xf32>
      %c0_32 = arith.constant 0 : index
      %c0_33 = arith.constant 0 : index
      %c0_34 = arith.constant 0 : index
      %48 = vector.load %arg10[%c0_32, %c0_33, %c0_34] : memref<2x26x32xf32, #tpu.memory_space<vmem>>, vector<2x26x32xf32>
      tpu.vector_store %arg10[%c0_32, %c0_33, %c0_34], %47 {strides = array<i32>} : memref<2x26x32xf32, #tpu.memory_space<vmem>>, vector<2x26x32xf32>,
      %c0_35 = arith.constant 0 : index
      %c0_36 = arith.constant 0 : index
      %c0_37 = arith.constant 0 : index
      %49 = vector.load %arg2[%c0_35, %c0_36, %c0_37] : memref<2x16x32xf32, #tpu.memory_space<vmem>>, vector<2x16x32xf32>
      %c0_38 = arith.constant 0 : index
      %c5 = arith.constant 5 : index
      %c0_39 = arith.constant 0 : index
      %50 = vector.load %arg10[%c0_38, %c5, %c0_39] : memref<2x26x32xf32, #tpu.memory_space<vmem>>, vector<2x16x32xf32>
      tpu.vector_store %arg10[%c0_38, %c5, %c0_39], %49 {strides = array<i32>} : memref<2x26x32xf32, #tpu.memory_space<vmem>>, vector<2x16x32xf32>,
      %c0_40 = arith.constant 0 : index
      %c0_41 = arith.constant 0 : index
      %51 = vector.load %arg4[%c0_40, %c0_41] : memref<1x64xf32, #tpu.memory_space<vmem>>, vector<1x64xf32>
      %c0_42 = arith.constant 0 : index
      %c0_43 = arith.constant 0 : index
      %c0_44 = arith.constant 0 : index
      %52 = vector.load %arg10[%c0_42, %c0_43, %c0_44] : memref<2x26x32xf32, #tpu.memory_space<vmem>>, vector<1x17x32xf32>
      %53 = vector.shape_cast %52 : vector<1x17x32xf32> to vector<17x32xf32>
      %c0_45 = arith.constant 0 : index
      %c0_46 = arith.constant 0 : index
      %c0_47 = arith.constant 0 : index
      %54 = vector.load %arg3[%c0_45, %c0_46, %c0_47] : memref<10x32x64xf32, #tpu.memory_space<vmem>>, vector<1x32x64xf32>
      %55 = vector.shape_cast %54 : vector<1x32x64xf32> to vector<32x64xf32>
      %cst_48 = arith.constant dense<0.000000e+00> : vector<17x64xf32>
      %56 = tpu.matmul %53, %55, %cst_48 {dimension_numbers = #tpu.dot_dimension_numbers<[1], [0], [0], [1], [0, 0, 1, 1], [], []>} : vector<17x32xf32>, vector<32x64xf32>, vector<17x64xf32> -> vector<17x64xf32>
      %c0_49 = arith.constant 0 : index
      %c1_50 = arith.constant 1 : index
      %c0_51 = arith.constant 0 : index
      %57 = vector.load %arg10[%c0_49, %c1_50, %c0_51] : memref<2x26x32xf32, #tpu.memory_space<vmem>>, vector<1x17x32xf32>
      %58 = vector.shape_cast %57 : vector<1x17x32xf32> to vector<17x32xf32>
      %c1_52 = arith.constant 1 : index
      %c0_53 = arith.constant 0 : index
      %c0_54 = arith.constant 0 : index
      %59 = vector.load %arg3[%c1_52, %c0_53, %c0_54] : memref<10x32x64xf32, #tpu.memory_space<vmem>>, vector<1x32x64xf32>
      %60 = vector.shape_cast %59 : vector<1x32x64xf32> to vector<32x64xf32>
      %cst_55 = arith.constant dense<0.000000e+00> : vector<17x64xf32>
      %61 = tpu.matmul %58, %60, %cst_55 {dimension_numbers = #tpu.dot_dimension_numbers<[1], [0], [0], [1], [0, 0, 1, 1], [], []>} : vector<17x32xf32>, vector<32x64xf32>, vector<17x64xf32> -> vector<17x64xf32>
      %62 = arith.addf %56, %61 : vector<17x64xf32>
      %c0_56 = arith.constant 0 : index
      %c2 = arith.constant 2 : index
      %c0_57 = arith.constant 0 : index
      %63 = vector.load %arg10[%c0_56, %c2, %c0_57] : memref<2x26x32xf32, #tpu.memory_space<vmem>>, vector<1x17x32xf32>
      %64 = vector.shape_cast %63 : vector<1x17x32xf32> to vector<17x32xf32>
      %c2_58 = arith.constant 2 : index
      %c0_59 = arith.constant 0 : index
      %c0_60 = arith.constant 0 : index
      %65 = vector.load %arg3[%c2_58, %c0_59, %c0_60] : memref<10x32x64xf32, #tpu.memory_space<vmem>>, vector<1x32x64xf32>
      %66 = vector.shape_cast %65 : vector<1x32x64xf32> to vector<32x64xf32>
      %cst_61 = arith.constant dense<0.000000e+00> : vector<17x64xf32>
      %67 = tpu.matmul %64, %66, %cst_61 {dimension_numbers = #tpu.dot_dimension_numbers<[1], [0], [0], [1], [0, 0, 1, 1], [], []>} : vector<17x32xf32>, vector<32x64xf32>, vector<17x64xf32> -> vector<17x64xf32>
      %68 = arith.addf %62, %67 : vector<17x64xf32>
      %c0_62 = arith.constant 0 : index
      %c3 = arith.constant 3 : index
      %c0_63 = arith.constant 0 : index
      %69 = vector.load %arg10[%c0_62, %c3, %c0_63] : memref<2x26x32xf32, #tpu.memory_space<vmem>>, vector<1x17x32xf32>
      %70 = vector.shape_cast %69 : vector<1x17x32xf32> to vector<17x32xf32>
      %c3_64 = arith.constant 3 : index
      %c0_65 = arith.constant 0 : index
      %c0_66 = arith.constant 0 : index
      %71 = vector.load %arg3[%c3_64, %c0_65, %c0_66] : memref<10x32x64xf32, #tpu.memory_space<vmem>>, vector<1x32x64xf32>
      %72 = vector.shape_cast %71 : vector<1x32x64xf32> to vector<32x64xf32>
      %cst_67 = arith.constant dense<0.000000e+00> : vector<17x64xf32>
      %73 = tpu.matmul %70, %72, %cst_67 {dimension_numbers = #tpu.dot_dimension_numbers<[1], [0], [0], [1], [0, 0, 1, 1], [], []>} : vector<17x32xf32>, vector<32x64xf32>, vector<17x64xf32> -> vector<17x64xf32>
      %74 = arith.addf %68, %73 : vector<17x64xf32>
      %c0_68 = arith.constant 0 : index
      %c4 = arith.constant 4 : index
      %c0_69 = arith.constant 0 : index
      %75 = vector.load %arg10[%c0_68, %c4, %c0_69] : memref<2x26x32xf32, #tpu.memory_space<vmem>>, vector<1x17x32xf32>
      %76 = vector.shape_cast %75 : vector<1x17x32xf32> to vector<17x32xf32>
      %c4_70 = arith.constant 4 : index
      %c0_71 = arith.constant 0 : index
      %c0_72 = arith.constant 0 : index
      %77 = vector.load %arg3[%c4_70, %c0_71, %c0_72] : memref<10x32x64xf32, #tpu.memory_space<vmem>>, vector<1x32x64xf32>
      %78 = vector.shape_cast %77 : vector<1x32x64xf32> to vector<32x64xf32>
      %cst_73 = arith.constant dense<0.000000e+00> : vector<17x64xf32>
      %79 = tpu.matmul %76, %78, %cst_73 {dimension_numbers = #tpu.dot_dimension_numbers<[1], [0], [0], [1], [0, 0, 1, 1], [], []>} : vector<17x32xf32>, vector<32x64xf32>, vector<17x64xf32> -> vector<17x64xf32>
      %80 = arith.addf %74, %79 : vector<17x64xf32>
      %c0_74 = arith.constant 0 : index
      %c5_75 = arith.constant 5 : index
      %c0_76 = arith.constant 0 : index
      %81 = vector.load %arg10[%c0_74, %c5_75, %c0_76] : memref<2x26x32xf32, #tpu.memory_space<vmem>>, vector<1x17x32xf32>
      %82 = vector.shape_cast %81 : vector<1x17x32xf32> to vector<17x32xf32>
      %c5_77 = arith.constant 5 : index
      %c0_78 = arith.constant 0 : index
      %c0_79 = arith.constant 0 : index
      %83 = vector.load %arg3[%c5_77, %c0_78, %c0_79] : memref<10x32x64xf32, #tpu.memory_space<vmem>>, vector<1x32x64xf32>
      %84 = vector.shape_cast %83 : vector<1x32x64xf32> to vector<32x64xf32>
      %cst_80 = arith.constant dense<0.000000e+00> : vector<17x64xf32>
      %85 = tpu.matmul %82, %84, %cst_80 {dimension_numbers = #tpu.dot_dimension_numbers<[1], [0], [0], [1], [0, 0, 1, 1], [], []>} : vector<17x32xf32>, vector<32x64xf32>, vector<17x64xf32> -> vector<17x64xf32>
      %86 = arith.addf %80, %85 : vector<17x64xf32>
      %c0_81 = arith.constant 0 : index
      %c6 = arith.constant 6 : index
      %c0_82 = arith.constant 0 : index
      %87 = vector.load %arg10[%c0_81, %c6, %c0_82] : memref<2x26x32xf32, #tpu.memory_space<vmem>>, vector<1x17x32xf32>
      %88 = vector.shape_cast %87 : vector<1x17x32xf32> to vector<17x32xf32>
      %c6_83 = arith.constant 6 : index
      %c0_84 = arith.constant 0 : index
      %c0_85 = arith.constant 0 : index
      %89 = vector.load %arg3[%c6_83, %c0_84, %c0_85] : memref<10x32x64xf32, #tpu.memory_space<vmem>>, vector<1x32x64xf32>
      %90 = vector.shape_cast %89 : vector<1x32x64xf32> to vector<32x64xf32>
      %cst_86 = arith.constant dense<0.000000e+00> : vector<17x64xf32>
      %91 = tpu.matmul %88, %90, %cst_86 {dimension_numbers = #tpu.dot_dimension_numbers<[1], [0], [0], [1], [0, 0, 1, 1], [], []>} : vector<17x32xf32>, vector<32x64xf32>, vector<17x64xf32> -> vector<17x64xf32>
      %92 = arith.addf %86, %91 : vector<17x64xf32>
      %c0_87 = arith.constant 0 : index
      %c7 = arith.constant 7 : index
      %c0_88 = arith.constant 0 : index
      %93 = vector.load %arg10[%c0_87, %c7, %c0_88] : memref<2x26x32xf32, #tpu.memory_space<vmem>>, vector<1x17x32xf32>
      %94 = vector.shape_cast %93 : vector<1x17x32xf32> to vector<17x32xf32>
      %c7_89 = arith.constant 7 : index
      %c0_90 = arith.constant 0 : index
      %c0_91 = arith.constant 0 : index
      %95 = vector.load %arg3[%c7_89, %c0_90, %c0_91] : memref<10x32x64xf32, #tpu.memory_space<vmem>>, vector<1x32x64xf32>
      %96 = vector.shape_cast %95 : vector<1x32x64xf32> to vector<32x64xf32>
      %cst_92 = arith.constant dense<0.000000e+00> : vector<17x64xf32>
      %97 = tpu.matmul %94, %96, %cst_92 {dimension_numbers = #tpu.dot_dimension_numbers<[1], [0], [0], [1], [0, 0, 1, 1], [], []>} : vector<17x32xf32>, vector<32x64xf32>, vector<17x64xf32> -> vector<17x64xf32>
      %98 = arith.addf %92, %97 : vector<17x64xf32>
      %c0_93 = arith.constant 0 : index
      %c8 = arith.constant 8 : index
      %c0_94 = arith.constant 0 : index
      %99 = vector.load %arg10[%c0_93, %c8, %c0_94] : memref<2x26x32xf32, #tpu.memory_space<vmem>>, vector<1x17x32xf32>
      %100 = vector.shape_cast %99 : vector<1x17x32xf32> to vector<17x32xf32>
      %c8_95 = arith.constant 8 : index
      %c0_96 = arith.constant 0 : index
      %c0_97 = arith.constant 0 : index
      %101 = vector.load %arg3[%c8_95, %c0_96, %c0_97] : memref<10x32x64xf32, #tpu.memory_space<vmem>>, vector<1x32x64xf32>
      %102 = vector.shape_cast %101 : vector<1x32x64xf32> to vector<32x64xf32>
      %cst_98 = arith.constant dense<0.000000e+00> : vector<17x64xf32>
      %103 = tpu.matmul %100, %102, %cst_98 {dimension_numbers = #tpu.dot_dimension_numbers<[1], [0], [0], [1], [0, 0, 1, 1], [], []>} : vector<17x32xf32>, vector<32x64xf32>, vector<17x64xf32> -> vector<17x64xf32>
      %104 = arith.addf %98, %103 : vector<17x64xf32>
      %c0_99 = arith.constant 0 : index
      %c9 = arith.constant 9 : index
      %c0_100 = arith.constant 0 : index
      %105 = vector.load %arg10[%c0_99, %c9, %c0_100] : memref<2x26x32xf32, #tpu.memory_space<vmem>>, vector<1x17x32xf32>
      %106 = vector.shape_cast %105 : vector<1x17x32xf32> to vector<17x32xf32>
      %c9_101 = arith.constant 9 : index
      %c0_102 = arith.constant 0 : index
      %c0_103 = arith.constant 0 : index
      %107 = vector.load %arg3[%c9_101, %c0_102, %c0_103] : memref<10x32x64xf32, #tpu.memory_space<vmem>>, vector<1x32x64xf32>
      %108 = vector.shape_cast %107 : vector<1x32x64xf32> to vector<32x64xf32>
      %cst_104 = arith.constant dense<0.000000e+00> : vector<17x64xf32>
      %109 = tpu.matmul %106, %108, %cst_104 {dimension_numbers = #tpu.dot_dimension_numbers<[1], [0], [0], [1], [0, 0, 1, 1], [], []>} : vector<17x32xf32>, vector<32x64xf32>, vector<17x64xf32> -> vector<17x64xf32>
      %110 = arith.addf %104, %109 : vector<17x64xf32>
      %111 = vector.broadcast %51 : vector<1x64xf32> to vector<17x64xf32>
      %112 = arith.addf %110, %111 : vector<17x64xf32>
      %113 = math.tanh %112 : vector<17x64xf32>
      %c0_105 = arith.constant 0 : index
      %c0_106 = arith.constant 0 : index
      %c0_107 = arith.constant 0 : index
      %114 = vector.load %arg11[%c0_105, %c0_106, %c0_107] : memref<2x17x64xf32, #tpu.memory_space<vmem>>, vector<1x17x64xf32>
      %115 = vector.shape_cast %114 : vector<1x17x64xf32> to vector<17x64xf32>
      %116 = vector.shape_cast %113 : vector<17x64xf32> to vector<1x17x64xf32>
      tpu.vector_store %arg11[%c0_105, %c0_106, %c0_107], %116 {strides = array<i32>} : memref<2x17x64xf32, #tpu.memory_space<vmem>>, vector<1x17x64xf32>,
      %c1_108 = arith.constant 1 : index
      %c0_109 = arith.constant 0 : index
      %c0_110 = arith.constant 0 : index
      %117 = vector.load %arg10[%c1_108, %c0_109, %c0_110] : memref<2x26x32xf32, #tpu.memory_space<vmem>>, vector<1x17x32xf32>
      %118 = vector.shape_cast %117 : vector<1x17x32xf32> to vector<17x32xf32>
      %c0_111 = arith.constant 0 : index
      %c0_112 = arith.constant 0 : index
      %c0_113 = arith.constant 0 : index
      %119 = vector.load %arg3[%c0_111, %c0_112, %c0_113] : memref<10x32x64xf32, #tpu.memory_space<vmem>>, vector<1x32x64xf32>
      %120 = vector.shape_cast %119 : vector<1x32x64xf32> to vector<32x64xf32>
      %cst_114 = arith.constant dense<0.000000e+00> : vector<17x64xf32>
      %121 = tpu.matmul %118, %120, %cst_114 {dimension_numbers = #tpu.dot_dimension_numbers<[1], [0], [0], [1], [0, 0, 1, 1], [], []>} : vector<17x32xf32>, vector<32x64xf32>, vector<17x64xf32> -> vector<17x64xf32>
      %c1_115 = arith.constant 1 : index
      %c1_116 = arith.constant 1 : index
      %c0_117 = arith.constant 0 : index
      %122 = vector.load %arg10[%c1_115, %c1_116, %c0_117] : memref<2x26x32xf32, #tpu.memory_space<vmem>>, vector<1x17x32xf32>
      %123 = vector.shape_cast %122 : vector<1x17x32xf32> to vector<17x32xf32>
      %c1_118 = arith.constant 1 : index
      %c0_119 = arith.constant 0 : index
      %c0_120 = arith.constant 0 : index
      %124 = vector.load %arg3[%c1_118, %c0_119, %c0_120] : memref<10x32x64xf32, #tpu.memory_space<vmem>>, vector<1x32x64xf32>
      %125 = vector.shape_cast %124 : vector<1x32x64xf32> to vector<32x64xf32>
      %cst_121 = arith.constant dense<0.000000e+00> : vector<17x64xf32>
      %126 = tpu.matmul %123, %125, %cst_121 {dimension_numbers = #tpu.dot_dimension_numbers<[1], [0], [0], [1], [0, 0, 1, 1], [], []>} : vector<17x32xf32>, vector<32x64xf32>, vector<17x64xf32> -> vector<17x64xf32>
      %127 = arith.addf %121, %126 : vector<17x64xf32>
      %c1_122 = arith.constant 1 : index
      %c2_123 = arith.constant 2 : index
      %c0_124 = arith.constant 0 : index
      %128 = vector.load %arg10[%c1_122, %c2_123, %c0_124] : memref<2x26x32xf32, #tpu.memory_space<vmem>>, vector<1x17x32xf32>
      %129 = vector.shape_cast %128 : vector<1x17x32xf32> to vector<17x32xf32>
      %c2_125 = arith.constant 2 : index
      %c0_126 = arith.constant 0 : index
      %c0_127 = arith.constant 0 : index
      %130 = vector.load %arg3[%c2_125, %c0_126, %c0_127] : memref<10x32x64xf32, #tpu.memory_space<vmem>>, vector<1x32x64xf32>
      %131 = vector.shape_cast %130 : vector<1x32x64xf32> to vector<32x64xf32>
      %cst_128 = arith.constant dense<0.000000e+00> : vector<17x64xf32>
      %132 = tpu.matmul %129, %131, %cst_128 {dimension_numbers = #tpu.dot_dimension_numbers<[1], [0], [0], [1], [0, 0, 1, 1], [], []>} : vector<17x32xf32>, vector<32x64xf32>, vector<17x64xf32> -> vector<17x64xf32>
      %133 = arith.addf %127, %132 : vector<17x64xf32>
      %c1_129 = arith.constant 1 : index
      %c3_130 = arith.constant 3 : index
      %c0_131 = arith.constant 0 : index
      %134 = vector.load %arg10[%c1_129, %c3_130, %c0_131] : memref<2x26x32xf32, #tpu.memory_space<vmem>>, vector<1x17x32xf32>
      %135 = vector.shape_cast %134 : vector<1x17x32xf32> to vector<17x32xf32>
      %c3_132 = arith.constant 3 : index
      %c0_133 = arith.constant 0 : index
      %c0_134 = arith.constant 0 : index
      %136 = vector.load %arg3[%c3_132, %c0_133, %c0_134] : memref<10x32x64xf32, #tpu.memory_space<vmem>>, vector<1x32x64xf32>
      %137 = vector.shape_cast %136 : vector<1x32x64xf32> to vector<32x64xf32>
      %cst_135 = arith.constant dense<0.000000e+00> : vector<17x64xf32>
      %138 = tpu.matmul %135, %137, %cst_135 {dimension_numbers = #tpu.dot_dimension_numbers<[1], [0], [0], [1], [0, 0, 1, 1], [], []>} : vector<17x32xf32>, vector<32x64xf32>, vector<17x64xf32> -> vector<17x64xf32>
      %139 = arith.addf %133, %138 : vector<17x64xf32>
      %c1_136 = arith.constant 1 : index
      %c4_137 = arith.constant 4 : index
      %c0_138 = arith.constant 0 : index
      %140 = vector.load %arg10[%c1_136, %c4_137, %c0_138] : memref<2x26x32xf32, #tpu.memory_space<vmem>>, vector<1x17x32xf32>
      %141 = vector.shape_cast %140 : vector<1x17x32xf32> to vector<17x32xf32>
      %c4_139 = arith.constant 4 : index
      %c0_140 = arith.constant 0 : index
      %c0_141 = arith.constant 0 : index
      %142 = vector.load %arg3[%c4_139, %c0_140, %c0_141] : memref<10x32x64xf32, #tpu.memory_space<vmem>>, vector<1x32x64xf32>
      %143 = vector.shape_cast %142 : vector<1x32x64xf32> to vector<32x64xf32>
      %cst_142 = arith.constant dense<0.000000e+00> : vector<17x64xf32>
      %144 = tpu.matmul %141, %143, %cst_142 {dimension_numbers = #tpu.dot_dimension_numbers<[1], [0], [0], [1], [0, 0, 1, 1], [], []>} : vector<17x32xf32>, vector<32x64xf32>, vector<17x64xf32> -> vector<17x64xf32>
      %145 = arith.addf %139, %144 : vector<17x64xf32>
      %c1_143 = arith.constant 1 : index
      %c5_144 = arith.constant 5 : index
      %c0_145 = arith.constant 0 : index
      %146 = vector.load %arg10[%c1_143, %c5_144, %c0_145] : memref<2x26x32xf32, #tpu.memory_space<vmem>>, vector<1x17x32xf32>
      %147 = vector.shape_cast %146 : vector<1x17x32xf32> to vector<17x32xf32>
      %c5_146 = arith.constant 5 : index
      %c0_147 = arith.constant 0 : index
      %c0_148 = arith.constant 0 : index
      %148 = vector.load %arg3[%c5_146, %c0_147, %c0_148] : memref<10x32x64xf32, #tpu.memory_space<vmem>>, vector<1x32x64xf32>
      %149 = vector.shape_cast %148 : vector<1x32x64xf32> to vector<32x64xf32>
      %cst_149 = arith.constant dense<0.000000e+00> : vector<17x64xf32>
      %150 = tpu.matmul %147, %149, %cst_149 {dimension_numbers = #tpu.dot_dimension_numbers<[1], [0], [0], [1], [0, 0, 1, 1], [], []>} : vector<17x32xf32>, vector<32x64xf32>, vector<17x64xf32> -> vector<17x64xf32>
      %151 = arith.addf %145, %150 : vector<17x64xf32>
      %c1_150 = arith.constant 1 : index
      %c6_151 = arith.constant 6 : index
      %c0_152 = arith.constant 0 : index
      %152 = vector.load %arg10[%c1_150, %c6_151, %c0_152] : memref<2x26x32xf32, #tpu.memory_space<vmem>>, vector<1x17x32xf32>
      %153 = vector.shape_cast %152 : vector<1x17x32xf32> to vector<17x32xf32>
      %c6_153 = arith.constant 6 : index
      %c0_154 = arith.constant 0 : index
      %c0_155 = arith.constant 0 : index
      %154 = vector.load %arg3[%c6_153, %c0_154, %c0_155] : memref<10x32x64xf32, #tpu.memory_space<vmem>>, vector<1x32x64xf32>
      %155 = vector.shape_cast %154 : vector<1x32x64xf32> to vector<32x64xf32>
      %cst_156 = arith.constant dense<0.000000e+00> : vector<17x64xf32>
      %156 = tpu.matmul %153, %155, %cst_156 {dimension_numbers = #tpu.dot_dimension_numbers<[1], [0], [0], [1], [0, 0, 1, 1], [], []>} : vector<17x32xf32>, vector<32x64xf32>, vector<17x64xf32> -> vector<17x64xf32>
      %157 = arith.addf %151, %156 : vector<17x64xf32>
      %c1_157 = arith.constant 1 : index
      %c7_158 = arith.constant 7 : index
      %c0_159 = arith.constant 0 : index
      %158 = vector.load %arg10[%c1_157, %c7_158, %c0_159] : memref<2x26x32xf32, #tpu.memory_space<vmem>>, vector<1x17x32xf32>
      %159 = vector.shape_cast %158 : vector<1x17x32xf32> to vector<17x32xf32>
      %c7_160 = arith.constant 7 : index
      %c0_161 = arith.constant 0 : index
      %c0_162 = arith.constant 0 : index
      %160 = vector.load %arg3[%c7_160, %c0_161, %c0_162] : memref<10x32x64xf32, #tpu.memory_space<vmem>>, vector<1x32x64xf32>
      %161 = vector.shape_cast %160 : vector<1x32x64xf32> to vector<32x64xf32>
      %cst_163 = arith.constant dense<0.000000e+00> : vector<17x64xf32>
      %162 = tpu.matmul %159, %161, %cst_163 {dimension_numbers = #tpu.dot_dimension_numbers<[1], [0], [0], [1], [0, 0, 1, 1], [], []>} : vector<17x32xf32>, vector<32x64xf32>, vector<17x64xf32> -> vector<17x64xf32>
      %163 = arith.addf %157, %162 : vector<17x64xf32>
      %c1_164 = arith.constant 1 : index
      %c8_165 = arith.constant 8 : index
      %c0_166 = arith.constant 0 : index
      %164 = vector.load %arg10[%c1_164, %c8_165, %c0_166] : memref<2x26x32xf32, #tpu.memory_space<vmem>>, vector<1x17x32xf32>
      %165 = vector.shape_cast %164 : vector<1x17x32xf32> to vector<17x32xf32>
      %c8_167 = arith.constant 8 : index
      %c0_168 = arith.constant 0 : index
      %c0_169 = arith.constant 0 : index
      %166 = vector.load %arg3[%c8_167, %c0_168, %c0_169] : memref<10x32x64xf32, #tpu.memory_space<vmem>>, vector<1x32x64xf32>
      %167 = vector.shape_cast %166 : vector<1x32x64xf32> to vector<32x64xf32>
      %cst_170 = arith.constant dense<0.000000e+00> : vector<17x64xf32>
      %168 = tpu.matmul %165, %167, %cst_170 {dimension_numbers = #tpu.dot_dimension_numbers<[1], [0], [0], [1], [0, 0, 1, 1], [], []>} : vector<17x32xf32>, vector<32x64xf32>, vector<17x64xf32> -> vector<17x64xf32>
      %169 = arith.addf %163, %168 : vector<17x64xf32>
      %c1_171 = arith.constant 1 : index
      %c9_172 = arith.constant 9 : index
      %c0_173 = arith.constant 0 : index
      %170 = vector.load %arg10[%c1_171, %c9_172, %c0_173] : memref<2x26x32xf32, #tpu.memory_space<vmem>>, vector<1x17x32xf32>
      %171 = vector.shape_cast %170 : vector<1x17x32xf32> to vector<17x32xf32>
      %c9_174 = arith.constant 9 : index
      %c0_175 = arith.constant 0 : index
      %c0_176 = arith.constant 0 : index
      %172 = vector.load %arg3[%c9_174, %c0_175, %c0_176] : memref<10x32x64xf32, #tpu.memory_space<vmem>>, vector<1x32x64xf32>
      %173 = vector.shape_cast %172 : vector<1x32x64xf32> to vector<32x64xf32>
      %cst_177 = arith.constant dense<0.000000e+00> : vector<17x64xf32>
      %174 = tpu.matmul %171, %173, %cst_177 {dimension_numbers = #tpu.dot_dimension_numbers<[1], [0], [0], [1], [0, 0, 1, 1], [], []>} : vector<17x32xf32>, vector<32x64xf32>, vector<17x64xf32> -> vector<17x64xf32>
      %175 = arith.addf %169, %174 : vector<17x64xf32>
      %176 = vector.broadcast %51 : vector<1x64xf32> to vector<17x64xf32>
      %177 = arith.addf %175, %176 : vector<17x64xf32>
      %178 = math.tanh %177 : vector<17x64xf32>
      %c1_178 = arith.constant 1 : index
      %c0_179 = arith.constant 0 : index
      %c0_180 = arith.constant 0 : index
      %179 = vector.load %arg11[%c1_178, %c0_179, %c0_180] : memref<2x17x64xf32, #tpu.memory_space<vmem>>, vector<1x17x64xf32>
      %180 = vector.shape_cast %179 : vector<1x17x64xf32> to vector<17x64xf32>
      %181 = vector.shape_cast %178 : vector<17x64xf32> to vector<1x17x64xf32>
      tpu.vector_store %arg11[%c1_178, %c0_179, %c0_180], %181 {strides = array<i32>} : memref<2x17x64xf32, #tpu.memory_space<vmem>>, vector<1x17x64xf32>,
    } else {
    }
    %c0 = arith.constant 0 : index
    %c0_1 = arith.constant 0 : index
    %3 = vector.load %arg5[%c0, %c0_1] : memref<8x64xf32, #tpu.memory_space<vmem>>, vector<8x64xf32>
    %c0_2 = arith.constant 0 : index
    %c0_3 = arith.constant 0 : index
    %4 = vector.load %arg6[%c0_2, %c0_3] : memref<8x64xf32, #tpu.memory_space<vmem>>, vector<8x64xf32>
    %c0_4 = arith.constant 0 : index
    %c0_5 = arith.constant 0 : index
    %5 = vector.load %arg7[%c0_4, %c0_5] : memref<1x8xf32, #tpu.memory_space<vmem>>, vector<1x8xf32>
    %cst = arith.constant 1.000000e+00 : f32
    %6 = vector.broadcast %cst : f32 to vector<1x17xf32>
    %c0_6 = arith.constant 0 : index
    %c0_7 = arith.constant 0 : index
    %c0_8 = arith.constant 0 : index
    %7 = vector.load %arg11[%c0_6, %c0_7, %c0_8] : memref<2x17x64xf32, #tpu.memory_space<vmem>>, vector<1x17x64xf32>
    %8 = vector.shape_cast %7 : vector<1x17x64xf32> to vector<17x64xf32>
    %cst_9 = arith.constant dense<0.000000e+00> : vector<8x17xf32>
    %9 = tpu.matmul %3, %8, %cst_9 {dimension_numbers = #tpu.dot_dimension_numbers<[1], [1], [0], [0], [0, 0, 1, 0], [], []>} : vector<8x64xf32>, vector<17x64xf32>, vector<8x17xf32> -> vector<8x17xf32>
    %cst_10 = arith.constant dense<0xFF800000> : vector<8xf32>
    %10 = vector.multi_reduction <maximumf>, %9, %cst_10 [1] : vector<8x17xf32> to vector<8xf32>
    %11 = vector.shape_cast %10 : vector<8xf32> to vector<8x1xf32>
    %12 = vector.broadcast %11 : vector<8x1xf32> to vector<8x17xf32>
    %13 = arith.subf %9, %12 : vector<8x17xf32>
    %14 = math.exp %13 : vector<8x17xf32>
    %cst_11 = arith.constant dense<0.000000e+00> : vector<8xf32>
    %15 = vector.multi_reduction <add>, %14, %cst_11 [1] : vector<8x17xf32> to vector<8xf32>
    %16 = vector.shape_cast %15 : vector<8xf32> to vector<8x1xf32>
    %17 = vector.broadcast %16 : vector<8x1xf32> to vector<8x17xf32>
    %18 = arith.divf %14, %17 : vector<8x17xf32>
    %c0_12 = arith.constant 0 : index
    %c0_13 = arith.constant 0 : index
    %c0_14 = arith.constant 0 : index
    %19 = vector.load %arg9[%c0_12, %c0_13, %c0_14] : memref<2x8x17xf32, #tpu.memory_space<vmem>>, vector<1x8x17xf32>
    %20 = vector.shape_cast %19 : vector<1x8x17xf32> to vector<8x17xf32>
    %21 = vector.shape_cast %18 : vector<8x17xf32> to vector<1x8x17xf32>
    tpu.vector_store %arg9[%c0_12, %c0_13, %c0_14], %21 {strides = array<i32>} : memref<2x8x17xf32, #tpu.memory_space<vmem>>, vector<1x8x17xf32>,
    %cst_15 = arith.constant dense<0.000000e+00> : vector<8x17xf32>
    %22 = tpu.matmul %4, %8, %cst_15 {dimension_numbers = #tpu.dot_dimension_numbers<[1], [1], [0], [0], [0, 0, 1, 0], [], []>} : vector<8x64xf32>, vector<17x64xf32>, vector<8x17xf32> -> vector<8x17xf32>
    %23 = arith.mulf %18, %22 : vector<8x17xf32>
    %cst_16 = arith.constant dense<0.000000e+00> : vector<1x8xf32>
    %24 = tpu.matmul %6, %23, %cst_16 {dimension_numbers = #tpu.dot_dimension_numbers<[1], [1], [0], [0], [0, 0, 1, 0], [], []>} : vector<1x17xf32>, vector<8x17xf32>, vector<1x8xf32> -> vector<1x8xf32>
    %25 = arith.addf %24, %5 : vector<1x8xf32>
    %c0_17 = arith.constant 0 : index
    %c0_18 = arith.constant 0 : index
    %26 = vector.load %arg8[%c0_17, %c0_18] : memref<2x8xf32, #tpu.memory_space<vmem>>, vector<1x8xf32>
    tpu.vector_store %arg8[%c0_17, %c0_18], %25 {strides = array<i32>} : memref<2x8xf32, #tpu.memory_space<vmem>>, vector<1x8xf32>,
    %c1 = arith.constant 1 : index
    %c0_19 = arith.constant 0 : index
    %c0_20 = arith.constant 0 : index
    %27 = vector.load %arg11[%c1, %c0_19, %c0_20] : memref<2x17x64xf32, #tpu.memory_space<vmem>>, vector<1x17x64xf32>
    %28 = vector.shape_cast %27 : vector<1x17x64xf32> to vector<17x64xf32>
    %cst_21 = arith.constant dense<0.000000e+00> : vector<8x17xf32>
    %29 = tpu.matmul %3, %28, %cst_21 {dimension_numbers = #tpu.dot_dimension_numbers<[1], [1], [0], [0], [0, 0, 1, 0], [], []>} : vector<8x64xf32>, vector<17x64xf32>, vector<8x17xf32> -> vector<8x17xf32>
    %cst_22 = arith.constant dense<0xFF800000> : vector<8xf32>
    %30 = vector.multi_reduction <maximumf>, %29, %cst_22 [1] : vector<8x17xf32> to vector<8xf32>
    %31 = vector.shape_cast %30 : vector<8xf32> to vector<8x1xf32>
    %32 = vector.broadcast %31 : vector<8x1xf32> to vector<8x17xf32>
    %33 = arith.subf %29, %32 : vector<8x17xf32>
    %34 = math.exp %33 : vector<8x17xf32>
    %cst_23 = arith.constant dense<0.000000e+00> : vector<8xf32>
    %35 = vector.multi_reduction <add>, %34, %cst_23 [1] : vector<8x17xf32> to vector<8xf32>
    %36 = vector.shape_cast %35 : vector<8xf32> to vector<8x1xf32>
    %37 = vector.broadcast %36 : vector<8x1xf32> to vector<8x17xf32>
    %38 = arith.divf %34, %37 : vector<8x17xf32>
    %c1_24 = arith.constant 1 : index
    %c0_25 = arith.constant 0 : index
    %c0_26 = arith.constant 0 : index
    %39 = vector.load %arg9[%c1_24, %c0_25, %c0_26] : memref<2x8x17xf32, #tpu.memory_space<vmem>>, vector<1x8x17xf32>
    %40 = vector.shape_cast %39 : vector<1x8x17xf32> to vector<8x17xf32>
    %41 = vector.shape_cast %38 : vector<8x17xf32> to vector<1x8x17xf32>
    tpu.vector_store %arg9[%c1_24, %c0_25, %c0_26], %41 {strides = array<i32>} : memref<2x8x17xf32, #tpu.memory_space<vmem>>, vector<1x8x17xf32>,
    %cst_27 = arith.constant dense<0.000000e+00> : vector<8x17xf32>
    %42 = tpu.matmul %4, %28, %cst_27 {dimension_numbers = #tpu.dot_dimension_numbers<[1], [1], [0], [0], [0, 0, 1, 0], [], []>} : vector<8x64xf32>, vector<17x64xf32>, vector<8x17xf32> -> vector<8x17xf32>
    %43 = arith.mulf %38, %42 : vector<8x17xf32>
    %cst_28 = arith.constant dense<0.000000e+00> : vector<1x8xf32>
    %44 = tpu.matmul %6, %43, %cst_28 {dimension_numbers = #tpu.dot_dimension_numbers<[1], [1], [0], [0], [0, 0, 1, 0], [], []>} : vector<1x17xf32>, vector<8x17xf32>, vector<1x8xf32> -> vector<1x8xf32>
    %45 = arith.addf %44, %5 : vector<1x8xf32>
    %c1_29 = arith.constant 1 : index
    %c0_30 = arith.constant 0 : index
    %46 = vector.load %arg8[%c1_29, %c0_30] : memref<2x8xf32, #tpu.memory_space<vmem>>, vector<1x8xf32>
    tpu.vector_store %arg8[%c1_29, %c0_30], %45 {strides = array<i32>} : memref<2x8xf32, #tpu.memory_space<vmem>>, vector<1x8xf32>,
    return
  }
  func.func @transform_0(%arg0: i32, %arg1: i32) -> (i32, i32, i32) {
    %c0_i32 = arith.constant 0 : i32
    %c0_i32_0 = arith.constant 0 : i32
    %c0_i32_1 = arith.constant 0 : i32
    return %arg0, %c0_i32, %c0_i32_0 : i32, i32, i32
  }
  func.func @transform_1(%arg0: i32, %arg1: i32) -> (i32, i32, i32) {
    %c0_i32 = arith.constant 0 : i32
    %c0_i32_0 = arith.constant 0 : i32
    %c0_i32_1 = arith.constant 0 : i32
    %c0_i32_2 = arith.constant 0 : i32
    return %c0_i32, %c0_i32_0, %c0_i32_1 : i32, i32, i32
  }
  func.func @transform_2(%arg0: i32, %arg1: i32) -> (i32, i32) {
    %c0_i32 = arith.constant 0 : i32
    %c0_i32_0 = arith.constant 0 : i32
    %c0_i32_1 = arith.constant 0 : i32
    return %c0_i32, %c0_i32_0 : i32, i32
  }
  func.func @transform_3(%arg0: i32, %arg1: i32) -> (i32, i32) {
    %c0_i32 = arith.constant 0 : i32
    %c0_i32_0 = arith.constant 0 : i32
    return %arg1, %c0_i32 : i32, i32
  }
  func.func @transform_4(%arg0: i32, %arg1: i32) -> (i32, i32) {
    %c0_i32 = arith.constant 0 : i32
    %c0_i32_0 = arith.constant 0 : i32
    return %arg1, %c0_i32 : i32, i32
  }
  func.func @transform_5(%arg0: i32, %arg1: i32) -> (i32, i32) {
    %c0_i32 = arith.constant 0 : i32
    %c0_i32_0 = arith.constant 0 : i32
    return %c0_i32, %arg1 : i32, i32
  }
  func.func @transform_6(%arg0: i32, %arg1: i32) -> (i32, i32) {
    %c0_i32 = arith.constant 0 : i32
    return %arg0, %arg1 : i32, i32
  }
  func.func @transform_7(%arg0: i32, %arg1: i32) -> (i32, i32, i32) {
    %c0_i32 = arith.constant 0 : i32
    %c0_i32_0 = arith.constant 0 : i32
    return %arg0, %arg1, %c0_i32 : i32, i32, i32
  }
}

</mosaic_0001>

<llo_original>
// kernel: caml_forward.1
$region0: #{caml_forward.1}
  #allocation0 [shape = 'u32[]', space=smem, size = 0x4, offset = 0x4, fixed_abs, tag = 'smem constant byte address 0x4 - core index']
  #allocation1 [shape = 'u32[144,128]{1,0:T(1,128)}', space=vmem, size = 0x12000, scoped, tag = 'internal scratch']
  #allocation2 [shape = 'f32[2,26,32]{2,1,0:T(8,128)}', space=vmem, size = 0x8000, scoped, tag = 'scratch operand']
  #allocation3 [shape = 'f32[2,17,64]{2,1,0:T(8,128)}', space=vmem, size = 0x6000, scoped, tag = 'scratch operand']
  %s0 = inlined_call_operand.vmem [shape: f32[2,16,32], index: 0, kind: input, shape index: {}]
  %s1 = inlined_call_operand.vmem [shape: f32[10,32,64], index: 1, kind: input, shape index: {}]
  %s2 = inlined_call_operand.vmem [shape: f32[1,64], index: 2, kind: input, shape index: {}]
  %s3 = inlined_call_operand.vmem [shape: f32[8,64], index: 3, kind: input, shape index: {}]
  %s4 = inlined_call_operand.vmem [shape: f32[8,64], index: 4, kind: input, shape index: {}]
  %s5 = inlined_call_operand.vmem [shape: f32[1,8], index: 5, kind: input, shape index: {}]
  %s6 = inlined_call_operand.vmem [shape: f32[2,8], index: 6, kind: output, shape index: {0}]
  %s7 = inlined_call_operand.hbm [shape: f32[2,8,17], index: 7, kind: output, shape index: {1}]
  %8 = xla_tuple %s6, %s7
  %s9 = sld [smem:[#allocation0]]
  $region46: #{caml_forward.1} parent=0
    _
  %s11 = ssub.s32 1, %s9
  %s12 = scalar_select 0, %s11, %s9
  $region1: #{caml_forward.1} parent=0
    #allocation4 [shape = 'u8[8192]{0}', space=vmem, size = 0x2000, scoped, tag = 'output window, operand 1, single buffered']
    #allocation5 [shape = 's32[1]{0}', space=sflag, size = 0x4, scoped, tag = 'scoped memory for caml_forward.1']
    %13 = vsyncpa [#allocation5], 0
    // Predicated region
    $region2: #{caml_forward.1} parent=1 // pred_check
      _
    $region3: #{caml_forward.1} parent=1 // pred_check_branch
      %15 = sbr.rel (0) target = $region5
    $region4: #{caml_forward.1} parent=1 // pred_region
      _
    $region5: #{caml_forward.1} parent=1 // pred_fallthru
      _
    // Predicated region
    $region6: #{caml_forward.1} parent=1 // pred_check
      _
    $region7: #{caml_forward.1} parent=1 // pred_check_branch
      %17 = sbr.rel (0) target = $region9
    $region8: #{caml_forward.1} parent=1 // pred_region
      _
    $region9: #{caml_forward.1} parent=1 // pred_fallthru
      _
    // Predicated region
    $region10: #{caml_forward.1} parent=1 // pred_check
      _
    $region11: #{caml_forward.1} parent=1 // pred_check_branch
      %19 = sbr.rel (0) target = $region13
    $region12: #{caml_forward.1} parent=1 // pred_region
      _
    $region13: #{caml_forward.1} parent=1 // pred_fallthru
      _
    // Predicated region
    $region14: #{caml_forward.1} parent=1 // pred_check
      _
    $region15: #{caml_forward.1} parent=1 // pred_check_branch
      %21 = sbr.rel (0) target = $region17
    $region16: #{caml_forward.1} parent=1 // pred_region
      _
    $region17: #{caml_forward.1} parent=1 // pred_fallthru
      _
    // Predicated region
    $region18: #{caml_forward.1} parent=1 // pred_check
      _
    $region19: #{caml_forward.1} parent=1 // pred_check_branch
      %23 = sbr.rel (0) target = $region21
    $region20: #{caml_forward.1} parent=1 // pred_region
      _
    $region21: #{caml_forward.1} parent=1 // pred_fallthru
      _
    // Predicated region
    $region22: #{caml_forward.1} parent=1 // pred_check
      _
    $region23: #{caml_forward.1} parent=1 // pred_check_branch
      %25 = sbr.rel (0) target = $region25
    $region24: #{caml_forward.1} parent=1 // pred_region
      _
    $region25: #{caml_forward.1} parent=1 // pred_fallthru
      _
    %p26 = scmp.eq.s32.totalorder 0, 0
    // Predicated region
    $region26: #{caml_forward.1} parent=1 // pred_check
      %p27 = pneg %p26
    $region27: #{caml_forward.1} parent=1 // pred_check_branch
      %29 = sbr.rel (%p27) target = $region29
    $region28: #{caml_forward.1} parent=1 // pred_region
      %vm30 = vcmask 261120
      %31 = vst.msk [vmem:[#allocation2] sm:$0xff] %vm30, 0.0
      %32 = vst.msk [vmem:[#allocation2 + $0x8] sm:$0xff] %vm30, 0.0
      %33 = vst.msk [vmem:[#allocation2 + $0x10] sm:$0xff] %vm30, 0.0
      %vm34 = vcmask 254976
      %35 = vst.msk [vmem:[#allocation2 + $0x18] sm:$0x3] %vm34, 0.0
      %36 = vst.msk [vmem:[#allocation2 + $0x20] sm:$0xff] %vm30, 0.0
      %37 = vst.msk [vmem:[#allocation2 + $0x28] sm:$0xff] %vm30, 0.0
      %38 = vst.msk [vmem:[#allocation2 + $0x30] sm:$0xff] %vm30, 0.0
      %39 = vst.msk [vmem:[#allocation2 + $0x38] sm:$0x3] %vm34, 0.0
      %v40 = vld [vmem:[%s0] sm:$0xff]
      %v41 = vld [vmem:[%s0 + $0x8] sm:$0xff]
      %v42 = vld [vmem:[%s0 + $0x10] sm:$0xff]
      %v43 = vld [vmem:[%s0 + $0x18] sm:$0xff]
      %44 = vst.msk [vmem:[#allocation2 + $0x5] sm:$0xff] %vm30, %v40
      %45 = vst.msk [vmem:[#allocation2 + $0xd] sm:$0xff] %vm30, %v41
      %46 = vst.msk [vmem:[#allocation2 + $0x25] sm:$0xff] %vm30, %v42
      %47 = vst.msk [vmem:[#allocation2 + $0x2d] sm:$0xff] %vm30, %v43
      %v48 = vld [vmem:[%s2] sm:$0x1]
      %v49 = vld [vmem:[#allocation2] sm:$0xff]
      %v50 = vld [vmem:[#allocation2 + $0x8] sm:$0xff]
      %v51 = vld [vmem:[#allocation2 + $0x10] sm:$0x1]
      %v52 = vld [vmem:[%s1] sm:$0xff]
      %v53 = vld [vmem:[%s1 + $0x8] sm:$0xff]
      %v54 = vld [vmem:[%s1 + $0x10] sm:$0xff]
      %v55 = vld [vmem:[%s1 + $0x18] sm:$0xff]
      %v56 = vld [vmem:[#allocation2 + $0x1] sm:$0xff]
      %v57 = vld [vmem:[#allocation2 + $0x9] sm:$0xff]
      %v58 = vld [vmem:[#allocation2 + $0x11] sm:$0x1]
      %s59 = scalar_lea.vmem %s1, 32
      %v60 = vld [vmem:[%s59] sm:$0xff]
      %v61 = vld [vmem:[%s59 + $0x8] sm:$0xff]
      %v62 = vld [vmem:[%s59 + $0x10] sm:$0xff]
      %v63 = vld [vmem:[%s59 + $0x18] sm:$0xff]
      %v65 = vsel %vm30, %v56, 0
      %v68 = vsel %vm30, %v57, 0
      %v71 = vsel %vm30, %v58, 0
      %73 = vmatprep.subr.mxu0 0.0
      %74 = vmatpush1.msra.mxu0 %v60
      %75 = vmatprep.subr.mxu0 0.0
      %76 = vmatpush1.msra.mxu0 %v61
      %77 = vmatprep.subr.mxu0 0.0
      %78 = vmatpush1.msra.mxu0 %v62
      %79 = vmatprep.subr.mxu0 0.0
      %80 = vmatpush1.msra.mxu0 %v63
      %81 = vmatprep.subr.mxu0 0.0
      %82 = vmatpush1.msra.mxu0 0.0
      %83 = vmatprep.subr.mxu0 0.0
      %84 = vmatpush1.msra.mxu0 0.0
      %85 = vmatprep.subr.mxu0 0.0
      %86 = vmatpush1.msra.mxu0 0.0
      %87 = vmatprep.subr.mxu0 0.0
      %88 = vmatpush1.msra.mxu0 0.0
      %89 = vmatprep.subr.mxu0 0.0
      %90 = vmatpush1.msra.mxu0 0.0
      %91 = vmatprep.subr.mxu0 0.0
      %92 = vmatpush1.msra.mxu0 0.0
      %93 = vmatprep.subr.mxu0 0.0
      %94 = vmatpush1.msra.mxu0 0.0
      %95 = vmatprep.subr.mxu0 0.0
      %96 = vmatpush1.msra.mxu0 0.0
      %97 = vmatprep.subr.mxu0 0.0
      %98 = vmatpush1.msra.mxu0 0.0
      %99 = vmatprep.subr.mxu0 0.0
      %100 = vmatpush1.msra.mxu0 0.0
      %101 = vmatprep.subr.mxu0 0.0
      %102 = vmatpush1.msra.mxu0 0.0
      %103 = vmatprep.subr.mxu0 0.0
      %104 = vmatpush1.msra.mxu0 0.0
      %105 = vmatprep.subr.mxu0 0.0
      %106 = vmatpush1.msra.mxu0 0.0
      %107 = vmatprep.subr.mxu0 0.0
      %108 = vmatpush1.msra.mxu0 0.0
      %109 = vmatprep.subr.mxu0 0.0
      %110 = vmatpush1.msra.mxu0 0.0
      %111 = vmatprep.subr.mxu0 0.0
      %112 = vmatpush1.msra.mxu0 0.0
      %113 = vmatprep.subr.mxu0 0.0
      %114 = vmatpush1.msra.mxu0 0.0
      %115 = vmatprep.subr.mxu0 0.0
      %116 = vmatpush1.msra.mxu0 0.0
      %117 = vmatprep.subr.mxu0 0.0
      %118 = vmatpush1.msra.mxu0 0.0
      %119 = vmatprep.subr.mxu0 0.0
      %120 = vmatpush1.msra.mxu0 0.0
      %121 = vmatprep.subr.mxu0 0.0
      %122 = vmatpush1.msra.mxu0 0.0
      %123 = vmatprep.subr.mxu0 0.0
      %124 = vmatpush1.msra.mxu0 0.0
      %125 = vmatprep.subr.mxu0 0.0
      %126 = vmatpush1.msra.mxu0 0.0
      %127 = vmatprep.subr.mxu0 0.0
      %128 = vmatpush1.msra.mxu0 0.0
      %129 = vmatprep.subr.mxu0 0.0
      %130 = vmatpush1.msra.mxu0 0.0
      %131 = vmatprep.subr.mxu0 0.0
      %132 = vmatpush1.msra.mxu0 0.0
      %133 = vmatprep.subr.mxu0 0.0
      %134 = vmatpush1.msra.mxu0 0.0
      %135 = vmatprep.subr.mxu0 0.0
      %136 = vmatpush1.msra.mxu0 0.0
      %137 = vmatprep.mubr.f32.mxu0 0.0
      %138 = vmatmul.mubr.f32.gmra.mrb[0].mxu0 %v65
      %v139 = vpop.f32.mrb[0].mxu0
      %v140 = vadd.f32 0.0, %v139
      %v141 = vpop.f32.mrb[0].mxu0
      %142 = vmatprep.mubr.f32.mxu0 0.0
      %143 = vmatmul.mubr.f32.gmra.mrb[0].mxu0 %v68
      %v144 = vpop.f32.mrb[0].mxu0
      %v145 = vadd.f32 0.0, %v144
      %v146 = vpop.f32.mrb[0].mxu0
      %147 = vmatprep.mubr.f32.mxu0 0.0
      %148 = vmatmul.mubr.f32.gmra.mrb[0].mxu0 %v71
      %v149 = vpop.f32.mrb[0].mxu0
      %v150 = vadd.f32 0.0, %v149
      %v151 = vpop.f32.mrb[0].mxu0
      %152 = vdwg.mxu0
      %v154 = vsel %vm30, %v49, 0
      %v157 = vsel %vm30, %v50, 0
      %v160 = vsel %vm30, %v51, 0
      %162 = vmatprep.subr.mxu0 0.0
      %163 = vmatpush1.msra.mxu0 %v52
      %164 = vmatprep.subr.mxu0 0.0
      %165 = vmatpush1.msra.mxu0 %v53
      %166 = vmatprep.subr.mxu0 0.0
      %167 = vmatpush1.msra.mxu0 %v54
      %168 = vmatprep.subr.mxu0 0.0
      %169 = vmatpush1.msra.mxu0 %v55
      %170 = vmatprep.subr.mxu0 0.0
      %171 = vmatpush1.msra.mxu0 0.0
      %172 = vmatprep.subr.mxu0 0.0
      %173 = vmatpush1.msra.mxu0 0.0
      %174 = vmatprep.subr.mxu0 0.0
      %175 = vmatpush1.msra.mxu0 0.0
      %176 = vmatprep.subr.mxu0 0.0
      %177 = vmatpush1.msra.mxu0 0.0
      %178 = vmatprep.subr.mxu0 0.0
      %179 = vmatpush1.msra.mxu0 0.0
      %180 = vmatprep.subr.mxu0 0.0
      %181 = vmatpush1.msra.mxu0 0.0
      %182 = vmatprep.subr.mxu0 0.0
      %183 = vmatpush1.msra.mxu0 0.0
      %184 = vmatprep.subr.mxu0 0.0
      %185 = vmatpush1.msra.mxu0 0.0
      %186 = vmatprep.subr.mxu0 0.0
      %187 = vmatpush1.msra.mxu0 0.0
      %188 = vmatprep.subr.mxu0 0.0
      %189 = vmatpush1.msra.mxu0 0.0
      %190 = vmatprep.subr.mxu0 0.0
      %191 = vmatpush1.msra.mxu0 0.0
      %192 = vmatprep.subr.mxu0 0.0
      %193 = vmatpush1.msra.mxu0 0.0
      %194 = vmatprep.subr.mxu0 0.0
      %195 = vmatpush1.msra.mxu0 0.0
      %196 = vmatprep.subr.mxu0 0.0
      %197 = vmatpush1.msra.mxu0 0.0
      %198 = vmatprep.subr.mxu0 0.0
      %199 = vmatpush1.msra.mxu0 0.0
      %200 = vmatprep.subr.mxu0 0.0
      %201 = vmatpush1.msra.mxu0 0.0
      %202 = vmatprep.subr.mxu0 0.0
      %203 = vmatpush1.msra.mxu0 0.0
      %204 = vmatprep.subr.mxu0 0.0
      %205 = vmatpush1.msra.mxu0 0.0
      %206 = vmatprep.subr.mxu0 0.0
      %207 = vmatpush1.msra.mxu0 0.0
      %208 = vmatprep.subr.mxu0 0.0
      %209 = vmatpush1.msra.mxu0 0.0
      %210 = vmatprep.subr.mxu0 0.0
      %211 = vmatpush1.msra.mxu0 0.0
      %212 = vmatprep.subr.mxu0 0.0
      %213 = vmatpush1.msra.mxu0 0.0
      %214 = vmatprep.subr.mxu0 0.0
      %215 = vmatpush1.msra.mxu0 0.0
      %216 = vmatprep.subr.mxu0 0.0
      %217 = vmatpush1.msra.mxu0 0.0
      %218 = vmatprep.subr.mxu0 0.0
      %219 = vmatpush1.msra.mxu0 0.0
      %220 = vmatprep.subr.mxu0 0.0
      %221 = vmatpush1.msra.mxu0 0.0
      %222 = vmatprep.subr.mxu0 0.0
      %223 = vmatpush1.msra.mxu0 0.0
      %224 = vmatprep.subr.mxu0 0.0
      %225 = vmatpush1.msra.mxu0 0.0
      %226 = vmatprep.mubr.f32.mxu0 0.0
      %227 = vmatmul.mubr.f32.gmra.mrb[0].mxu0 %v154
      %v228 = vpop.f32.mrb[0].mxu0
      %v229 = vadd.f32 %v140, %v228
      %v230 = vpop.f32.mrb[0].mxu0
      %231 = vmatprep.mubr.f32.mxu0 0.0
      %232 = vmatmul.mubr.f32.gmra.mrb[0].mxu0 %v157
      %v233 = vpop.f32.mrb[0].mxu0
      %v234 = vadd.f32 %v145, %v233
      %v235 = vpop.f32.mrb[0].mxu0
      %236 = vmatprep.mubr.f32.mxu0 0.0
      %237 = vmatmul.mubr.f32.gmra.mrb[0].mxu0 %v160
      %v238 = vpop.f32.mrb[0].mxu0
      %v239 = vadd.f32 %v150, %v238
      %v240 = vpop.f32.mrb[0].mxu0
      %241 = vdwg.mxu0
      %v242 = vld [vmem:[#allocation2 + $0x2] sm:$0xff]
      %v243 = vld [vmem:[#allocation2 + $0xa] sm:$0xff]
      %v244 = vld [vmem:[#allocation2 + $0x12] sm:$0x1]
      %s245 = scalar_lea.vmem %s1, 64
      %v246 = vld [vmem:[%s245] sm:$0xff]
      %v247 = vld [vmem:[%s245 + $0x8] sm:$0xff]
      %v248 = vld [vmem:[%s245 + $0x10] sm:$0xff]
      %v249 = vld [vmem:[%s245 + $0x18] sm:$0xff]
      %v251 = vsel %vm30, %v242, 0
      %v254 = vsel %vm30, %v243, 0
      %v257 = vsel %vm30, %v244, 0
      %259 = vmatprep.subr.mxu0 0.0
      %260 = vmatpush1.msra.mxu0 %v246
      %261 = vmatprep.subr.mxu0 0.0
      %262 = vmatpush1.msra.mxu0 %v247
      %263 = vmatprep.subr.mxu0 0.0
      %264 = vmatpush1.msra.mxu0 %v248
      %265 = vmatprep.subr.mxu0 0.0
      %266 = vmatpush1.msra.mxu0 %v249
      %267 = vmatprep.subr.mxu0 0.0
      %268 = vmatpush1.msra.mxu0 0.0
      %269 = vmatprep.subr.mxu0 0.0
      %270 = vmatpush1.msra.mxu0 0.0
      %271 = vmatprep.subr.mxu0 0.0
      %272 = vmatpush1.msra.mxu0 0.0
      %273 = vmatprep.subr.mxu0 0.0
      %274 = vmatpush1.msra.mxu0 0.0
      %275 = vmatprep.subr.mxu0 0.0
      %276 = vmatpush1.msra.mxu0 0.0
      %277 = vmatprep.subr.mxu0 0.0
      %278 = vmatpush1.msra.mxu0 0.0
      %279 = vmatprep.subr.mxu0 0.0
      %280 = vmatpush1.msra.mxu0 0.0
      %281 = vmatprep.subr.mxu0 0.0
      %282 = vmatpush1.msra.mxu0 0.0
      %283 = vmatprep.subr.mxu0 0.0
      %284 = vmatpush1.msra.mxu0 0.0
      %285 = vmatprep.subr.mxu0 0.0
      %286 = vmatpush1.msra.mxu0 0.0
      %287 = vmatprep.subr.mxu0 0.0
      %288 = vmatpush1.msra.mxu0 0.0
      %289 = vmatprep.subr.mxu0 0.0
      %290 = vmatpush1.msra.mxu0 0.0
      %291 = vmatprep.subr.mxu0 0.0
      %292 = vmatpush1.msra.mxu0 0.0
      %293 = vmatprep.subr.mxu0 0.0
      %294 = vmatpush1.msra.mxu0 0.0
      %295 = vmatprep.subr.mxu0 0.0
      %296 = vmatpush1.msra.mxu0 0.0
      %297 = vmatprep.subr.mxu0 0.0
      %298 = vmatpush1.msra.mxu0 0.0
      %299 = vmatprep.subr.mxu0 0.0
      %300 = vmatpush1.msra.mxu0 0.0
      %301 = vmatprep.subr.mxu0 0.0
      %302 = vmatpush1.msra.mxu0 0.0
      %303 = vmatprep.subr.mxu0 0.0
      %304 = vmatpush1.msra.mxu0 0.0
      %305 = vmatprep.subr.mxu0 0.0
      %306 = vmatpush1.msra.mxu0 0.0
      %307 = vmatprep.subr.mxu0 0.0
      %308 = vmatpush1.msra.mxu0 0.0
      %309 = vmatprep.subr.mxu0 0.0
      %310 = vmatpush1.msra.mxu0 0.0
      %311 = vmatprep.subr.mxu0 0.0
      %312 = vmatpush1.msra.mxu0 0.0
      %313 = vmatprep.subr.mxu0 0.0
      %314 = vmatpush1.msra.mxu0 0.0
      %315 = vmatprep.subr.mxu0 0.0
      %316 = vmatpush1.msra.mxu0 0.0
      %317 = vmatprep.subr.mxu0 0.0
      %318 = vmatpush1.msra.mxu0 0.0
      %319 = vmatprep.subr.mxu0 0.0
      %320 = vmatpush1.msra.mxu0 0.0
      %321 = vmatprep.subr.mxu0 0.0
      %322 = vmatpush1.msra.mxu0 0.0
      %323 = vmatprep.mubr.f32.mxu0 0.0
      %324 = vmatmul.mubr.f32.gmra.mrb[0].mxu0 %v251
      %v325 = vpop.f32.mrb[0].mxu0
      %v326 = vadd.f32 0.0, %v325
      %v327 = vpop.f32.mrb[0].mxu0
      %328 = vmatprep.mubr.f32.mxu0 0.0
      %329 = vmatmul.mubr.f32.gmra.mrb[0].mxu0 %v254
      %v330 = vpop.f32.mrb[0].mxu0
      %v331 = vadd.f32 0.0, %v330
      %v332 = vpop.f32.mrb[0].mxu0
      %333 = vmatprep.mubr.f32.mxu0 0.0
      %334 = vmatmul.mubr.f32.gmra.mrb[0].mxu0 %v257
      %v335 = vpop.f32.mrb[0].mxu0
      %v336 = vadd.f32 0.0, %v335
      %v337 = vpop.f32.mrb[0].mxu0
      %338 = vdwg.mxu0
      %v339 = vadd.f32 %v229, %v326
      %v340 = vadd.f32 %v234, %v331
      %v341 = vadd.f32 %v239, %v336
      %v342 = vld [vmem:[#allocation2 + $0x3] sm:$0xff]
      %v343 = vld [vmem:[#allocation2 + $0xb] sm:$0xff]
      %v344 = vld [vmem:[#allocation2 + $0x13] sm:$0x1]
      %s345 = scalar_lea.vmem %s1, 96
      %v346 = vld [vmem:[%s345] sm:$0xff]
      %v347 = vld [vmem:[%s345 + $0x8] sm:$0xff]
      %v348 = vld [vmem:[%s345 + $0x10] sm:$0xff]
      %v349 = vld [vmem:[%s345 + $0x18] sm:$0xff]
      %v351 = vsel %vm30, %v342, 0
      %v354 = vsel %vm30, %v343, 0
      %v357 = vsel %vm30, %v344, 0
      %359 = vmatprep.subr.mxu0 0.0
      %360 = vmatpush1.msra.mxu0 %v346
      %361 = vmatprep.subr.mxu0 0.0
      %362 = vmatpush1.msra.mxu0 %v347
      %363 = vmatprep.subr.mxu0 0.0
      %364 = vmatpush1.msra.mxu0 %v348
      %365 = vmatprep.subr.mxu0 0.0
      %366 = vmatpush1.msra.mxu0 %v349
      %367 = vmatprep.subr.mxu0 0.0
      %368 = vmatpush1.msra.mxu0 0.0
      %369 = vmatprep.subr.mxu0 0.0
      %370 = vmatpush1.msra.mxu0 0.0
      %371 = vmatprep.subr.mxu0 0.0
      %372 = vmatpush1.msra.mxu0 0.0
      %373 = vmatprep.subr.mxu0 0.0
      %374 = vmatpush1.msra.mxu0 0.0
      %375 = vmatprep.subr.mxu0 0.0
      %376 = vmatpush1.msra.mxu0 0.0
      %377 = vmatprep.subr.mxu0 0.0
      %378 = vmatpush1.msra.mxu0 0.0
      %379 = vmatprep.subr.mxu0 0.0
      %380 = vmatpush1.msra.mxu0 0.0
      %381 = vmatprep.subr.mxu0 0.0
      %382 = vmatpush1.msra.mxu0 0.0
      %383 = vmatprep.subr.mxu0 0.0
      %384 = vmatpush1.msra.mxu0 0.0
      %385 = vmatprep.subr.mxu0 0.0
      %386 = vmatpush1.msra.mxu0 0.0
      %387 = vmatprep.subr.mxu0 0.0
      %388 = vmatpush1.msra.mxu0 0.0
      %389 = vmatprep.subr.mxu0 0.0
      %390 = vmatpush1.msra.mxu0 0.0
      %391 = vmatprep.subr.mxu0 0.0
      %392 = vmatpush1.msra.mxu0 0.0
      %393 = vmatprep.subr.mxu0 0.0
      %394 = vmatpush1.msra.mxu0 0.0
      %395 = vmatprep.subr.mxu0 0.0
      %396 = vmatpush1.msra.mxu0 0.0
      %397 = vmatprep.subr.mxu0 0.0
      %398 = vmatpush1.msra.mxu0 0.0
      %399 = vmatprep.subr.mxu0 0.0
      %400 = vmatpush1.msra.mxu0 0.0
      %401 = vmatprep.subr.mxu0 0.0
      %402 = vmatpush1.msra.mxu0 0.0
      %403 = vmatprep.subr.mxu0 0.0
      %404 = vmatpush1.msra.mxu0 0.0
      %405 = vmatprep.subr.mxu0 0.0
      %406 = vmatpush1.msra.mxu0 0.0
      %407 = vmatprep.subr.mxu0 0.0
      %408 = vmatpush1.msra.mxu0 0.0
      %409 = vmatprep.subr.mxu0 0.0
      %410 = vmatpush1.msra.mxu0 0.0
      %411 = vmatprep.subr.mxu0 0.0
      %412 = vmatpush1.msra.mxu0 0.0
      %413 = vmatprep.subr.mxu0 0.0
      %414 = vmatpush1.msra.mxu0 0.0
      %415 = vmatprep.subr.mxu0 0.0
      %416 = vmatpush1.msra.mxu0 0.0
      %417 = vmatprep.subr.mxu0 0.0
      %418 = vmatpush1.msra.mxu0 0.0
      %419 = vmatprep.subr.mxu0 0.0
      %420 = vmatpush1.msra.mxu0 0.0
      %421 = vmatprep.subr.mxu0 0.0
      %422 = vmatpush1.msra.mxu0 0.0
      %423 = vmatprep.mubr.f32.mxu0 0.0
      %424 = vmatmul.mubr.f32.gmra.mrb[0].mxu0 %v351
      %v425 = vpop.f32.mrb[0].mxu0
      %v426 = vadd.f32 0.0, %v425
      %v427 = vpop.f32.mrb[0].mxu0
      %428 = vmatprep.mubr.f32.mxu0 0.0
      %429 = vmatmul.mubr.f32.gmra.mrb[0].mxu0 %v354
      %v430 = vpop.f32.mrb[0].mxu0
      %v431 = vadd.f32 0.0, %v430
      %v432 = vpop.f32.mrb[0].mxu0
      %433 = vmatprep.mubr.f32.mxu0 0.0
      %434 = vmatmul.mubr.f32.gmra.mrb[0].mxu0 %v357
      %v435 = vpop.f32.mrb[0].mxu0
      %v436 = vadd.f32 0.0, %v435
      %v437 = vpop.f32.mrb[0].mxu0
      %438 = vdwg.mxu0
      %v439 = vadd.f32 %v339, %v426
      %v440 = vadd.f32 %v340, %v431
      %v441 = vadd.f32 %v341, %v436
      %v442 = vld [vmem:[#allocation2 + $0x4] sm:$0xff]
      %v443 = vld [vmem:[#allocation2 + $0xc] sm:$0xff]
      %v444 = vld [vmem:[#allocation2 + $0x14] sm:$0x1]
      %s445 = scalar_lea.vmem %s1, 128
      %v446 = vld [vmem:[%s445] sm:$0xff]
      %v447 = vld [vmem:[%s445 + $0x8] sm:$0xff]
      %v448 = vld [vmem:[%s445 + $0x10] sm:$0xff]
      %v449 = vld [vmem:[%s445 + $0x18] sm:$0xff]
      %v451 = vsel %vm30, %v442, 0
      %v454 = vsel %vm30, %v443, 0
      %v457 = vsel %vm30, %v444, 0
      %459 = vmatprep.subr.mxu0 0.0
      %460 = vmatpush1.msra.mxu0 %v446
      %461 = vmatprep.subr.mxu0 0.0
      %462 = vmatpush1.msra.mxu0 %v447
      %463 = vmatprep.subr.mxu0 0.0
      %464 = vmatpush1.msra.mxu0 %v448
      %465 = vmatprep.subr.mxu0 0.0
      %466 = vmatpush1.msra.mxu0 %v449
      %467 = vmatprep.subr.mxu0 0.0
      %468 = vmatpush1.msra.mxu0 0.0
      %469 = vmatprep.subr.mxu0 0.0
      %470 = vmatpush1.msra.mxu0 0.0
      %471 = vmatprep.subr.mxu0 0.0
      %472 = vmatpush1.msra.mxu0 0.0
      %473 = vmatprep.subr.mxu0 0.0
      %474 = vmatpush1.msra.mxu0 0.0
      %475 = vmatprep.subr.mxu0 0.0
      %476 = vmatpush1.msra.mxu0 0.0
      %477 = vmatprep.subr.mxu0 0.0
      %478 = vmatpush1.msra.mxu0 0.0
      %479 = vmatprep.subr.mxu0 0.0
      %480 = vmatpush1.msra.mxu0 0.0
      %481 = vmatprep.subr.mxu0 0.0
      %482 = vmatpush1.msra.mxu0 0.0
      %483 = vmatprep.subr.mxu0 0.0
      %484 = vmatpush1.msra.mxu0 0.0
      %485 = vmatprep.subr.mxu0 0.0
      %486 = vmatpush1.msra.mxu0 0.0
      %487 = vmatprep.subr.mxu0 0.0
      %488 = vmatpush1.msra.mxu0 0.0
      %489 = vmatprep.subr.mxu0 0.0
      %490 = vmatpush1.msra.mxu0 0.0
      %491 = vmatprep.subr.mxu0 0.0
      %492 = vmatpush1.msra.mxu0 0.0
      %493 = vmatprep.subr.mxu0 0.0
      %494 = vmatpush1.msra.mxu0 0.0
      %495 = vmatprep.subr.mxu0 0.0
      %496 = vmatpush1.msra.mxu0 0.0
      %497 = vmatprep.subr.mxu0 0.0
      %498 = vmatpush1.msra.mxu0 0.0
      %499 = vmatprep.subr.mxu0 0.0
      %500 = vmatpush1.msra.mxu0 0.0
      %501 = vmatprep.subr.mxu0 0.0
      %502 = vmatpush1.msra.mxu0 0.0
      %503 = vmatprep.subr.mxu0 0.0
      %504 = vmatpush1.msra.mxu0 0.0
      %505 = vmatprep.subr.mxu0 0.0
      %506 = vmatpush1.msra.mxu0 0.0
      %507 = vmatprep.subr.mxu0 0.0
      %508 = vmatpush1.msra.mxu0 0.0
      %509 = vmatprep.subr.mxu0 0.0
      %510 = vmatpush1.msra.mxu0 0.0
      %511 = vmatprep.subr.mxu0 0.0
      %512 = vmatpush1.msra.mxu0 0.0
      %513 = vmatprep.subr.mxu0 0.0
      %514 = vmatpush1.msra.mxu0 0.0
      %515 = vmatprep.subr.mxu0 0.0
      %516 = vmatpush1.msra.mxu0 0.0
      %517 = vmatprep.subr.mxu0 0.0
      %518 = vmatpush1.msra.mxu0 0.0
      %519 = vmatprep.subr.mxu0 0.0
      %520 = vmatpush1.msra.mxu0 0.0
      %521 = vmatprep.subr.mxu0 0.0
      %522 = vmatpush1.msra.mxu0 0.0
      %523 = vmatprep.mubr.f32.mxu0 0.0
      %524 = vmatmul.mubr.f32.gmra.mrb[0].mxu0 %v451
      %v525 = vpop.f32.mrb[0].mxu0
      %v526 = vadd.f32 0.0, %v525
      %v527 = vpop.f32.mrb[0].mxu0
      %528 = vmatprep.mubr.f32.mxu0 0.0
      %529 = vmatmul.mubr.f32.gmra.mrb[0].mxu0 %v454
      %v530 = vpop.f32.mrb[0].mxu0
      %v531 = vadd.f32 0.0, %v530
      %v532 = vpop.f32.mrb[0].mxu0
      %533 = vmatprep.mubr.f32.mxu0 0.0
      %534 = vmatmul.mubr.f32.gmra.mrb[0].mxu0 %v457
      %v535 = vpop.f32.mrb[0].mxu0
      %v536 = vadd.f32 0.0, %v535
      %v537 = vpop.f32.mrb[0].mxu0
      %538 = vdwg.mxu0
      %v539 = vadd.f32 %v439, %v526
      %v540 = vadd.f32 %v440, %v531
      %v541 = vadd.f32 %v441, %v536
      %v542 = vld [vmem:[#allocation2 + $0x5] sm:$0xff]
      %v543 = vld [vmem:[#allocation2 + $0xd] sm:$0xff]
      %v544 = vld [vmem:[#allocation2 + $0x15] sm:$0x1]
      %s545 = scalar_lea.vmem %s1, 160
      %v546 = vld [vmem:[%s545] sm:$0xff]
      %v547 = vld [vmem:[%s545 + $0x8] sm:$0xff]
      %v548 = vld [vmem:[%s545 + $0x10] sm:$0xff]
      %v549 = vld [vmem:[%s545 + $0x18] sm:$0xff]
      %v551 = vsel %vm30, %v542, 0
      %v554 = vsel %vm30, %v543, 0
      %v557 = vsel %vm30, %v544, 0
      %559 = vmatprep.subr.mxu0 0.0
      %560 = vmatpush1.msra.mxu0 %v546
      %561 = vmatprep.subr.mxu0 0.0
      %562 = vmatpush1.msra.mxu0 %v547
      %563 = vmatprep.subr.mxu0 0.0
      %564 = vmatpush1.msra.mxu0 %v548
      %565 = vmatprep.subr.mxu0 0.0
      %566 = vmatpush1.msra.mxu0 %v549
      %567 = vmatprep.subr.mxu0 0.0
      %568 = vmatpush1.msra.mxu0 0.0
      %569 = vmatprep.subr.mxu0 0.0
      %570 = vmatpush1.msra.mxu0 0.0
      %571 = vmatprep.subr.mxu0 0.0
      %572 = vmatpush1.msra.mxu0 0.0
      %573 = vmatprep.subr.mxu0 0.0
      %574 = vmatpush1.msra.mxu0 0.0
      %575 = vmatprep.subr.mxu0 0.0
      %576 = vmatpush1.msra.mxu0 0.0
      %577 = vmatprep.subr.mxu0 0.0
      %578 = vmatpush1.msra.mxu0 0.0
      %579 = vmatprep.subr.mxu0 0.0
      %580 = vmatpush1.msra.mxu0 0.0
      %581 = vmatprep.subr.mxu0 0.0
      %582 = vmatpush1.msra.mxu0 0.0
      %583 = vmatprep.subr.mxu0 0.0
      %584 = vmatpush1.msra.mxu0 0.0
      %585 = vmatprep.subr.mxu0 0.0
      %586 = vmatpush1.msra.mxu0 0.0
      %587 = vmatprep.subr.mxu0 0.0
      %588 = vmatpush1.msra.mxu0 0.0
      %589 = vmatprep.subr.mxu0 0.0
      %590 = vmatpush1.msra.mxu0 0.0
      %591 = vmatprep.subr.mxu0 0.0
      %592 = vmatpush1.msra.mxu0 0.0
      %593 = vmatprep.subr.mxu0 0.0
      %594 = vmatpush1.msra.mxu0 0.0
      %595 = vmatprep.subr.mxu0 0.0
      %596 = vmatpush1.msra.mxu0 0.0
      %597 = vmatprep.subr.mxu0 0.0
      %598 = vmatpush1.msra.mxu0 0.0
      %599 = vmatprep.subr.mxu0 0.0
      %600 = vmatpush1.msra.mxu0 0.0
      %601 = vmatprep.subr.mxu0 0.0
      %602 = vmatpush1.msra.mxu0 0.0
      %603 = vmatprep.subr.mxu0 0.0
      %604 = vmatpush1.msra.mxu0 0.0
      %605 = vmatprep.subr.mxu0 0.0
      %606 = vmatpush1.msra.mxu0 0.0
      %607 = vmatprep.subr.mxu0 0.0
      %608 = vmatpush1.msra.mxu0 0.0
      %609 = vmatprep.subr.mxu0 0.0
      %610 = vmatpush1.msra.mxu0 0.0
      %611 = vmatprep.subr.mxu0 0.0
      %612 = vmatpush1.msra.mxu0 0.0
      %613 = vmatprep.subr.mxu0 0.0
      %614 = vmatpush1.msra.mxu0 0.0
      %615 = vmatprep.subr.mxu0 0.0
      %616 = vmatpush1.msra.mxu0 0.0
      %617 = vmatprep.subr.mxu0 0.0
      %618 = vmatpush1.msra.mxu0 0.0
      %619 = vmatprep.subr.mxu0 0.0
      %620 = vmatpush1.msra.mxu0 0.0
      %621 = vmatprep.subr.mxu0 0.0
      %622 = vmatpush1.msra.mxu0 0.0
      %623 = vmatprep.mubr.f32.mxu0 0.0
      %624 = vmatmul.mubr.f32.gmra.mrb[0].mxu0 %v551
      %v625 = vpop.f32.mrb[0].mxu0
      %v626 = vadd.f32 0.0, %v625
      %v627 = vpop.f32.mrb[0].mxu0
      %628 = vmatprep.mubr.f32.mxu0 0.0
      %629 = vmatmul.mubr.f32.gmra.mrb[0].mxu0 %v554
      %v630 = vpop.f32.mrb[0].mxu0
      %v631 = vadd.f32 0.0, %v630
      %v632 = vpop.f32.mrb[0].mxu0
      %633 = vmatprep.mubr.f32.mxu0 0.0
      %634 = vmatmul.mubr.f32.gmra.mrb[0].mxu0 %v557
      %v635 = vpop.f32.mrb[0].mxu0
      %v636 = vadd.f32 0.0, %v635
      %v637 = vpop.f32.mrb[0].mxu0
      %638 = vdwg.mxu0
      %v639 = vadd.f32 %v539, %v626
      %v640 = vadd.f32 %v540, %v631
      %v641 = vadd.f32 %v541, %v636
      %v642 = vld [vmem:[#allocation2 + $0x6] sm:$0xff]
      %v643 = vld [vmem:[#allocation2 + $0xe] sm:$0xff]
      %v644 = vld [vmem:[#allocation2 + $0x16] sm:$0x1]
      %s645 = scalar_lea.vmem %s1, 192
      %v646 = vld [vmem:[%s645] sm:$0xff]
      %v647 = vld [vmem:[%s645 + $0x8] sm:$0xff]
      %v648 = vld [vmem:[%s645 + $0x10] sm:$0xff]
      %v649 = vld [vmem:[%s645 + $0x18] sm:$0xff]
      %v651 = vsel %vm30, %v642, 0
      %v654 = vsel %vm30, %v643, 0
      %v657 = vsel %vm30, %v644, 0
      %659 = vmatprep.subr.mxu0 0.0
      %660 = vmatpush1.msra.mxu0 %v646
      %661 = vmatprep.subr.mxu0 0.0
      %662 = vmatpush1.msra.mxu0 %v647
      %663 = vmatprep.subr.mxu0 0.0
      %664 = vmatpush1.msra.mxu0 %v648
      %665 = vmatprep.subr.mxu0 0.0
      %666 = vmatpush1.msra.mxu0 %v649
      %667 = vmatprep.subr.mxu0 0.0
      %668 = vmatpush1.msra.mxu0 0.0
      %669 = vmatprep.subr.mxu0 0.0
      %670 = vmatpush1.msra.mxu0 0.0
      %671 = vmatprep.subr.mxu0 0.0
      %672 = vmatpush1.msra.mxu0 0.0
      %673 = vmatprep.subr.mxu0 0.0
      %674 = vmatpush1.msra.mxu0 0.0
      %675 = vmatprep.subr.mxu0 0.0
      %676 = vmatpush1.msra.mxu0 0.0
      %677 = vmatprep.subr.mxu0 0.0
      %678 = vmatpush1.msra.mxu0 0.0
      %679 = vmatprep.subr.mxu0 0.0
      %680 = vmatpush1.msra.mxu0 0.0
      %681 = vmatprep.subr.mxu0 0.0
      %682 = vmatpush1.msra.mxu0 0.0
      %683 = vmatprep.subr.mxu0 0.0
      %684 = vmatpush1.msra.mxu0 0.0
      %685 = vmatprep.subr.mxu0 0.0
      %686 = vmatpush1.msra.mxu0 0.0
      %687 = vmatprep.subr.mxu0 0.0
      %688 = vmatpush1.msra.mxu0 0.0
      %689 = vmatprep.subr.mxu0 0.0
      %690 = vmatpush1.msra.mxu0 0.0
      %691 = vmatprep.subr.mxu0 0.0
      %692 = vmatpush1.msra.mxu0 0.0
      %693 = vmatprep.subr.mxu0 0.0
      %694 = vmatpush1.msra.mxu0 0.0
      %695 = vmatprep.subr.mxu0 0.0
      %696 = vmatpush1.msra.mxu0 0.0
      %697 = vmatprep.subr.mxu0 0.0
      %698 = vmatpush1.msra.mxu0 0.0
      %699 = vmatprep.subr.mxu0 0.0
      %700 = vmatpush1.msra.mxu0 0.0
      %701 = vmatprep.subr.mxu0 0.0
      %702 = vmatpush1.msra.mxu0 0.0
      %703 = vmatprep.subr.mxu0 0.0
      %704 = vmatpush1.msra.mxu0 0.0
      %705 = vmatprep.subr.mxu0 0.0
      %706 = vmatpush1.msra.mxu0 0.0
      %707 = vmatprep.subr.mxu0 0.0
      %708 = vmatpush1.msra.mxu0 0.0
      %709 = vmatprep.subr.mxu0 0.0
      %710 = vmatpush1.msra.mxu0 0.0
      %711 = vmatprep.subr.mxu0 0.0
      %712 = vmatpush1.msra.mxu0 0.0
      %713 = vmatprep.subr.mxu0 0.0
      %714 = vmatpush1.msra.mxu0 0.0
      %715 = vmatprep.subr.mxu0 0.0
      %716 = vmatpush1.msra.mxu0 0.0
      %717 = vmatprep.subr.mxu0 0.0
      %718 = vmatpush1.msra.mxu0 0.0
      %719 = vmatprep.subr.mxu0 0.0
      %720 = vmatpush1.msra.mxu0 0.0
      %721 = vmatprep.subr.mxu0 0.0
      %722 = vmatpush1.msra.mxu0 0.0
      %723 = vmatprep.mubr.f32.mxu0 0.0
      %724 = vmatmul.mubr.f32.gmra.mrb[0].mxu0 %v651
      %v725 = vpop.f32.mrb[0].mxu0
      %v726 = vadd.f32 0.0, %v725
      %v727 = vpop.f32.mrb[0].mxu0
      %728 = vmatprep.mubr.f32.mxu0 0.0
      %729 = vmatmul.mubr.f32.gmra.mrb[0].mxu0 %v654
      %v730 = vpop.f32.mrb[0].mxu0
      %v731 = vadd.f32 0.0, %v730
      %v732 = vpop.f32.mrb[0].mxu0
      %733 = vmatprep.mubr.f32.mxu0 0.0
      %734 = vmatmul.mubr.f32.gmra.mrb[0].mxu0 %v657
      %v735 = vpop.f32.mrb[0].mxu0
      %v736 = vadd.f32 0.0, %v735
      %v737 = vpop.f32.mrb[0].mxu0
      %738 = vdwg.mxu0
      %v739 = vadd.f32 %v639, %v726
      %v740 = vadd.f32 %v640, %v731
      %v741 = vadd.f32 %v641, %v736
      %v742 = vld [vmem:[#allocation2 + $0x7] sm:$0xff]
      %v743 = vld [vmem:[#allocation2 + $0xf] sm:$0xff]
      %v744 = vld [vmem:[#allocation2 + $0x17] sm:$0x1]
      %s745 = scalar_lea.vmem %s1, 224
      %v746 = vld [vmem:[%s745] sm:$0xff]
      %v747 = vld [vmem:[%s745 + $0x8] sm:$0xff]
      %v748 = vld [vmem:[%s745 + $0x10] sm:$0xff]
      %v749 = vld [vmem:[%s745 + $0x18] sm:$0xff]
      %v751 = vsel %vm30, %v742, 0
      %v754 = vsel %vm30, %v743, 0
      %v757 = vsel %vm30, %v744, 0
      %759 = vmatprep.subr.mxu0 0.0
      %760 = vmatpush1.msra.mxu0 %v746
      %761 = vmatprep.subr.mxu0 0.0
      %762 = vmatpush1.msra.mxu0 %v747
      %763 = vmatprep.subr.mxu0 0.0
      %764 = vmatpush1.msra.mxu0 %v748
      %765 = vmatprep.subr.mxu0 0.0
      %766 = vmatpush1.msra.mxu0 %v749
      %767 = vmatprep.subr.mxu0 0.0
      %768 = vmatpush1.msra.mxu0 0.0
      %769 = vmatprep.subr.mxu0 0.0
      %770 = vmatpush1.msra.mxu0 0.0
      %771 = vmatprep.subr.mxu0 0.0
      %772 = vmatpush1.msra.mxu0 0.0
      %773 = vmatprep.subr.mxu0 0.0
      %774 = vmatpush1.msra.mxu0 0.0
      %775 = vmatprep.subr.mxu0 0.0
      %776 = vmatpush1.msra.mxu0 0.0
      %777 = vmatprep.subr.mxu0 0.0
      %778 = vmatpush1.msra.mxu0 0.0
      %779 = vmatprep.subr.mxu0 0.0
      %780 = vmatpush1.msra.mxu0 0.0
      %781 = vmatprep.subr.mxu0 0.0
      %782 = vmatpush1.msra.mxu0 0.0
      %783 = vmatprep.subr.mxu0 0.0
      %784 = vmatpush1.msra.mxu0 0.0
      %785 = vmatprep.subr.mxu0 0.0
      %786 = vmatpush1.msra.mxu0 0.0
      %787 = vmatprep.subr.mxu0 0.0
      %788 = vmatpush1.msra.mxu0 0.0
      %789 = vmatprep.subr.mxu0 0.0
      %790 = vmatpush1.msra.mxu0 0.0
      %791 = vmatprep.subr.mxu0 0.0
      %792 = vmatpush1.msra.mxu0 0.0
      %793 = vmatprep.subr.mxu0 0.0
      %794 = vmatpush1.msra.mxu0 0.0
      %795 = vmatprep.subr.mxu0 0.0
      %796 = vmatpush1.msra.mxu0 0.0
      %797 = vmatprep.subr.mxu0 0.0
      %798 = vmatpush1.msra.mxu0 0.0
      %799 = vmatprep.subr.mxu0 0.0
      %800 = vmatpush1.msra.mxu0 0.0
      %801 = vmatprep.subr.mxu0 0.0
      %802 = vmatpush1.msra.mxu0 0.0
      %803 = vmatprep.subr.mxu0 0.0
      %804 = vmatpush1.msra.mxu0 0.0
      %805 = vmatprep.subr.mxu0 0.0
      %806 = vmatpush1.msra.mxu0 0.0
      %807 = vmatprep.subr.mxu0 0.0
      %808 = vmatpush1.msra.mxu0 0.0
      %809 = vmatprep.subr.mxu0 0.0
      %810 = vmatpush1.msra.mxu0 0.0
      %811 = vmatprep.subr.mxu0 0.0
      %812 = vmatpush1.msra.mxu0 0.0
      %813 = vmatprep.subr.mxu0 0.0
      %814 = vmatpush1.msra.mxu0 0.0
      %815 = vmatprep.subr.mxu0 0.0
      %816 = vmatpush1.msra.mxu0 0.0
      %817 = vmatprep.subr.mxu0 0.0
      %818 = vmatpush1.msra.mxu0 0.0
      %819 = vmatprep.subr.mxu0 0.0
      %820 = vmatpush1.msra.mxu0 0.0
      %821 = vmatprep.subr.mxu0 0.0
      %822 = vmatpush1.msra.mxu0 0.0
      %823 = vmatprep.mubr.f32.mxu0 0.0
      %824 = vmatmul.mubr.f32.gmra.mrb[0].mxu0 %v751
      %v825 = vpop.f32.mrb[0].mxu0
      %v826 = vadd.f32 0.0, %v825
      %v827 = vpop.f32.mrb[0].mxu0
      %828 = vmatprep.mubr.f32.mxu0 0.0
      %829 = vmatmul.mubr.f32.gmra.mrb[0].mxu0 %v754
      %v830 = vpop.f32.mrb[0].mxu0
      %v831 = vadd.f32 0.0, %v830
      %v832 = vpop.f32.mrb[0].mxu0
      %833 = vmatprep.mubr.f32.mxu0 0.0
      %834 = vmatmul.mubr.f32.gmra.mrb[0].mxu0 %v757
      %v835 = vpop.f32.mrb[0].mxu0
      %v836 = vadd.f32 0.0, %v835
      %v837 = vpop.f32.mrb[0].mxu0
      %838 = vdwg.mxu0
      %v839 = vadd.f32 %v739, %v826
      %v840 = vadd.f32 %v740, %v831
      %v841 = vadd.f32 %v741, %v836
      %v842 = vld [vmem:[#allocation2 + $0x8] sm:$0xff]
      %v843 = vld [vmem:[#allocation2 + $0x10] sm:$0xff]
      %v844 = vld [vmem:[#allocation2 + $0x18] sm:$0x1]
      %s845 = scalar_lea.vmem %s1, 256
      %v846 = vld [vmem:[%s845] sm:$0xff]
      %v847 = vld [vmem:[%s845 + $0x8] sm:$0xff]
      %v848 = vld [vmem:[%s845 + $0x10] sm:$0xff]
      %v849 = vld [vmem:[%s845 + $0x18] sm:$0xff]
      %v851 = vsel %vm30, %v842, 0
      %v854 = vsel %vm30, %v843, 0
      %v857 = vsel %vm30, %v844, 0
      %859 = vmatprep.subr.mxu0 0.0
      %860 = vmatpush1.msra.mxu0 %v846
      %861 = vmatprep.subr.mxu0 0.0
      %862 = vmatpush1.msra.mxu0 %v847
      %863 = vmatprep.subr.mxu0 0.0
      %864 = vmatpush1.msra.mxu0 %v848
      %865 = vmatprep.subr.mxu0 0.0
      %866 = vmatpush1.msra.mxu0 %v849
      %867 = vmatprep.subr.mxu0 0.0
      %868 = vmatpush1.msra.mxu0 0.0
      %869 = vmatprep.subr.mxu0 0.0
      %870 = vmatpush1.msra.mxu0 0.0
      %871 = vmatprep.subr.mxu0 0.0
      %872 = vmatpush1.msra.mxu0 0.0
      %873 = vmatprep.subr.mxu0 0.0
      %874 = vmatpush1.msra.mxu0 0.0
      %875 = vmatprep.subr.mxu0 0.0
      %876 = vmatpush1.msra.mxu0 0.0
      %877 = vmatprep.subr.mxu0 0.0
      %878 = vmatpush1.msra.mxu0 0.0
      %879 = vmatprep.subr.mxu0 0.0
      %880 = vmatpush1.msra.mxu0 0.0
      %881 = vmatprep.subr.mxu0 0.0
      %882 = vmatpush1.msra.mxu0 0.0
      %883 = vmatprep.subr.mxu0 0.0
      %884 = vmatpush1.msra.mxu0 0.0
      %885 = vmatprep.subr.mxu0 0.0
      %886 = vmatpush1.msra.mxu0 0.0
      %887 = vmatprep.subr.mxu0 0.0
      %888 = vmatpush1.msra.mxu0 0.0
      %889 = vmatprep.subr.mxu0 0.0
      %890 = vmatpush1.msra.mxu0 0.0
      %891 = vmatprep.subr.mxu0 0.0
      %892 = vmatpush1.msra.mxu0 0.0
      %893 = vmatprep.subr.mxu0 0.0
      %894 = vmatpush1.msra.mxu0 0.0
      %895 = vmatprep.subr.mxu0 0.0
      %896 = vmatpush1.msra.mxu0 0.0
      %897 = vmatprep.subr.mxu0 0.0
      %898 = vmatpush1.msra.mxu0 0.0
      %899 = vmatprep.subr.mxu0 0.0
      %900 = vmatpush1.msra.mxu0 0.0
      %901 = vmatprep.subr.mxu0 0.0
      %902 = vmatpush1.msra.mxu0 0.0
      %903 = vmatprep.subr.mxu0 0.0
      %904 = vmatpush1.msra.mxu0 0.0
      %905 = vmatprep.subr.mxu0 0.0
      %906 = vmatpush1.msra.mxu0 0.0
      %907 = vmatprep.subr.mxu0 0.0
      %908 = vmatpush1.msra.mxu0 0.0
      %909 = vmatprep.subr.mxu0 0.0
      %910 = vmatpush1.msra.mxu0 0.0
      %911 = vmatprep.subr.mxu0 0.0
      %912 = vmatpush1.msra.mxu0 0.0
      %913 = vmatprep.subr.mxu0 0.0
      %914 = vmatpush1.msra.mxu0 0.0
      %915 = vmatprep.subr.mxu0 0.0
      %916 = vmatpush1.msra.mxu0 0.0
      %917 = vmatprep.subr.mxu0 0.0
      %918 = vmatpush1.msra.mxu0 0.0
      %919 = vmatprep.subr.mxu0 0.0
      %920 = vmatpush1.msra.mxu0 0.0
      %921 = vmatprep.subr.mxu0 0.0
      %922 = vmatpush1.msra.mxu0 0.0
      %923 = vmatprep.mubr.f32.mxu0 0.0
      %924 = vmatmul.mubr.f32.gmra.mrb[0].mxu0 %v851
      %v925 = vpop.f32.mrb[0].mxu0
      %v926 = vadd.f32 0.0, %v925
      %v927 = vpop.f32.mrb[0].mxu0
      %928 = vmatprep.mubr.f32.mxu0 0.0
      %929 = vmatmul.mubr.f32.gmra.mrb[0].mxu0 %v854
      %v930 = vpop.f32.mrb[0].mxu0
      %v931 = vadd.f32 0.0, %v930
      %v932 = vpop.f32.mrb[0].mxu0
      %933 = vmatprep.mubr.f32.mxu0 0.0
      %934 = vmatmul.mubr.f32.gmra.mrb[0].mxu0 %v857
      %v935 = vpop.f32.mrb[0].mxu0
      %v936 = vadd.f32 0.0, %v935
      %v937 = vpop.f32.mrb[0].mxu0
      %938 = vdwg.mxu0
      %v939 = vadd.f32 %v839, %v926
      %v940 = vadd.f32 %v840, %v931
      %v941 = vadd.f32 %v841, %v936
      %v942 = vld [vmem:[#allocation2 + $0x9] sm:$0xff]
      %v943 = vld [vmem:[#allocation2 + $0x11] sm:$0xff]
      %v944 = vld [vmem:[#allocation2 + $0x19] sm:$0x1]
      %s945 = scalar_lea.vmem %s1, 288
      %v946 = vld [vmem:[%s945] sm:$0xff]
      %v947 = vld [vmem:[%s945 + $0x8] sm:$0xff]
      %v948 = vld [vmem:[%s945 + $0x10] sm:$0xff]
      %v949 = vld [vmem:[%s945 + $0x18] sm:$0xff]
      %v951 = vsel %vm30, %v942, 0
      %v954 = vsel %vm30, %v943, 0
      %v957 = vsel %vm30, %v944, 0
      %959 = vmatprep.subr.mxu0 0.0
      %960 = vmatpush1.msra.mxu0 %v946
      %961 = vmatprep.subr.mxu0 0.0
      %962 = vmatpush1.msra.mxu0 %v947
      %963 = vmatprep.subr.mxu0 0.0
      %964 = vmatpush1.msra.mxu0 %v948
      %965 = vmatprep.subr.mxu0 0.0
      %966 = vmatpush1.msra.mxu0 %v949
      %967 = vmatprep.subr.mxu0 0.0
      %968 = vmatpush1.msra.mxu0 0.0
      %969 = vmatprep.subr.mxu0 0.0
      %970 = vmatpush1.msra.mxu0 0.0
      %971 = vmatprep.subr.mxu0 0.0
      %972 = vmatpush1.msra.mxu0 0.0
      %973 = vmatprep.subr.mxu0 0.0
      %974 = vmatpush1.msra.mxu0 0.0
      %975 = vmatprep.subr.mxu0 0.0
      %976 = vmatpush1.msra.mxu0 0.0
      %977 = vmatprep.subr.mxu0 0.0
      %978 = vmatpush1.msra.mxu0 0.0
      %979 = vmatprep.subr.mxu0 0.0
      %980 = vmatpush1.msra.mxu0 0.0
      %981 = vmatprep.subr.mxu0 0.0
      %982 = vmatpush1.msra.mxu0 0.0
      %983 = vmatprep.subr.mxu0 0.0
      %984 = vmatpush1.msra.mxu0 0.0
      %985 = vmatprep.subr.mxu0 0.0
      %986 = vmatpush1.msra.mxu0 0.0
      %987 = vmatprep.subr.mxu0 0.0
      %988 = vmatpush1.msra.mxu0 0.0
      %989 = vmatprep.subr.mxu0 0.0
      %990 = vmatpush1.msra.mxu0 0.0
      %991 = vmatprep.subr.mxu0 0.0
      %992 = vmatpush1.msra.mxu0 0.0
      %993 = vmatprep.subr.mxu0 0.0
      %994 = vmatpush1.msra.mxu0 0.0
      %995 = vmatprep.subr.mxu0 0.0
      %996 = vmatpush1.msra.mxu0 0.0
      %997 = vmatprep.subr.mxu0 0.0
      %998 = vmatpush1.msra.mxu0 0.0
      %999 = vmatprep.subr.mxu0 0.0
      %1000 = vmatpush1.msra.mxu0 0.0
      %1001 = vmatprep.subr.mxu0 0.0
      %1002 = vmatpush1.msra.mxu0 0.0
      %1003 = vmatprep.subr.mxu0 0.0
      %1004 = vmatpush1.msra.mxu0 0.0
      %1005 = vmatprep.subr.mxu0 0.0
      %1006 = vmatpush1.msra.mxu0 0.0
      %1007 = vmatprep.subr.mxu0 0.0
      %1008 = vmatpush1.msra.mxu0 0.0
      %1009 = vmatprep.subr.mxu0 0.0
      %1010 = vmatpush1.msra.mxu0 0.0
      %1011 = vmatprep.subr.mxu0 0.0
      %1012 = vmatpush1.msra.mxu0 0.0
      %1013 = vmatprep.subr.mxu0 0.0
      %1014 = vmatpush1.msra.mxu0 0.0
      %1015 = vmatprep.subr.mxu0 0.0
      %1016 = vmatpush1.msra.mxu0 0.0
      %1017 = vmatprep.subr.mxu0 0.0
      %1018 = vmatpush1.msra.mxu0 0.0
      %1019 = vmatprep.subr.mxu0 0.0
      %1020 = vmatpush1.msra.mxu0 0.0
      %1021 = vmatprep.subr.mxu0 0.0
      %1022 = vmatpush1.msra.mxu0 0.0
      %1023 = vmatprep.mubr.f32.mxu0 0.0
      %1024 = vmatmul.mubr.f32.gmra.mrb[0].mxu0 %v951
      %v1025 = vpop.f32.mrb[0].mxu0
      %v1026 = vadd.f32 0.0, %v1025
      %v1027 = vpop.f32.mrb[0].mxu0
      %1028 = vmatprep.mubr.f32.mxu0 0.0
      %1029 = vmatmul.mubr.f32.gmra.mrb[0].mxu0 %v954
      %v1030 = vpop.f32.mrb[0].mxu0
      %v1031 = vadd.f32 0.0, %v1030
      %v1032 = vpop.f32.mrb[0].mxu0
      %1033 = vmatprep.mubr.f32.mxu0 0.0
      %1034 = vmatmul.mubr.f32.gmra.mrb[0].mxu0 %v957
      %v1035 = vpop.f32.mrb[0].mxu0
      %v1036 = vadd.f32 0.0, %v1035
      %v1037 = vpop.f32.mrb[0].mxu0
      %1038 = vdwg.mxu0
      %v1039 = vadd.f32 %v939, %v1026
      %v1040 = vadd.f32 %v940, %v1031
      %v1041 = vadd.f32 %v941, %v1036
      %v1043 = vlaneseq
      %v1044 = vshrl.u32 %v1043, 7
      %v1045 = vsub.s32 0, %v1044
      %v1046 = vrot.slane %v48, %v1045
      %v1048 = vadd.f32 %v1039, %v1046
      %v1049 = vadd.f32 %v1040, %v1046
      %v1050 = vadd.f32 %v1041, %v1046
      %v1051 = vtanh.pop %v1048
      %v1052 = vtanh.pop %v1049
      %v1053 = vtanh.pop %v1050
      %vm1054 = vcmask 523264
      %1055 = vst.msk [vmem:[#allocation3] sm:$0xff] %vm1054, %v1051
      %1056 = vst.msk [vmem:[#allocation3 + $0x8] sm:$0xff] %vm1054, %v1052
      %vm1057 = vcmask 516096
      %1058 = vst.msk [vmem:[#allocation3 + $0x10] sm:$0x1] %vm1057, %v1053
      %s1059 = scalar_lea.vmem [#allocation2], 32
      %v1060 = vld [vmem:[%s1059] sm:$0xff]
      %v1061 = vld [vmem:[%s1059 + $0x8] sm:$0xff]
      %v1062 = vld [vmem:[%s1059 + $0x10] sm:$0x1]
      %v1063 = vld [vmem:[%s1] sm:$0xff]
      %v1064 = vld [vmem:[%s1 + $0x8] sm:$0xff]
      %v1065 = vld [vmem:[%s1 + $0x10] sm:$0xff]
      %v1066 = vld [vmem:[%s1 + $0x18] sm:$0xff]
      %v1067 = vld [vmem:[%s1059 + $0x1] sm:$0xff]
      %v1068 = vld [vmem:[%s1059 + $0x9] sm:$0xff]
      %v1069 = vld [vmem:[%s1059 + $0x11] sm:$0x1]
      %v1070 = vld [vmem:[%s59] sm:$0xff]
      %v1071 = vld [vmem:[%s59 + $0x8] sm:$0xff]
      %v1072 = vld [vmem:[%s59 + $0x10] sm:$0xff]
      %v1073 = vld [vmem:[%s59 + $0x18] sm:$0xff]
      %v1075 = vsel %vm30, %v1067, 0
      %v1078 = vsel %vm30, %v1068, 0
      %v1081 = vsel %vm30, %v1069, 0
      %1083 = vmatprep.subr.mxu0 0.0
      %1084 = vmatpush1.msra.mxu0 %v1070
      %1085 = vmatprep.subr.mxu0 0.0
      %1086 = vmatpush1.msra.mxu0 %v1071
      %1087 = vmatprep.subr.mxu0 0.0
      %1088 = vmatpush1.msra.mxu0 %v1072
      %1089 = vmatprep.subr.mxu0 0.0
      %1090 = vmatpush1.msra.mxu0 %v1073
      %1091 = vmatprep.subr.mxu0 0.0
      %1092 = vmatpush1.msra.mxu0 0.0
      %1093 = vmatprep.subr.mxu0 0.0
      %1094 = vmatpush1.msra.mxu0 0.0
      %1095 = vmatprep.subr.mxu0 0.0
      %1096 = vmatpush1.msra.mxu0 0.0
      %1097 = vmatprep.subr.mxu0 0.0
      %1098 = vmatpush1.msra.mxu0 0.0
      %1099 = vmatprep.subr.mxu0 0.0
      %1100 = vmatpush1.msra.mxu0 0.0
      %1101 = vmatprep.subr.mxu0 0.0
      %1102 = vmatpush1.msra.mxu0 0.0
      %1103 = vmatprep.subr.mxu0 0.0
      %1104 = vmatpush1.msra.mxu0 0.0
      %1105 = vmatprep.subr.mxu0 0.0
      %1106 = vmatpush1.msra.mxu0 0.0
      %1107 = vmatprep.subr.mxu0 0.0
      %1108 = vmatpush1.msra.mxu0 0.0
      %1109 = vmatprep.subr.mxu0 0.0
      %1110 = vmatpush1.msra.mxu0 0.0
      %1111 = vmatprep.subr.mxu0 0.0
      %1112 = vmatpush1.msra.mxu0 0.0
      %1113 = vmatprep.subr.mxu0 0.0
      %1114 = vmatpush1.msra.mxu0 0.0
      %1115 = vmatprep.subr.mxu0 0.0
      %1116 = vmatpush1.msra.mxu0 0.0
      %1117 = vmatprep.subr.mxu0 0.0
      %1118 = vmatpush1.msra.mxu0 0.0
      %1119 = vmatprep.subr.mxu0 0.0
      %1120 = vmatpush1.msra.mxu0 0.0
      %1121 = vmatprep.subr.mxu0 0.0
      %1122 = vmatpush1.msra.mxu0 0.0
      %1123 = vmatprep.subr.mxu0 0.0
      %1124 = vmatpush1.msra.mxu0 0.0
      %1125 = vmatprep.subr.mxu0 0.0
      %1126 = vmatpush1.msra.mxu0 0.0
      %1127 = vmatprep.subr.mxu0 0.0
      %1128 = vmatpush1.msra.mxu0 0.0
      %1129 = vmatprep.subr.mxu0 0.0
      %1130 = vmatpush1.msra.mxu0 0.0
      %1131 = vmatprep.subr.mxu0 0.0
      %1132 = vmatpush1.msra.mxu0 0.0
      %1133 = vmatprep.subr.mxu0 0.0
      %1134 = vmatpush1.msra.mxu0 0.0
      %1135 = vmatprep.subr.mxu0 0.0
      %1136 = vmatpush1.msra.mxu0 0.0
      %1137 = vmatprep.subr.mxu0 0.0
      %1138 = vmatpush1.msra.mxu0 0.0
      %1139 = vmatprep.subr.mxu0 0.0
      %1140 = vmatpush1.msra.mxu0 0.0
      %1141 = vmatprep.subr.mxu0 0.0
      %1142 = vmatpush1.msra.mxu0 0.0
      %1143 = vmatprep.subr.mxu0 0.0
      %1144 = vmatpush1.msra.mxu0 0.0
      %1145 = vmatprep.subr.mxu0 0.0
      %1146 = vmatpush1.msra.mxu0 0.0
      %1147 = vmatprep.mubr.f32.mxu0 0.0
      %1148 = vmatmul.mubr.f32.gmra.mrb[0].mxu0 %v1075
      %v1149 = vpop.f32.mrb[0].mxu0
      %v1150 = vadd.f32 0.0, %v1149
      %v1151 = vpop.f32.mrb[0].mxu0
      %1152 = vmatprep.mubr.f32.mxu0 0.0
      %1153 = vmatmul.mubr.f32.gmra.mrb[0].mxu0 %v1078
      %v1154 = vpop.f32.mrb[0].mxu0
      %v1155 = vadd.f32 0.0, %v1154
      %v1156 = vpop.f32.mrb[0].mxu0
      %1157 = vmatprep.mubr.f32.mxu0 0.0
      %1158 = vmatmul.mubr.f32.gmra.mrb[0].mxu0 %v1081
      %v1159 = vpop.f32.mrb[0].mxu0
      %v1160 = vadd.f32 0.0, %v1159
      %v1161 = vpop.f32.mrb[0].mxu0
      %1162 = vdwg.mxu0
      %v1164 = vsel %vm30, %v1060, 0
      %v1167 = vsel %vm30, %v1061, 0
      %v1170 = vsel %vm30, %v1062, 0
      %1172 = vmatprep.subr.mxu0 0.0
      %1173 = vmatpush1.msra.mxu0 %v1063
      %1174 = vmatprep.subr.mxu0 0.0
      %1175 = vmatpush1.msra.mxu0 %v1064
      %1176 = vmatprep.subr.mxu0 0.0
      %1177 = vmatpush1.msra.mxu0 %v1065
      %1178 = vmatprep.subr.mxu0 0.0
      %1179 = vmatpush1.msra.mxu0 %v1066
      %1180 = vmatprep.subr.mxu0 0.0
      %1181 = vmatpush1.msra.mxu0 0.0
      %1182 = vmatprep.subr.mxu0 0.0
      %1183 = vmatpush1.msra.mxu0 0.0
      %1184 = vmatprep.subr.mxu0 0.0
      %1185 = vmatpush1.msra.mxu0 0.0
      %1186 = vmatprep.subr.mxu0 0.0
      %1187 = vmatpush1.msra.mxu0 0.0
      %1188 = vmatprep.subr.mxu0 0.0
      %1189 = vmatpush1.msra.mxu0 0.0
      %1190 = vmatprep.subr.mxu0 0.0
      %1191 = vmatpush1.msra.mxu0 0.0
      %1192 = vmatprep.subr.mxu0 0.0
      %1193 = vmatpush1.msra.mxu0 0.0
      %1194 = vmatprep.subr.mxu0 0.0
      %1195 = vmatpush1.msra.mxu0 0.0
      %1196 = vmatprep.subr.mxu0 0.0
      %1197 = vmatpush1.msra.mxu0 0.0
      %1198 = vmatprep.subr.mxu0 0.0
      %1199 = vmatpush1.msra.mxu0 0.0
      %1200 = vmatprep.subr.mxu0 0.0
      %1201 = vmatpush1.msra.mxu0 0.0
      %1202 = vmatprep.subr.mxu0 0.0
      %1203 = vmatpush1.msra.mxu0 0.0
      %1204 = vmatprep.subr.mxu0 0.0
      %1205 = vmatpush1.msra.mxu0 0.0
      %1206 = vmatprep.subr.mxu0 0.0
      %1207 = vmatpush1.msra.mxu0 0.0
      %1208 = vmatprep.subr.mxu0 0.0
      %1209 = vmatpush1.msra.mxu0 0.0
      %1210 = vmatprep.subr.mxu0 0.0
      %1211 = vmatpush1.msra.mxu0 0.0
      %1212 = vmatprep.subr.mxu0 0.0
      %1213 = vmatpush1.msra.mxu0 0.0
      %1214 = vmatprep.subr.mxu0 0.0
      %1215 = vmatpush1.msra.mxu0 0.0
      %1216 = vmatprep.subr.mxu0 0.0
      %1217 = vmatpush1.msra.mxu0 0.0
      %1218 = vmatprep.subr.mxu0 0.0
      %1219 = vmatpush1.msra.mxu0 0.0
      %1220 = vmatprep.subr.mxu0 0.0
      %1221 = vmatpush1.msra.mxu0 0.0
      %1222 = vmatprep.subr.mxu0 0.0
      %1223 = vmatpush1.msra.mxu0 0.0
      %1224 = vmatprep.subr.mxu0 0.0
      %1225 = vmatpush1.msra.mxu0 0.0
      %1226 = vmatprep.subr.mxu0 0.0
      %1227 = vmatpush1.msra.mxu0 0.0
      %1228 = vmatprep.subr.mxu0 0.0
      %1229 = vmatpush1.msra.mxu0 0.0
      %1230 = vmatprep.subr.mxu0 0.0
      %1231 = vmatpush1.msra.mxu0 0.0
      %1232 = vmatprep.subr.mxu0 0.0
      %1233 = vmatpush1.msra.mxu0 0.0
      %1234 = vmatprep.subr.mxu0 0.0
      %1235 = vmatpush1.msra.mxu0 0.0
      %1236 = vmatprep.mubr.f32.mxu0 0.0
      %1237 = vmatmul.mubr.f32.gmra.mrb[0].mxu0 %v1164
      %v1238 = vpop.f32.mrb[0].mxu0
      %v1239 = vadd.f32 %v1150, %v1238
      %v1240 = vpop.f32.mrb[0].mxu0
      %1241 = vmatprep.mubr.f32.mxu0 0.0
      %1242 = vmatmul.mubr.f32.gmra.mrb[0].mxu0 %v1167
      %v1243 = vpop.f32.mrb[0].mxu0
      %v1244 = vadd.f32 %v1155, %v1243
      %v1245 = vpop.f32.mrb[0].mxu0
      %1246 = vmatprep.mubr.f32.mxu0 0.0
      %1247 = vmatmul.mubr.f32.gmra.mrb[0].mxu0 %v1170
      %v1248 = vpop.f32.mrb[0].mxu0
      %v1249 = vadd.f32 %v1160, %v1248
      %v1250 = vpop.f32.mrb[0].mxu0
      %1251 = vdwg.mxu0
      %v1252 = vld [vmem:[%s1059 + $0x2] sm:$0xff]
      %v1253 = vld [vmem:[%s1059 + $0xa] sm:$0xff]
      %v1254 = vld [vmem:[%s1059 + $0x12] sm:$0x1]
      %v1255 = vld [vmem:[%s245] sm:$0xff]
      %v1256 = vld [vmem:[%s245 + $0x8] sm:$0xff]
      %v1257 = vld [vmem:[%s245 + $0x10] sm:$0xff]
      %v1258 = vld [vmem:[%s245 + $0x18] sm:$0xff]
      %v1260 = vsel %vm30, %v1252, 0
      %v1263 = vsel %vm30, %v1253, 0
      %v1266 = vsel %vm30, %v1254, 0
      %1268 = vmatprep.subr.mxu0 0.0
      %1269 = vmatpush1.msra.mxu0 %v1255
      %1270 = vmatprep.subr.mxu0 0.0
      %1271 = vmatpush1.msra.mxu0 %v1256
      %1272 = vmatprep.subr.mxu0 0.0
      %1273 = vmatpush1.msra.mxu0 %v1257
      %1274 = vmatprep.subr.mxu0 0.0
      %1275 = vmatpush1.msra.mxu0 %v1258
      %1276 = vmatprep.subr.mxu0 0.0
      %1277 = vmatpush1.msra.mxu0 0.0
      %1278 = vmatprep.subr.mxu0 0.0
      %1279 = vmatpush1.msra.mxu0 0.0
      %1280 = vmatprep.subr.mxu0 0.0
      %1281 = vmatpush1.msra.mxu0 0.0
      %1282 = vmatprep.subr.mxu0 0.0
      %1283 = vmatpush1.msra.mxu0 0.0
      %1284 = vmatprep.subr.mxu0 0.0
      %1285 = vmatpush1.msra.mxu0 0.0
      %1286 = vmatprep.subr.mxu0 0.0
      %1287 = vmatpush1.msra.mxu0 0.0
      %1288 = vmatprep.subr.mxu0 0.0
      %1289 = vmatpush1.msra.mxu0 0.0
      %1290 = vmatprep.subr.mxu0 0.0
      %1291 = vmatpush1.msra.mxu0 0.0
      %1292 = vmatprep.subr.mxu0 0.0
      %1293 = vmatpush1.msra.mxu0 0.0
      %1294 = vmatprep.subr.mxu0 0.0
      %1295 = vmatpush1.msra.mxu0 0.0
      %1296 = vmatprep.subr.mxu0 0.0
      %1297 = vmatpush1.msra.mxu0 0.0
      %1298 = vmatprep.subr.mxu0 0.0
      %1299 = vmatpush1.msra.mxu0 0.0
      %1300 = vmatprep.subr.mxu0 0.0
      %1301 = vmatpush1.msra.mxu0 0.0
      %1302 = vmatprep.subr.mxu0 0.0
      %1303 = vmatpush1.msra.mxu0 0.0
      %1304 = vmatprep.subr.mxu0 0.0
      %1305 = vmatpush1.msra.mxu0 0.0
      %1306 = vmatprep.subr.mxu0 0.0
      %1307 = vmatpush1.msra.mxu0 0.0
      %1308 = vmatprep.subr.mxu0 0.0
      %1309 = vmatpush1.msra.mxu0 0.0
      %1310 = vmatprep.subr.mxu0 0.0
      %1311 = vmatpush1.msra.mxu0 0.0
      %1312 = vmatprep.subr.mxu0 0.0
      %1313 = vmatpush1.msra.mxu0 0.0
      %1314 = vmatprep.subr.mxu0 0.0
      %1315 = vmatpush1.msra.mxu0 0.0
      %1316 = vmatprep.subr.mxu0 0.0
      %1317 = vmatpush1.msra.mxu0 0.0
      %1318 = vmatprep.subr.mxu0 0.0
      %1319 = vmatpush1.msra.mxu0 0.0
      %1320 = vmatprep.subr.mxu0 0.0
      %1321 = vmatpush1.msra.mxu0 0.0
      %1322 = vmatprep.subr.mxu0 0.0
      %1323 = vmatpush1.msra.mxu0 0.0
      %1324 = vmatprep.subr.mxu0 0.0
      %1325 = vmatpush1.msra.mxu0 0.0
      %1326 = vmatprep.subr.mxu0 0.0
      %1327 = vmatpush1.msra.mxu0 0.0
      %1328 = vmatprep.subr.mxu0 0.0
      %1329 = vmatpush1.msra.mxu0 0.0
      %1330 = vmatprep.subr.mxu0 0.0
      %1331 = vmatpush1.msra.mxu0 0.0
      %1332 = vmatprep.mubr.f32.mxu0 0.0
      %1333 = vmatmul.mubr.f32.gmra.mrb[0].mxu0 %v1260
      %v1334 = vpop.f32.mrb[0].mxu0
      %v1335 = vadd.f32 0.0, %v1334
      %v1336 = vpop.f32.mrb[0].mxu0
      %1337 = vmatprep.mubr.f32.mxu0 0.0
      %1338 = vmatmul.mubr.f32.gmra.mrb[0].mxu0 %v1263
      %v1339 = vpop.f32.mrb[0].mxu0
      %v1340 = vadd.f32 0.0, %v1339
      %v1341 = vpop.f32.mrb[0].mxu0
      %1342 = vmatprep.mubr.f32.mxu0 0.0
      %1343 = vmatmul.mubr.f32.gmra.mrb[0].mxu0 %v1266
      %v1344 = vpop.f32.mrb[0].mxu0
      %v1345 = vadd.f32 0.0, %v1344
      %v1346 = vpop.f32.mrb[0].mxu0
      %1347 = vdwg.mxu0
      %v1348 = vadd.f32 %v1239, %v1335
      %v1349 = vadd.f32 %v1244, %v1340
      %v1350 = vadd.f32 %v1249, %v1345
      %v1351 = vld [vmem:[%s1059 + $0x3] sm:$0xff]
      %v1352 = vld [vmem:[%s1059 + $0xb] sm:$0xff]
      %v1353 = vld [vmem:[%s1059 + $0x13] sm:$0x1]
      %v1354 = vld [vmem:[%s345] sm:$0xff]
      %v1355 = vld [vmem:[%s345 + $0x8] sm:$0xff]
      %v1356 = vld [vmem:[%s345 + $0x10] sm:$0xff]
      %v1357 = vld [vmem:[%s345 + $0x18] sm:$0xff]
      %v1359 = vsel %vm30, %v1351, 0
      %v1362 = vsel %vm30, %v1352, 0
      %v1365 = vsel %vm30, %v1353, 0
      %1367 = vmatprep.subr.mxu0 0.0
      %1368 = vmatpush1.msra.mxu0 %v1354
      %1369 = vmatprep.subr.mxu0 0.0
      %1370 = vmatpush1.msra.mxu0 %v1355
      %1371 = vmatprep.subr.mxu0 0.0
      %1372 = vmatpush1.msra.mxu0 %v1356
      %1373 = vmatprep.subr.mxu0 0.0
      %1374 = vmatpush1.msra.mxu0 %v1357
      %1375 = vmatprep.subr.mxu0 0.0
      %1376 = vmatpush1.msra.mxu0 0.0
      %1377 = vmatprep.subr.mxu0 0.0
      %1378 = vmatpush1.msra.mxu0 0.0
      %1379 = vmatprep.subr.mxu0 0.0
      %1380 = vmatpush1.msra.mxu0 0.0
      %1381 = vmatprep.subr.mxu0 0.0
      %1382 = vmatpush1.msra.mxu0 0.0
      %1383 = vmatprep.subr.mxu0 0.0
      %1384 = vmatpush1.msra.mxu0 0.0
      %1385 = vmatprep.subr.mxu0 0.0
      %1386 = vmatpush1.msra.mxu0 0.0
      %1387 = vmatprep.subr.mxu0 0.0
      %1388 = vmatpush1.msra.mxu0 0.0
      %1389 = vmatprep.subr.mxu0 0.0
      %1390 = vmatpush1.msra.mxu0 0.0
      %1391 = vmatprep.subr.mxu0 0.0
      %1392 = vmatpush1.msra.mxu0 0.0
      %1393 = vmatprep.subr.mxu0 0.0
      %1394 = vmatpush1.msra.mxu0 0.0
      %1395 = vmatprep.subr.mxu0 0.0
      %1396 = vmatpush1.msra.mxu0 0.0
      %1397 = vmatprep.subr.mxu0 0.0
      %1398 = vmatpush1.msra.mxu0 0.0
      %1399 = vmatprep.subr.mxu0 0.0
      %1400 = vmatpush1.msra.mxu0 0.0
      %1401 = vmatprep.subr.mxu0 0.0
      %1402 = vmatpush1.msra.mxu0 0.0
      %1403 = vmatprep.subr.mxu0 0.0
      %1404 = vmatpush1.msra.mxu0 0.0
      %1405 = vmatprep.subr.mxu0 0.0
      %1406 = vmatpush1.msra.mxu0 0.0
      %1407 = vmatprep.subr.mxu0 0.0
      %1408 = vmatpush1.msra.mxu0 0.0
      %1409 = vmatprep.subr.mxu0 0.0
      %1410 = vmatpush1.msra.mxu0 0.0
      %1411 = vmatprep.subr.mxu0 0.0
      %1412 = vmatpush1.msra.mxu0 0.0
      %1413 = vmatprep.subr.mxu0 0.0
      %1414 = vmatpush1.msra.mxu0 0.0
      %1415 = vmatprep.subr.mxu0 0.0
      %1416 = vmatpush1.msra.mxu0 0.0
      %1417 = vmatprep.subr.mxu0 0.0
      %1418 = vmatpush1.msra.mxu0 0.0
      %1419 = vmatprep.subr.mxu0 0.0
      %1420 = vmatpush1.msra.mxu0 0.0
      %1421 = vmatprep.subr.mxu0 0.0
      %1422 = vmatpush1.msra.mxu0 0.0
      %1423 = vmatprep.subr.mxu0 0.0
      %1424 = vmatpush1.msra.mxu0 0.0
      %1425 = vmatprep.subr.mxu0 0.0
      %1426 = vmatpush1.msra.mxu0 0.0
      %1427 = vmatprep.subr.mxu0 0.0
      %1428 = vmatpush1.msra.mxu0 0.0
      %1429 = vmatprep.subr.mxu0 0.0
      %1430 = vmatpush1.msra.mxu0 0.0
      %1431 = vmatprep.mubr.f32.mxu0 0.0
      %1432 = vmatmul.mubr.f32.gmra.mrb[0].mxu0 %v1359
      %v1433 = vpop.f32.mrb[0].mxu0
      %v1434 = vadd.f32 0.0, %v1433
      %v1435 = vpop.f32.mrb[0].mxu0
      %1436 = vmatprep.mubr.f32.mxu0 0.0
      %1437 = vmatmul.mubr.f32.gmra.mrb[0].mxu0 %v1362
      %v1438 = vpop.f32.mrb[0].mxu0
      %v1439 = vadd.f32 0.0, %v1438
      %v1440 = vpop.f32.mrb[0].mxu0
      %1441 = vmatprep.mubr.f32.mxu0 0.0
      %1442 = vmatmul.mubr.f32.gmra.mrb[0].mxu0 %v1365
      %v1443 = vpop.f32.mrb[0].mxu0
      %v1444 = vadd.f32 0.0, %v1443
      %v1445 = vpop.f32.mrb[0].mxu0
      %1446 = vdwg.mxu0
      %v1447 = vadd.f32 %v1348, %v1434
      %v1448 = vadd.f32 %v1349, %v1439
      %v1449 = vadd.f32 %v1350, %v1444
      %v1450 = vld [vmem:[%s1059 + $0x4] sm:$0xff]
      %v1451 = vld [vmem:[%s1059 + $0xc] sm:$0xff]
      %v1452 = vld [vmem:[%s1059 + $0x14] sm:$0x1]
      %v1453 = vld [vmem:[%s445] sm:$0xff]
      %v1454 = vld [vmem:[%s445 + $0x8] sm:$0xff]
      %v1455 = vld [vmem:[%s445 + $0x10] sm:$0xff]
      %v1456 = vld [vmem:[%s445 + $0x18] sm:$0xff]
      %v1458 = vsel %vm30, %v1450, 0
      %v1461 = vsel %vm30, %v1451, 0
      %v1464 = vsel %vm30, %v1452, 0
      %1466 = vmatprep.subr.mxu0 0.0
      %1467 = vmatpush1.msra.mxu0 %v1453
      %1468 = vmatprep.subr.mxu0 0.0
      %1469 = vmatpush1.msra.mxu0 %v1454
      %1470 = vmatprep.subr.mxu0 0.0
      %1471 = vmatpush1.msra.mxu0 %v1455
      %1472 = vmatprep.subr.mxu0 0.0
      %1473 = vmatpush1.msra.mxu0 %v1456
      %1474 = vmatprep.subr.mxu0 0.0
      %1475 = vmatpush1.msra.mxu0 0.0
      %1476 = vmatprep.subr.mxu0 0.0
      %1477 = vmatpush1.msra.mxu0 0.0
      %1478 = vmatprep.subr.mxu0 0.0
      %1479 = vmatpush1.msra.mxu0 0.0
      %1480 = vmatprep.subr.mxu0 0.0
      %1481 = vmatpush1.msra.mxu0 0.0
      %1482 = vmatprep.subr.mxu0 0.0
      %1483 = vmatpush1.msra.mxu0 0.0
      %1484 = vmatprep.subr.mxu0 0.0
      %1485 = vmatpush1.msra.mxu0 0.0
      %1486 = vmatprep.subr.mxu0 0.0
      %1487 = vmatpush1.msra.mxu0 0.0
      %1488 = vmatprep.subr.mxu0 0.0
      %1489 = vmatpush1.msra.mxu0 0.0
      %1490 = vmatprep.subr.mxu0 0.0
      %1491 = vmatpush1.msra.mxu0 0.0
      %1492 = vmatprep.subr.mxu0 0.0
      %1493 = vmatpush1.msra.mxu0 0.0
      %1494 = vmatprep.subr.mxu0 0.0
      %1495 = vmatpush1.msra.mxu0 0.0
      %1496 = vmatprep.subr.mxu0 0.0
      %1497 = vmatpush1.msra.mxu0 0.0
      %1498 = vmatprep.subr.mxu0 0.0
      %1499 = vmatpush1.msra.mxu0 0.0
      %1500 = vmatprep.subr.mxu0 0.0
      %1501 = vmatpush1.msra.mxu0 0.0
      %1502 = vmatprep.subr.mxu0 0.0
      %1503 = vmatpush1.msra.mxu0 0.0
      %1504 = vmatprep.subr.mxu0 0.0
      %1505 = vmatpush1.msra.mxu0 0.0
      %1506 = vmatprep.subr.mxu0 0.0
      %1507 = vmatpush1.msra.mxu0 0.0
      %1508 = vmatprep.subr.mxu0 0.0
      %1509 = vmatpush1.msra.mxu0 0.0
      %1510 = vmatprep.subr.mxu0 0.0
      %1511 = vmatpush1.msra.mxu0 0.0
      %1512 = vmatprep.subr.mxu0 0.0
      %1513 = vmatpush1.msra.mxu0 0.0
      %1514 = vmatprep.subr.mxu0 0.0
      %1515 = vmatpush1.msra.mxu0 0.0
      %1516 = vmatprep.subr.mxu0 0.0
      %1517 = vmatpush1.msra.mxu0 0.0
      %1518 = vmatprep.subr.mxu0 0.0
      %1519 = vmatpush1.msra.mxu0 0.0
      %1520 = vmatprep.subr.mxu0 0.0
      %1521 = vmatpush1.msra.mxu0 0.0
      %1522 = vmatprep.subr.mxu0 0.0
      %1523 = vmatpush1.msra.mxu0 0.0
      %1524 = vmatprep.subr.mxu0 0.0
      %1525 = vmatpush1.msra.mxu0 0.0
      %1526 = vmatprep.subr.mxu0 0.0
      %1527 = vmatpush1.msra.mxu0 0.0
      %1528 = vmatprep.subr.mxu0 0.0
      %1529 = vmatpush1.msra.mxu0 0.0
      %1530 = vmatprep.mubr.f32.mxu0 0.0
      %1531 = vmatmul.mubr.f32.gmra.mrb[0].mxu0 %v1458
      %v1532 = vpop.f32.mrb[0].mxu0
      %v1533 = vadd.f32 0.0, %v1532
      %v1534 = vpop.f32.mrb[0].mxu0
      %1535 = vmatprep.mubr.f32.mxu0 0.0
      %1536 = vmatmul.mubr.f32.gmra.mrb[0].mxu0 %v1461
      %v1537 = vpop.f32.mrb[0].mxu0
      %v1538 = vadd.f32 0.0, %v1537
      %v1539 = vpop.f32.mrb[0].mxu0
      %1540 = vmatprep.mubr.f32.mxu0 0.0
      %1541 = vmatmul.mubr.f32.gmra.mrb[0].mxu0 %v1464
      %v1542 = vpop.f32.mrb[0].mxu0
      %v1543 = vadd.f32 0.0, %v1542
      %v1544 = vpop.f32.mrb[0].mxu0
      %1545 = vdwg.mxu0
      %v1546 = vadd.f32 %v1447, %v1533
      %v1547 = vadd.f32 %v1448, %v1538
      %v1548 = vadd.f32 %v1449, %v1543
      %v1549 = vld [vmem:[%s1059 + $0x5] sm:$0xff]
      %v1550 = vld [vmem:[%s1059 + $0xd] sm:$0xff]
      %v1551 = vld [vmem:[%s1059 + $0x15] sm:$0x1]
      %v1552 = vld [vmem:[%s545] sm:$0xff]
      %v1553 = vld [vmem:[%s545 + $0x8] sm:$0xff]
      %v1554 = vld [vmem:[%s545 + $0x10] sm:$0xff]
      %v1555 = vld [vmem:[%s545 + $0x18] sm:$0xff]
      %v1557 = vsel %vm30, %v1549, 0
      %v1560 = vsel %vm30, %v1550, 0
      %v1563 = vsel %vm30, %v1551, 0
      %1565 = vmatprep.subr.mxu0 0.0
      %1566 = vmatpush1.msra.mxu0 %v1552
      %1567 = vmatprep.subr.mxu0 0.0
      %1568 = vmatpush1.msra.mxu0 %v1553
      %1569 = vmatprep.subr.mxu0 0.0
      %1570 = vmatpush1.msra.mxu0 %v1554
      %1571 = vmatprep.subr.mxu0 0.0
      %1572 = vmatpush1.msra.mxu0 %v1555
      %1573 = vmatprep.subr.mxu0 0.0
      %1574 = vmatpush1.msra.mxu0 0.0
      %1575 = vmatprep.subr.mxu0 0.0
      %1576 = vmatpush1.msra.mxu0 0.0
      %1577 = vmatprep.subr.mxu0 0.0
      %1578 = vmatpush1.msra.mxu0 0.0
      %1579 = vmatprep.subr.mxu0 0.0
      %1580 = vmatpush1.msra.mxu0 0.0
      %1581 = vmatprep.subr.mxu0 0.0
      %1582 = vmatpush1.msra.mxu0 0.0
      %1583 = vmatprep.subr.mxu0 0.0
      %1584 = vmatpush1.msra.mxu0 0.0
      %1585 = vmatprep.subr.mxu0 0.0
      %1586 = vmatpush1.msra.mxu0 0.0
      %1587 = vmatprep.subr.mxu0 0.0
      %1588 = vmatpush1.msra.mxu0 0.0
      %1589 = vmatprep.subr.mxu0 0.0
      %1590 = vmatpush1.msra.mxu0 0.0
      %1591 = vmatprep.subr.mxu0 0.0
      %1592 = vmatpush1.msra.mxu0 0.0
      %1593 = vmatprep.subr.mxu0 0.0
      %1594 = vmatpush1.msra.mxu0 0.0
      %1595 = vmatprep.subr.mxu0 0.0
      %1596 = vmatpush1.msra.mxu0 0.0
      %1597 = vmatprep.subr.mxu0 0.0
      %1598 = vmatpush1.msra.mxu0 0.0
      %1599 = vmatprep.subr.mxu0 0.0
      %1600 = vmatpush1.msra.mxu0 0.0
      %1601 = vmatprep.subr.mxu0 0.0
      %1602 = vmatpush1.msra.mxu0 0.0
      %1603 = vmatprep.subr.mxu0 0.0
      %1604 = vmatpush1.msra.mxu0 0.0
      %1605 = vmatprep.subr.mxu0 0.0
      %1606 = vmatpush1.msra.mxu0 0.0
      %1607 = vmatprep.subr.mxu0 0.0
      %1608 = vmatpush1.msra.mxu0 0.0
      %1609 = vmatprep.subr.mxu0 0.0
      %1610 = vmatpush1.msra.mxu0 0.0
      %1611 = vmatprep.subr.mxu0 0.0
      %1612 = vmatpush1.msra.mxu0 0.0
      %1613 = vmatprep.subr.mxu0 0.0
      %1614 = vmatpush1.msra.mxu0 0.0
      %1615 = vmatprep.subr.mxu0 0.0
      %1616 = vmatpush1.msra.mxu0 0.0
      %1617 = vmatprep.subr.mxu0 0.0
      %1618 = vmatpush1.msra.mxu0 0.0
      %1619 = vmatprep.subr.mxu0 0.0
      %1620 = vmatpush1.msra.mxu0 0.0
      %1621 = vmatprep.subr.mxu0 0.0
      %1622 = vmatpush1.msra.mxu0 0.0
      %1623 = vmatprep.subr.mxu0 0.0
      %1624 = vmatpush1.msra.mxu0 0.0
      %1625 = vmatprep.subr.mxu0 0.0
      %1626 = vmatpush1.msra.mxu0 0.0
      %1627 = vmatprep.subr.mxu0 0.0
      %1628 = vmatpush1.msra.mxu0 0.0
      %1629 = vmatprep.mubr.f32.mxu0 0.0
      %1630 = vmatmul.mubr.f32.gmra.mrb[0].mxu0 %v1557
      %v1631 = vpop.f32.mrb[0].mxu0
      %v1632 = vadd.f32 0.0, %v1631
      %v1633 = vpop.f32.mrb[0].mxu0
      %1634 = vmatprep.mubr.f32.mxu0 0.0
      %1635 = vmatmul.mubr.f32.gmra.mrb[0].mxu0 %v1560
      %v1636 = vpop.f32.mrb[0].mxu0
      %v1637 = vadd.f32 0.0, %v1636
      %v1638 = vpop.f32.mrb[0].mxu0
      %1639 = vmatprep.mubr.f32.mxu0 0.0
      %1640 = vmatmul.mubr.f32.gmra.mrb[0].mxu0 %v1563
      %v1641 = vpop.f32.mrb[0].mxu0
      %v1642 = vadd.f32 0.0, %v1641
      %v1643 = vpop.f32.mrb[0].mxu0
      %1644 = vdwg.mxu0
      %v1645 = vadd.f32 %v1546, %v1632
      %v1646 = vadd.f32 %v1547, %v1637
      %v1647 = vadd.f32 %v1548, %v1642
      %v1648 = vld [vmem:[%s1059 + $0x6] sm:$0xff]
      %v1649 = vld [vmem:[%s1059 + $0xe] sm:$0xff]
      %v1650 = vld [vmem:[%s1059 + $0x16] sm:$0x1]
      %v1651 = vld [vmem:[%s645] sm:$0xff]
      %v1652 = vld [vmem:[%s645 + $0x8] sm:$0xff]
      %v1653 = vld [vmem:[%s645 + $0x10] sm:$0xff]
      %v1654 = vld [vmem:[%s645 + $0x18] sm:$0xff]
      %v1656 = vsel %vm30, %v1648, 0
      %v1659 = vsel %vm30, %v1649, 0
      %v1662 = vsel %vm30, %v1650, 0
      %1664 = vmatprep.subr.mxu0 0.0
      %1665 = vmatpush1.msra.mxu0 %v1651
      %1666 = vmatprep.subr.mxu0 0.0
      %1667 = vmatpush1.msra.mxu0 %v1652
      %1668 = vmatprep.subr.mxu0 0.0
      %1669 = vmatpush1.msra.mxu0 %v1653
      %1670 = vmatprep.subr.mxu0 0.0
      %1671 = vmatpush1.msra.mxu0 %v1654
      %1672 = vmatprep.subr.mxu0 0.0
      %1673 = vmatpush1.msra.mxu0 0.0
      %1674 = vmatprep.subr.mxu0 0.0
      %1675 = vmatpush1.msra.mxu0 0.0
      %1676 = vmatprep.subr.mxu0 0.0
      %1677 = vmatpush1.msra.mxu0 0.0
      %1678 = vmatprep.subr.mxu0 0.0
      %1679 = vmatpush1.msra.mxu0 0.0
      %1680 = vmatprep.subr.mxu0 0.0
      %1681 = vmatpush1.msra.mxu0 0.0
      %1682 = vmatprep.subr.mxu0 0.0
      %1683 = vmatpush1.msra.mxu0 0.0
      %1684 = vmatprep.subr.mxu0 0.0
      %1685 = vmatpush1.msra.mxu0 0.0
      %1686 = vmatprep.subr.mxu0 0.0
      %1687 = vmatpush1.msra.mxu0 0.0
      %1688 = vmatprep.subr.mxu0 0.0
      %1689 = vmatpush1.msra.mxu0 0.0
      %1690 = vmatprep.subr.mxu0 0.0
      %1691 = vmatpush1.msra.mxu0 0.0
      %1692 = vmatprep.subr.mxu0 0.0
      %1693 = vmatpush1.msra.mxu0 0.0
      %1694 = vmatprep.subr.mxu0 0.0
      %1695 = vmatpush1.msra.mxu0 0.0
      %1696 = vmatprep.subr.mxu0 0.0
      %1697 = vmatpush1.msra.mxu0 0.0
      %1698 = vmatprep.subr.mxu0 0.0
      %1699 = vmatpush1.msra.mxu0 0.0
      %1700 = vmatprep.subr.mxu0 0.0
      %1701 = vmatpush1.msra.mxu0 0.0
      %1702 = vmatprep.subr.mxu0 0.0
      %1703 = vmatpush1.msra.mxu0 0.0
      %1704 = vmatprep.subr.mxu0 0.0
      %1705 = vmatpush1.msra.mxu0 0.0
      %1706 = vmatprep.subr.mxu0 0.0
      %1707 = vmatpush1.msra.mxu0 0.0
      %1708 = vmatprep.subr.mxu0 0.0
      %1709 = vmatpush1.msra.mxu0 0.0
      %1710 = vmatprep.subr.mxu0 0.0
      %1711 = vmatpush1.msra.mxu0 0.0
      %1712 = vmatprep.subr.mxu0 0.0
      %1713 = vmatpush1.msra.mxu0 0.0
      %1714 = vmatprep.subr.mxu0 0.0
      %1715 = vmatpush1.msra.mxu0 0.0
      %1716 = vmatprep.subr.mxu0 0.0
      %1717 = vmatpush1.msra.mxu0 0.0
      %1718 = vmatprep.subr.mxu0 0.0
      %1719 = vmatpush1.msra.mxu0 0.0
      %1720 = vmatprep.subr.mxu0 0.0
      %1721 = vmatpush1.msra.mxu0 0.0
      %1722 = vmatprep.subr.mxu0 0.0
      %1723 = vmatpush1.msra.mxu0 0.0
      %1724 = vmatprep.subr.mxu0 0.0
      %1725 = vmatpush1.msra.mxu0 0.0
      %1726 = vmatprep.subr.mxu0 0.0
      %1727 = vmatpush1.msra.mxu0 0.0
      %1728 = vmatprep.mubr.f32.mxu0 0.0
      %1729 = vmatmul.mubr.f32.gmra.mrb[0].mxu0 %v1656
      %v1730 = vpop.f32.mrb[0].mxu0
      %v1731 = vadd.f32 0.0, %v1730
      %v1732 = vpop.f32.mrb[0].mxu0
      %1733 = vmatprep.mubr.f32.mxu0 0.0
      %1734 = vmatmul.mubr.f32.gmra.mrb[0].mxu0 %v1659
      %v1735 = vpop.f32.mrb[0].mxu0
      %v1736 = vadd.f32 0.0, %v1735
      %v1737 = vpop.f32.mrb[0].mxu0
      %1738 = vmatprep.mubr.f32.mxu0 0.0
      %1739 = vmatmul.mubr.f32.gmra.mrb[0].mxu0 %v1662
      %v1740 = vpop.f32.mrb[0].mxu0
      %v1741 = vadd.f32 0.0, %v1740
      %v1742 = vpop.f32.mrb[0].mxu0
      %1743 = vdwg.mxu0
      %v1744 = vadd.f32 %v1645, %v1731
      %v1745 = vadd.f32 %v1646, %v1736
      %v1746 = vadd.f32 %v1647, %v1741
      %v1747 = vld [vmem:[%s1059 + $0x7] sm:$0xff]
      %v1748 = vld [vmem:[%s1059 + $0xf] sm:$0xff]
      %v1749 = vld [vmem:[%s1059 + $0x17] sm:$0x1]
      %v1750 = vld [vmem:[%s745] sm:$0xff]
      %v1751 = vld [vmem:[%s745 + $0x8] sm:$0xff]
      %v1752 = vld [vmem:[%s745 + $0x10] sm:$0xff]
      %v1753 = vld [vmem:[%s745 + $0x18] sm:$0xff]
      %v1755 = vsel %vm30, %v1747, 0
      %v1758 = vsel %vm30, %v1748, 0
      %v1761 = vsel %vm30, %v1749, 0
      %1763 = vmatprep.subr.mxu0 0.0
      %1764 = vmatpush1.msra.mxu0 %v1750
      %1765 = vmatprep.subr.mxu0 0.0
      %1766 = vmatpush1.msra.mxu0 %v1751
      %1767 = vmatprep.subr.mxu0 0.0
      %1768 = vmatpush1.msra.mxu0 %v1752
      %1769 = vmatprep.subr.mxu0 0.0
      %1770 = vmatpush1.msra.mxu0 %v1753
      %1771 = vmatprep.subr.mxu0 0.0
      %1772 = vmatpush1.msra.mxu0 0.0
      %1773 = vmatprep.subr.mxu0 0.0
      %1774 = vmatpush1.msra.mxu0 0.0
      %1775 = vmatprep.subr.mxu0 0.0
      %1776 = vmatpush1.msra.mxu0 0.0
      %1777 = vmatprep.subr.mxu0 0.0
      %1778 = vmatpush1.msra.mxu0 0.0
      %1779 = vmatprep.subr.mxu0 0.0
      %1780 = vmatpush1.msra.mxu0 0.0
      %1781 = vmatprep.subr.mxu0 0.0
      %1782 = vmatpush1.msra.mxu0 0.0
      %1783 = vmatprep.subr.mxu0 0.0
      %1784 = vmatpush1.msra.mxu0 0.0
      %1785 = vmatprep.subr.mxu0 0.0
      %1786 = vmatpush1.msra.mxu0 0.0
      %1787 = vmatprep.subr.mxu0 0.0
      %1788 = vmatpush1.msra.mxu0 0.0
      %1789 = vmatprep.subr.mxu0 0.0
      %1790 = vmatpush1.msra.mxu0 0.0
      %1791 = vmatprep.subr.mxu0 0.0
      %1792 = vmatpush1.msra.mxu0 0.0
      %1793 = vmatprep.subr.mxu0 0.0
      %1794 = vmatpush1.msra.mxu0 0.0
      %1795 = vmatprep.subr.mxu0 0.0
      %1796 = vmatpush1.msra.mxu0 0.0
      %1797 = vmatprep.subr.mxu0 0.0
      %1798 = vmatpush1.msra.mxu0 0.0
      %1799 = vmatprep.subr.mxu0 0.0
      %1800 = vmatpush1.msra.mxu0 0.0
      %1801 = vmatprep.subr.mxu0 0.0
      %1802 = vmatpush1.msra.mxu0 0.0
      %1803 = vmatprep.subr.mxu0 0.0
      %1804 = vmatpush1.msra.mxu0 0.0
      %1805 = vmatprep.subr.mxu0 0.0
      %1806 = vmatpush1.msra.mxu0 0.0
      %1807 = vmatprep.subr.mxu0 0.0
      %1808 = vmatpush1.msra.mxu0 0.0
      %1809 = vmatprep.subr.mxu0 0.0
      %1810 = vmatpush1.msra.mxu0 0.0
      %1811 = vmatprep.subr.mxu0 0.0
      %1812 = vmatpush1.msra.mxu0 0.0
      %1813 = vmatprep.subr.mxu0 0.0
      %1814 = vmatpush1.msra.mxu0 0.0
      %1815 = vmatprep.subr.mxu0 0.0
      %1816 = vmatpush1.msra.mxu0 0.0
      %1817 = vmatprep.subr.mxu0 0.0
      %1818 = vmatpush1.msra.mxu0 0.0
      %1819 = vmatprep.subr.mxu0 0.0
      %1820 = vmatpush1.msra.mxu0 0.0
      %1821 = vmatprep.subr.mxu0 0.0
      %1822 = vmatpush1.msra.mxu0 0.0
      %1823 = vmatprep.subr.mxu0 0.0
      %1824 = vmatpush1.msra.mxu0 0.0
      %1825 = vmatprep.subr.mxu0 0.0
      %1826 = vmatpush1.msra.mxu0 0.0
      %1827 = vmatprep.mubr.f32.mxu0 0.0
      %1828 = vmatmul.mubr.f32.gmra.mrb[0].mxu0 %v1755
      %v1829 = vpop.f32.mrb[0].mxu0
      %v1830 = vadd.f32 0.0, %v1829
      %v1831 = vpop.f32.mrb[0].mxu0
      %1832 = vmatprep.mubr.f32.mxu0 0.0
      %1833 = vmatmul.mubr.f32.gmra.mrb[0].mxu0 %v1758
      %v1834 = vpop.f32.mrb[0].mxu0
      %v1835 = vadd.f32 0.0, %v1834
      %v1836 = vpop.f32.mrb[0].mxu0
      %1837 = vmatprep.mubr.f32.mxu0 0.0
      %1838 = vmatmul.mubr.f32.gmra.mrb[0].mxu0 %v1761
      %v1839 = vpop.f32.mrb[0].mxu0
      %v1840 = vadd.f32 0.0, %v1839
      %v1841 = vpop.f32.mrb[0].mxu0
      %1842 = vdwg.mxu0
      %v1843 = vadd.f32 %v1744, %v1830
      %v1844 = vadd.f32 %v1745, %v1835
      %v1845 = vadd.f32 %v1746, %v1840
      %v1846 = vld [vmem:[%s1059 + $0x8] sm:$0xff]
      %v1847 = vld [vmem:[%s1059 + $0x10] sm:$0xff]
      %v1848 = vld [vmem:[%s1059 + $0x18] sm:$0x1]
      %v1849 = vld [vmem:[%s845] sm:$0xff]
      %v1850 = vld [vmem:[%s845 + $0x8] sm:$0xff]
      %v1851 = vld [vmem:[%s845 + $0x10] sm:$0xff]
      %v1852 = vld [vmem:[%s845 + $0x18] sm:$0xff]
      %v1854 = vsel %vm30, %v1846, 0
      %v1857 = vsel %vm30, %v1847, 0
      %v1860 = vsel %vm30, %v1848, 0
      %1862 = vmatprep.subr.mxu0 0.0
      %1863 = vmatpush1.msra.mxu0 %v1849
      %1864 = vmatprep.subr.mxu0 0.0
      %1865 = vmatpush1.msra.mxu0 %v1850
      %1866 = vmatprep.subr.mxu0 0.0
      %1867 = vmatpush1.msra.mxu0 %v1851
      %1868 = vmatprep.subr.mxu0 0.0
      %1869 = vmatpush1.msra.mxu0 %v1852
      %1870 = vmatprep.subr.mxu0 0.0
      %1871 = vmatpush1.msra.mxu0 0.0
      %1872 = vmatprep.subr.mxu0 0.0
      %1873 = vmatpush1.msra.mxu0 0.0
      %1874 = vmatprep.subr.mxu0 0.0
      %1875 = vmatpush1.msra.mxu0 0.0
      %1876 = vmatprep.subr.mxu0 0.0
      %1877 = vmatpush1.msra.mxu0 0.0
      %1878 = vmatprep.subr.mxu0 0.0
      %1879 = vmatpush1.msra.mxu0 0.0
      %1880 = vmatprep.subr.mxu0 0.0
      %1881 = vmatpush1.msra.mxu0 0.0
      %1882 = vmatprep.subr.mxu0 0.0
      %1883 = vmatpush1.msra.mxu0 0.0
      %1884 = vmatprep.subr.mxu0 0.0
      %1885 = vmatpush1.msra.mxu0 0.0
      %1886 = vmatprep.subr.mxu0 0.0
      %1887 = vmatpush1.msra.mxu0 0.0
      %1888 = vmatprep.subr.mxu0 0.0
      %1889 = vmatpush1.msra.mxu0 0.0
      %1890 = vmatprep.subr.mxu0 0.0
      %1891 = vmatpush1.msra.mxu0 0.0
      %1892 = vmatprep.subr.mxu0 0.0
      %1893 = vmatpush1.msra.mxu0 0.0
      %1894 = vmatprep.subr.mxu0 0.0
      %1895 = vmatpush1.msra.mxu0 0.0
      %1896 = vmatprep.subr.mxu0 0.0
      %1897 = vmatpush1.msra.mxu0 0.0
      %1898 = vmatprep.subr.mxu0 0.0
      %1899 = vmatpush1.msra.mxu0 0.0
      %1900 = vmatprep.subr.mxu0 0.0
      %1901 = vmatpush1.msra.mxu0 0.0
      %1902 = vmatprep.subr.mxu0 0.0
      %1903 = vmatpush1.msra.mxu0 0.0
      %1904 = vmatprep.subr.mxu0 0.0
      %1905 = vmatpush1.msra.mxu0 0.0
      %1906 = vmatprep.subr.mxu0 0.0
      %1907 = vmatpush1.msra.mxu0 0.0
      %1908 = vmatprep.subr.mxu0 0.0
      %1909 = vmatpush1.msra.mxu0 0.0
      %1910 = vmatprep.subr.mxu0 0.0
      %1911 = vmatpush1.msra.mxu0 0.0
      %1912 = vmatprep.subr.mxu0 0.0
      %1913 = vmatpush1.msra.mxu0 0.0
      %1914 = vmatprep.subr.mxu0 0.0
      %1915 = vmatpush1.msra.mxu0 0.0
      %1916 = vmatprep.subr.mxu0 0.0
      %1917 = vmatpush1.msra.mxu0 0.0
      %1918 = vmatprep.subr.mxu0 0.0
      %1919 = vmatpush1.msra.mxu0 0.0
      %1920 = vmatprep.subr.mxu0 0.0
      %1921 = vmatpush1.msra.mxu0 0.0
      %1922 = vmatprep.subr.mxu0 0.0
      %1923 = vmatpush1.msra.mxu0 0.0
      %1924 = vmatprep.subr.mxu0 0.0
      %1925 = vmatpush1.msra.mxu0 0.0
      %1926 = vmatprep.mubr.f32.mxu0 0.0
      %1927 = vmatmul.mubr.f32.gmra.mrb[0].mxu0 %v1854
      %v1928 = vpop.f32.mrb[0].mxu0
      %v1929 = vadd.f32 0.0, %v1928
      %v1930 = vpop.f32.mrb[0].mxu0
      %1931 = vmatprep.mubr.f32.mxu0 0.0
      %1932 = vmatmul.mubr.f32.gmra.mrb[0].mxu0 %v1857
      %v1933 = vpop.f32.mrb[0].mxu0
      %v1934 = vadd.f32 0.0, %v1933
      %v1935 = vpop.f32.mrb[0].mxu0
      %1936 = vmatprep.mubr.f32.mxu0 0.0
      %1937 = vmatmul.mubr.f32.gmra.mrb[0].mxu0 %v1860
      %v1938 = vpop.f32.mrb[0].mxu0
      %v1939 = vadd.f32 0.0, %v1938
      %v1940 = vpop.f32.mrb[0].mxu0
      %1941 = vdwg.mxu0
      %v1942 = vadd.f32 %v1843, %v1929
      %v1943 = vadd.f32 %v1844, %v1934
      %v1944 = vadd.f32 %v1845, %v1939
      %v1945 = vld [vmem:[%s1059 + $0x9] sm:$0xff]
      %v1946 = vld [vmem:[%s1059 + $0x11] sm:$0xff]
      %v1947 = vld [vmem:[%s1059 + $0x19] sm:$0x1]
      %v1948 = vld [vmem:[%s945] sm:$0xff]
      %v1949 = vld [vmem:[%s945 + $0x8] sm:$0xff]
      %v1950 = vld [vmem:[%s945 + $0x10] sm:$0xff]
      %v1951 = vld [vmem:[%s945 + $0x18] sm:$0xff]
      %v1953 = vsel %vm30, %v1945, 0
      %v1956 = vsel %vm30, %v1946, 0
      %v1959 = vsel %vm30, %v1947, 0
      %1961 = vmatprep.subr.mxu0 0.0
      %1962 = vmatpush1.msra.mxu0 %v1948
      %1963 = vmatprep.subr.mxu0 0.0
      %1964 = vmatpush1.msra.mxu0 %v1949
      %1965 = vmatprep.subr.mxu0 0.0
      %1966 = vmatpush1.msra.mxu0 %v1950
      %1967 = vmatprep.subr.mxu0 0.0
      %1968 = vmatpush1.msra.mxu0 %v1951
      %1969 = vmatprep.subr.mxu0 0.0
      %1970 = vmatpush1.msra.mxu0 0.0
      %1971 = vmatprep.subr.mxu0 0.0
      %1972 = vmatpush1.msra.mxu0 0.0
      %1973 = vmatprep.subr.mxu0 0.0
      %1974 = vmatpush1.msra.mxu0 0.0
      %1975 = vmatprep.subr.mxu0 0.0
      %1976 = vmatpush1.msra.mxu0 0.0
      %1977 = vmatprep.subr.mxu0 0.0
      %1978 = vmatpush1.msra.mxu0 0.0
      %1979 = vmatprep.subr.mxu0 0.0
      %1980 = vmatpush1.msra.mxu0 0.0
      %1981 = vmatprep.subr.mxu0 0.0
      %1982 = vmatpush1.msra.mxu0 0.0
      %1983 = vmatprep.subr.mxu0 0.0
      %1984 = vmatpush1.msra.mxu0 0.0
      %1985 = vmatprep.subr.mxu0 0.0
      %1986 = vmatpush1.msra.mxu0 0.0
      %1987 = vmatprep.subr.mxu0 0.0
      %1988 = vmatpush1.msra.mxu0 0.0
      %1989 = vmatprep.subr.mxu0 0.0
      %1990 = vmatpush1.msra.mxu0 0.0
      %1991 = vmatprep.subr.mxu0 0.0
      %1992 = vmatpush1.msra.mxu0 0.0
      %1993 = vmatprep.subr.mxu0 0.0
      %1994 = vmatpush1.msra.mxu0 0.0
      %1995 = vmatprep.subr.mxu0 0.0
      %1996 = vmatpush1.msra.mxu0 0.0
      %1997 = vmatprep.subr.mxu0 0.0
      %1998 = vmatpush1.msra.mxu0 0.0
      %1999 = vmatprep.subr.mxu0 0.0
      %2000 = vmatpush1.msra.mxu0 0.0
      %2001 = vmatprep.subr.mxu0 0.0
      %2002 = vmatpush1.msra.mxu0 0.0
      %2003 = vmatprep.subr.mxu0 0.0
      %2004 = vmatpush1.msra.mxu0 0.0
      %2005 = vmatprep.subr.mxu0 0.0
      %2006 = vmatpush1.msra.mxu0 0.0
      %2007 = vmatprep.subr.mxu0 0.0
      %2008 = vmatpush1.msra.mxu0 0.0
      %2009 = vmatprep.subr.mxu0 0.0
      %2010 = vmatpush1.msra.mxu0 0.0
      %2011 = vmatprep.subr.mxu0 0.0
      %2012 = vmatpush1.msra.mxu0 0.0
      %2013 = vmatprep.subr.mxu0 0.0
      %2014 = vmatpush1.msra.mxu0 0.0
      %2015 = vmatprep.subr.mxu0 0.0
      %2016 = vmatpush1.msra.mxu0 0.0
      %2017 = vmatprep.subr.mxu0 0.0
      %2018 = vmatpush1.msra.mxu0 0.0
      %2019 = vmatprep.subr.mxu0 0.0
      %2020 = vmatpush1.msra.mxu0 0.0
      %2021 = vmatprep.subr.mxu0 0.0
      %2022 = vmatpush1.msra.mxu0 0.0
      %2023 = vmatprep.subr.mxu0 0.0
      %2024 = vmatpush1.msra.mxu0 0.0
      %2025 = vmatprep.mubr.f32.mxu0 0.0
      %2026 = vmatmul.mubr.f32.gmra.mrb[0].mxu0 %v1953
      %v2027 = vpop.f32.mrb[0].mxu0
      %v2028 = vadd.f32 0.0, %v2027
      %v2029 = vpop.f32.mrb[0].mxu0
      %2030 = vmatprep.mubr.f32.mxu0 0.0
      %2031 = vmatmul.mubr.f32.gmra.mrb[0].mxu0 %v1956
      %v2032 = vpop.f32.mrb[0].mxu0
      %v2033 = vadd.f32 0.0, %v2032
      %v2034 = vpop.f32.mrb[0].mxu0
      %2035 = vmatprep.mubr.f32.mxu0 0.0
      %2036 = vmatmul.mubr.f32.gmra.mrb[0].mxu0 %v1959
      %v2037 = vpop.f32.mrb[0].mxu0
      %v2038 = vadd.f32 0.0, %v2037
      %v2039 = vpop.f32.mrb[0].mxu0
      %2040 = vdwg.mxu0
      %v2041 = vadd.f32 %v1942, %v2028
      %v2042 = vadd.f32 %v1943, %v2033
      %v2043 = vadd.f32 %v1944, %v2038
      %v2044 = vadd.f32 %v2041, %v1046
      %v2045 = vadd.f32 %v2042, %v1046
      %v2046 = vadd.f32 %v2043, %v1046
      %v2047 = vtanh.pop %v2044
      %v2048 = vtanh.pop %v2045
      %v2049 = vtanh.pop %v2046
      %s2050 = scalar_lea.vmem [#allocation3], 24
      %2051 = vst.msk [vmem:[%s2050] sm:$0xff] %vm1054, %v2047
      %2052 = vst.msk [vmem:[%s2050 + $0x8] sm:$0xff] %vm1054, %v2048
      %2053 = vst.msk [vmem:[%s2050 + $0x10] sm:$0x1] %vm1057, %v2049
    $region29: #{caml_forward.1} parent=1 // pred_fallthru
      _
    %v2054 = vld [vmem:[%s3] sm:$0xff]
    %v2055 = vld [vmem:[%s4] sm:$0xff]
    %v2056 = vld [vmem:[%s5] sm:$0x1]
    %v2057 = vld [vmem:[#allocation3] sm:$0xff]
    %v2058 = vld [vmem:[#allocation3 + $0x8] sm:$0xff]
    %v2059 = vld [vmem:[#allocation3 + $0x10] sm:$0x1]
    %vm2060 = vcmask 523264
    %v2062 = vsel %vm2060, %v2054, 0
    %v2065 = vsel %vm2060, %v2057, 0
    %v2068 = vsel %vm2060, %v2058, 0
    %v2071 = vsel %vm2060, %v2059, 0
    %2073 = vmatprep.subr.mxu0 0.0
    %2074 = vmatpush1.xpose.msra.mxu0 %v2065
    %2075 = vmatprep.subr.mxu0 0.0
    %2076 = vmatpush1.xpose.msra.mxu0 %v2068
    %2077 = vmatprep.subr.mxu0 0.0
    %2078 = vmatpush1.xpose.msra.mxu0 %v2071
    %2079 = vmatprep.subr.mxu0 0.0
    %2080 = vmatpush1.xpose.msra.mxu0 0.0
    %2081 = vmatprep.subr.mxu0 0.0
    %2082 = vmatpush1.xpose.msra.mxu0 0.0
    %2083 = vmatprep.subr.mxu0 0.0
    %2084 = vmatpush1.xpose.msra.mxu0 0.0
    %2085 = vmatprep.subr.mxu0 0.0
    %2086 = vmatpush1.xpose.msra.mxu0 0.0
    %2087 = vmatprep.subr.mxu0 0.0
    %2088 = vmatpush1.xpose.msra.mxu0 0.0
    %2089 = vmatprep.subr.mxu0 0.0
    %2090 = vmatpush1.xpose.msra.mxu0 0.0
    %2091 = vmatprep.subr.mxu0 0.0
    %2092 = vmatpush1.xpose.msra.mxu0 0.0
    %2093 = vmatprep.subr.mxu0 0.0
    %2094 = vmatpush1.xpose.msra.mxu0 0.0
    %2095 = vmatprep.subr.mxu0 0.0
    %2096 = vmatpush1.xpose.msra.mxu0 0.0
    %2097 = vmatprep.subr.mxu0 0.0
    %2098 = vmatpush1.xpose.msra.mxu0 0.0
    %2099 = vmatprep.subr.mxu0 0.0
    %2100 = vmatpush1.xpose.msra.mxu0 0.0
    %2101 = vmatprep.subr.mxu0 0.0
    %2102 = vmatpush1.xpose.msra.mxu0 0.0
    %2103 = vmatprep.subr.mxu0 0.0
    %2104 = vmatpush1.xpose.msra.mxu0 0.0
    %2105 = vmatprep.subr.mxu0 0.0
    %2106 = vmatpush1.xpose.msra.mxu0 0.0
    %2107 = vmatprep.subr.mxu0 0.0
    %2108 = vmatpush1.xpose.msra.mxu0 0.0
    %2109 = vmatprep.subr.mxu0 0.0
    %2110 = vmatpush1.xpose.msra.mxu0 0.0
    %2111 = vmatprep.subr.mxu0 0.0
    %2112 = vmatpush1.xpose.msra.mxu0 0.0
    %2113 = vmatprep.subr.mxu0 0.0
    %2114 = vmatpush1.xpose.msra.mxu0 0.0
    %2115 = vmatprep.subr.mxu0 0.0
    %2116 = vmatpush1.xpose.msra.mxu0 0.0
    %2117 = vmatprep.subr.mxu0 0.0
    %2118 = vmatpush1.xpose.msra.mxu0 0.0
    %2119 = vmatprep.subr.mxu0 0.0
    %2120 = vmatpush1.xpose.msra.mxu0 0.0
    %2121 = vmatprep.subr.mxu0 0.0
    %2122 = vmatpush1.xpose.msra.mxu0 0.0
    %2123 = vmatprep.subr.mxu0 0.0
    %2124 = vmatpush1.xpose.msra.mxu0 0.0
    %2125 = vmatprep.subr.mxu0 0.0
    %2126 = vmatpush1.xpose.msra.mxu0 0.0
    %2127 = vmatprep.subr.mxu0 0.0
    %2128 = vmatpush1.xpose.msra.mxu0 0.0
    %2129 = vmatprep.subr.mxu0 0.0
    %2130 = vmatpush1.xpose.msra.mxu0 0.0
    %2131 = vmatprep.subr.mxu0 0.0
    %2132 = vmatpush1.xpose.msra.mxu0 0.0
    %2133 = vmatprep.subr.mxu0 0.0
    %2134 = vmatpush1.xpose.msra.mxu0 0.0
    %2135 = vmatprep.subr.mxu0 0.0
    %2136 = vmatpush1.xpose.msra.mxu0 0.0
    %2137 = vmatprep.mubr.f32.mxu0 0.0
    %2138 = vmatmul.mubr.f32.gmra.mrb[0].mxu0 %v2062
    %v2139 = vpop.f32.mrb[0].mxu0
    %v2140 = vadd.f32 0.0, %v2139
    %v2141 = vpop.f32.mrb[0].mxu0
    %2142 = vdwg.mxu0
    %vm2143 = vcmask 138240
    %v2144 = vsel %vm2143, %v2140, -inf
    %2145 = vmax.xlane.f32.xlu0 %v2144
    %v2146 = vpop.xlane.xlu0 %2145
    %v2147 = vsub.f32 %v2140, %v2146
    %v2148 = vmul.f32 %v2147, 1.442695
    %v2149 = vpow.pop %v2148
    %v2150 = vsel %vm2143, %v2149, 0.0
    %2151 = vadd.xlane.f32.xlu0 %v2150
    %v2152 = vpop.xlane.xlu0 %2151
    %v2153 = vrcp.pop %v2152
    %v2154 = vmul.f32 %v2149, %v2153
    %2155 = vst.msk [vmem:[#allocation4] sm:$0xff] %vm2143, %v2154
    %v2157 = vsel %vm2060, %v2055, 0
    %2159 = vmatprep.subr.mxu0 0.0
    %2160 = vmatpush1.xpose.msra.mxu0 %v2065
    %2161 = vmatprep.subr.mxu0 0.0
    %2162 = vmatpush1.xpose.msra.mxu0 %v2068
    %2163 = vmatprep.subr.mxu0 0.0
    %2164 = vmatpush1.xpose.msra.mxu0 %v2071
    %2165 = vmatprep.subr.mxu0 0.0
    %2166 = vmatpush1.xpose.msra.mxu0 0.0
    %2167 = vmatprep.subr.mxu0 0.0
    %2168 = vmatpush1.xpose.msra.mxu0 0.0
    %2169 = vmatprep.subr.mxu0 0.0
    %2170 = vmatpush1.xpose.msra.mxu0 0.0
    %2171 = vmatprep.subr.mxu0 0.0
    %2172 = vmatpush1.xpose.msra.mxu0 0.0
    %2173 = vmatprep.subr.mxu0 0.0
    %2174 = vmatpush1.xpose.msra.mxu0 0.0
    %2175 = vmatprep.subr.mxu0 0.0
    %2176 = vmatpush1.xpose.msra.mxu0 0.0
    %2177 = vmatprep.subr.mxu0 0.0
    %2178 = vmatpush1.xpose.msra.mxu0 0.0
    %2179 = vmatprep.subr.mxu0 0.0
    %2180 = vmatpush1.xpose.msra.mxu0 0.0
    %2181 = vmatprep.subr.mxu0 0.0
    %2182 = vmatpush1.xpose.msra.mxu0 0.0
    %2183 = vmatprep.subr.mxu0 0.0
    %2184 = vmatpush1.xpose.msra.mxu0 0.0
    %2185 = vmatprep.subr.mxu0 0.0
    %2186 = vmatpush1.xpose.msra.mxu0 0.0
    %2187 = vmatprep.subr.mxu0 0.0
    %2188 = vmatpush1.xpose.msra.mxu0 0.0
    %2189 = vmatprep.subr.mxu0 0.0
    %2190 = vmatpush1.xpose.msra.mxu0 0.0
    %2191 = vmatprep.subr.mxu0 0.0
    %2192 = vmatpush1.xpose.msra.mxu0 0.0
    %2193 = vmatprep.subr.mxu0 0.0
    %2194 = vmatpush1.xpose.msra.mxu0 0.0
    %2195 = vmatprep.subr.mxu0 0.0
    %2196 = vmatpush1.xpose.msra.mxu0 0.0
    %2197 = vmatprep.subr.mxu0 0.0
    %2198 = vmatpush1.xpose.msra.mxu0 0.0
    %2199 = vmatprep.subr.mxu0 0.0
    %2200 = vmatpush1.xpose.msra.mxu0 0.0
    %2201 = vmatprep.subr.mxu0 0.0
    %2202 = vmatpush1.xpose.msra.mxu0 0.0
    %2203 = vmatprep.subr.mxu0 0.0
    %2204 = vmatpush1.xpose.msra.mxu0 0.0
    %2205 = vmatprep.subr.mxu0 0.0
    %2206 = vmatpush1.xpose.msra.mxu0 0.0
    %2207 = vmatprep.subr.mxu0 0.0
    %2208 = vmatpush1.xpose.msra.mxu0 0.0
    %2209 = vmatprep.subr.mxu0 0.0
    %2210 = vmatpush1.xpose.msra.mxu0 0.0
    %2211 = vmatprep.subr.mxu0 0.0
    %2212 = vmatpush1.xpose.msra.mxu0 0.0
    %2213 = vmatprep.subr.mxu0 0.0
    %2214 = vmatpush1.xpose.msra.mxu0 0.0
    %2215 = vmatprep.subr.mxu0 0.0
    %2216 = vmatpush1.xpose.msra.mxu0 0.0
    %2217 = vmatprep.subr.mxu0 0.0
    %2218 = vmatpush1.xpose.msra.mxu0 0.0
    %2219 = vmatprep.subr.mxu0 0.0
    %2220 = vmatpush1.xpose.msra.mxu0 0.0
    %2221 = vmatprep.subr.mxu0 0.0
    %2222 = vmatpush1.xpose.msra.mxu0 0.0
    %2223 = vmatprep.mubr.f32.mxu0 0.0
    %2224 = vmatmul.mubr.f32.gmra.mrb[0].mxu0 %v2157
    %v2225 = vpop.f32.mrb[0].mxu0
    %v2226 = vadd.f32 0.0, %v2225
    %v2227 = vpop.f32.mrb[0].mxu0
    %2228 = vdwg.mxu0
    %v2229 = vmul.f32 %v2154, %v2226
    %v2231 = vsel %vm2143, 1.0, 0
    %v2234 = vsel %vm2143, %v2229, 0
    %2236 = vmatprep.subr.mxu0 0.0
    %2237 = vmatpush1.xpose.msra.mxu0 %v2234
    %2238 = vmatprep.subr.mxu0 0.0
    %2239 = vmatpush1.xpose.msra.mxu0 0.0
    %2240 = vmatprep.subr.mxu0 0.0
    %2241 = vmatpush1.xpose.msra.mxu0 0.0
    %2242 = vmatprep.subr.mxu0 0.0
    %2243 = vmatpush1.xpose.msra.mxu0 0.0
    %2244 = vmatprep.subr.mxu0 0.0
    %2245 = vmatpush1.xpose.msra.mxu0 0.0
    %2246 = vmatprep.subr.mxu0 0.0
    %2247 = vmatpush1.xpose.msra.mxu0 0.0
    %2248 = vmatprep.subr.mxu0 0.0
    %2249 = vmatpush1.xpose.msra.mxu0 0.0
    %2250 = vmatprep.subr.mxu0 0.0
    %2251 = vmatpush1.xpose.msra.mxu0 0.0
    %2252 = vmatprep.subr.mxu0 0.0
    %2253 = vmatpush1.xpose.msra.mxu0 0.0
    %2254 = vmatprep.subr.mxu0 0.0
    %2255 = vmatpush1.xpose.msra.mxu0 0.0
    %2256 = vmatprep.subr.mxu0 0.0
    %2257 = vmatpush1.xpose.msra.mxu0 0.0
    %2258 = vmatprep.subr.mxu0 0.0
    %2259 = vmatpush1.xpose.msra.mxu0 0.0
    %2260 = vmatprep.subr.mxu0 0.0
    %2261 = vmatpush1.xpose.msra.mxu0 0.0
    %2262 = vmatprep.subr.mxu0 0.0
    %2263 = vmatpush1.xpose.msra.mxu0 0.0
    %2264 = vmatprep.subr.mxu0 0.0
    %2265 = vmatpush1.xpose.msra.mxu0 0.0
    %2266 = vmatprep.subr.mxu0 0.0
    %2267 = vmatpush1.xpose.msra.mxu0 0.0
    %2268 = vmatprep.subr.mxu0 0.0
    %2269 = vmatpush1.xpose.msra.mxu0 0.0
    %2270 = vmatprep.subr.mxu0 0.0
    %2271 = vmatpush1.xpose.msra.mxu0 0.0
    %2272 = vmatprep.subr.mxu0 0.0
    %2273 = vmatpush1.xpose.msra.mxu0 0.0
    %2274 = vmatprep.subr.mxu0 0.0
    %2275 = vmatpush1.xpose.msra.mxu0 0.0
    %2276 = vmatprep.subr.mxu0 0.0
    %2277 = vmatpush1.xpose.msra.mxu0 0.0
    %2278 = vmatprep.subr.mxu0 0.0
    %2279 = vmatpush1.xpose.msra.mxu0 0.0
    %2280 = vmatprep.subr.mxu0 0.0
    %2281 = vmatpush1.xpose.msra.mxu0 0.0
    %2282 = vmatprep.subr.mxu0 0.0
    %2283 = vmatpush1.xpose.msra.mxu0 0.0
    %2284 = vmatprep.subr.mxu0 0.0
    %2285 = vmatpush1.xpose.msra.mxu0 0.0
    %2286 = vmatprep.subr.mxu0 0.0
    %2287 = vmatpush1.xpose.msra.mxu0 0.0
    %2288 = vmatprep.subr.mxu0 0.0
    %2289 = vmatpush1.xpose.msra.mxu0 0.0
    %2290 = vmatprep.subr.mxu0 0.0
    %2291 = vmatpush1.xpose.msra.mxu0 0.0
    %2292 = vmatprep.subr.mxu0 0.0
    %2293 = vmatpush1.xpose.msra.mxu0 0.0
    %2294 = vmatprep.subr.mxu0 0.0
    %2295 = vmatpush1.xpose.msra.mxu0 0.0
    %2296 = vmatprep.subr.mxu0 0.0
    %2297 = vmatpush1.xpose.msra.mxu0 0.0
    %2298 = vmatprep.subr.mxu0 0.0
    %2299 = vmatpush1.xpose.msra.mxu0 0.0
    %2300 = vmatprep.mubr.f32.mxu0 0.0
    %2301 = vmatmul.mubr.f32.gmra.mrb[0].mxu0 %v2231
    %v2302 = vpop.f32.mrb[0].mxu0
    %v2303 = vadd.f32 %v2056, %v2302
    %v2304 = vpop.f32.mrb[0].mxu0
    %2305 = vdwg.mxu0
    %vm2306 = vcmask 57344
    %2307 = vst.msk [vmem:[%s6] sm:$0x1] %vm2306, %v2303
    %s2308 = scalar_lea.vmem [#allocation3], 24
    %v2309 = vld [vmem:[%s2308] sm:$0xff]
    %v2310 = vld [vmem:[%s2308 + $0x8] sm:$0xff]
    %v2311 = vld [vmem:[%s2308 + $0x10] sm:$0x1]
    %v2313 = vsel %vm2060, %v2309, 0
    %v2316 = vsel %vm2060, %v2310, 0
    %v2319 = vsel %vm2060, %v2311, 0
    %2321 = vmatprep.subr.mxu0 0.0
    %2322 = vmatpush1.xpose.msra.mxu0 %v2313
    %2323 = vmatprep.subr.mxu0 0.0
    %2324 = vmatpush1.xpose.msra.mxu0 %v2316
    %2325 = vmatprep.subr.mxu0 0.0
    %2326 = vmatpush1.xpose.msra.mxu0 %v2319
    %2327 = vmatprep.subr.mxu0 0.0
    %2328 = vmatpush1.xpose.msra.mxu0 0.0
    %2329 = vmatprep.subr.mxu0 0.0
    %2330 = vmatpush1.xpose.msra.mxu0 0.0
    %2331 = vmatprep.subr.mxu0 0.0
    %2332 = vmatpush1.xpose.msra.mxu0 0.0
    %2333 = vmatprep.subr.mxu0 0.0
    %2334 = vmatpush1.xpose.msra.mxu0 0.0
    %2335 = vmatprep.subr.mxu0 0.0
    %2336 = vmatpush1.xpose.msra.mxu0 0.0
    %2337 = vmatprep.subr.mxu0 0.0
    %2338 = vmatpush1.xpose.msra.mxu0 0.0
    %2339 = vmatprep.subr.mxu0 0.0
    %2340 = vmatpush1.xpose.msra.mxu0 0.0
    %2341 = vmatprep.subr.mxu0 0.0
    %2342 = vmatpush1.xpose.msra.mxu0 0.0
    %2343 = vmatprep.subr.mxu0 0.0
    %2344 = vmatpush1.xpose.msra.mxu0 0.0
    %2345 = vmatprep.subr.mxu0 0.0
    %2346 = vmatpush1.xpose.msra.mxu0 0.0
    %2347 = vmatprep.subr.mxu0 0.0
    %2348 = vmatpush1.xpose.msra.mxu0 0.0
    %2349 = vmatprep.subr.mxu0 0.0
    %2350 = vmatpush1.xpose.msra.mxu0 0.0
    %2351 = vmatprep.subr.mxu0 0.0
    %2352 = vmatpush1.xpose.msra.mxu0 0.0
    %2353 = vmatprep.subr.mxu0 0.0
    %2354 = vmatpush1.xpose.msra.mxu0 0.0
    %2355 = vmatprep.subr.mxu0 0.0
    %2356 = vmatpush1.xpose.msra.mxu0 0.0
    %2357 = vmatprep.subr.mxu0 0.0
    %2358 = vmatpush1.xpose.msra.mxu0 0.0
    %2359 = vmatprep.subr.mxu0 0.0
    %2360 = vmatpush1.xpose.msra.mxu0 0.0
    %2361 = vmatprep.subr.mxu0 0.0
    %2362 = vmatpush1.xpose.msra.mxu0 0.0
    %2363 = vmatprep.subr.mxu0 0.0
    %2364 = vmatpush1.xpose.msra.mxu0 0.0
    %2365 = vmatprep.subr.mxu0 0.0
    %2366 = vmatpush1.xpose.msra.mxu0 0.0
    %2367 = vmatprep.subr.mxu0 0.0
    %2368 = vmatpush1.xpose.msra.mxu0 0.0
    %2369 = vmatprep.subr.mxu0 0.0
    %2370 = vmatpush1.xpose.msra.mxu0 0.0
    %2371 = vmatprep.subr.mxu0 0.0
    %2372 = vmatpush1.xpose.msra.mxu0 0.0
    %2373 = vmatprep.subr.mxu0 0.0
    %2374 = vmatpush1.xpose.msra.mxu0 0.0
    %2375 = vmatprep.subr.mxu0 0.0
    %2376 = vmatpush1.xpose.msra.mxu0 0.0
    %2377 = vmatprep.subr.mxu0 0.0
    %2378 = vmatpush1.xpose.msra.mxu0 0.0
    %2379 = vmatprep.subr.mxu0 0.0
    %2380 = vmatpush1.xpose.msra.mxu0 0.0
    %2381 = vmatprep.subr.mxu0 0.0
    %2382 = vmatpush1.xpose.msra.mxu0 0.0
    %2383 = vmatprep.subr.mxu0 0.0
    %2384 = vmatpush1.xpose.msra.mxu0 0.0
    %2385 = vmatprep.mubr.f32.mxu0 0.0
    %2386 = vmatmul.mubr.f32.gmra.mrb[0].mxu0 %v2062
    %v2387 = vpop.f32.mrb[0].mxu0
    %v2388 = vadd.f32 0.0, %v2387
    %v2389 = vpop.f32.mrb[0].mxu0
    %2390 = vdwg.mxu0
    %v2391 = vsel %vm2143, %v2388, -inf
    %2392 = vmax.xlane.f32.xlu0 %v2391
    %v2393 = vpop.xlane.xlu0 %2392
    %v2394 = vsub.f32 %v2388, %v2393
    %v2395 = vmul.f32 %v2394, 1.442695
    %v2396 = vpow.pop %v2395
    %v2397 = vsel %vm2143, %v2396, 0.0
    %2398 = vadd.xlane.f32.xlu0 %v2397
    %v2399 = vpop.xlane.xlu0 %2398
    %v2400 = vrcp.pop %v2399
    %v2401 = vmul.f32 %v2396, %v2400
    %s2402 = scalar_lea.vmem [#allocation4], 8
    %2403 = vst.msk [vmem:[%s2402] sm:$0xff] %vm2143, %v2401
    %2404 = vmatprep.subr.mxu0 0.0
    %2405 = vmatpush1.xpose.msra.mxu0 %v2313
    %2406 = vmatprep.subr.mxu0 0.0
    %2407 = vmatpush1.xpose.msra.mxu0 %v2316
    %2408 = vmatprep.subr.mxu0 0.0
    %2409 = vmatpush1.xpose.msra.mxu0 %v2319
    %2410 = vmatprep.subr.mxu0 0.0
    %2411 = vmatpush1.xpose.msra.mxu0 0.0
    %2412 = vmatprep.subr.mxu0 0.0
    %2413 = vmatpush1.xpose.msra.mxu0 0.0
    %2414 = vmatprep.subr.mxu0 0.0
    %2415 = vmatpush1.xpose.msra.mxu0 0.0
    %2416 = vmatprep.subr.mxu0 0.0
    %2417 = vmatpush1.xpose.msra.mxu0 0.0
    %2418 = vmatprep.subr.mxu0 0.0
    %2419 = vmatpush1.xpose.msra.mxu0 0.0
    %2420 = vmatprep.subr.mxu0 0.0
    %2421 = vmatpush1.xpose.msra.mxu0 0.0
    %2422 = vmatprep.subr.mxu0 0.0
    %2423 = vmatpush1.xpose.msra.mxu0 0.0
    %2424 = vmatprep.subr.mxu0 0.0
    %2425 = vmatpush1.xpose.msra.mxu0 0.0
    %2426 = vmatprep.subr.mxu0 0.0
    %2427 = vmatpush1.xpose.msra.mxu0 0.0
    %2428 = vmatprep.subr.mxu0 0.0
    %2429 = vmatpush1.xpose.msra.mxu0 0.0
    %2430 = vmatprep.subr.mxu0 0.0
    %2431 = vmatpush1.xpose.msra.mxu0 0.0
    %2432 = vmatprep.subr.mxu0 0.0
    %2433 = vmatpush1.xpose.msra.mxu0 0.0
    %2434 = vmatprep.subr.mxu0 0.0
    %2435 = vmatpush1.xpose.msra.mxu0 0.0
    %2436 = vmatprep.subr.mxu0 0.0
    %2437 = vmatpush1.xpose.msra.mxu0 0.0
    %2438 = vmatprep.subr.mxu0 0.0
    %2439 = vmatpush1.xpose.msra.mxu0 0.0
    %2440 = vmatprep.subr.mxu0 0.0
    %2441 = vmatpush1.xpose.msra.mxu0 0.0
    %2442 = vmatprep.subr.mxu0 0.0
    %2443 = vmatpush1.xpose.msra.mxu0 0.0
    %2444 = vmatprep.subr.mxu0 0.0
    %2445 = vmatpush1.xpose.msra.mxu0 0.0
    %2446 = vmatprep.subr.mxu0 0.0
    %2447 = vmatpush1.xpose.msra.mxu0 0.0
    %2448 = vmatprep.subr.mxu0 0.0
    %2449 = vmatpush1.xpose.msra.mxu0 0.0
    %2450 = vmatprep.subr.mxu0 0.0
    %2451 = vmatpush1.xpose.msra.mxu0 0.0
    %2452 = vmatprep.subr.mxu0 0.0
    %2453 = vmatpush1.xpose.msra.mxu0 0.0
    %2454 = vmatprep.subr.mxu0 0.0
    %2455 = vmatpush1.xpose.msra.mxu0 0.0
    %2456 = vmatprep.subr.mxu0 0.0
    %2457 = vmatpush1.xpose.msra.mxu0 0.0
    %2458 = vmatprep.subr.mxu0 0.0
    %2459 = vmatpush1.xpose.msra.mxu0 0.0
    %2460 = vmatprep.subr.mxu0 0.0
    %2461 = vmatpush1.xpose.msra.mxu0 0.0
    %2462 = vmatprep.subr.mxu0 0.0
    %2463 = vmatpush1.xpose.msra.mxu0 0.0
    %2464 = vmatprep.subr.mxu0 0.0
    %2465 = vmatpush1.xpose.msra.mxu0 0.0
    %2466 = vmatprep.subr.mxu0 0.0
    %2467 = vmatpush1.xpose.msra.mxu0 0.0
    %2468 = vmatprep.mubr.f32.mxu0 0.0
    %2469 = vmatmul.mubr.f32.gmra.mrb[0].mxu0 %v2157
    %v2470 = vpop.f32.mrb[0].mxu0
    %v2471 = vadd.f32 0.0, %v2470
    %v2472 = vpop.f32.mrb[0].mxu0
    %2473 = vdwg.mxu0
    %v2474 = vmul.f32 %v2401, %v2471
    %v2476 = vsel %vm2143, %v2474, 0
    %2478 = vmatprep.subr.mxu0 0.0
    %2479 = vmatpush1.xpose.msra.mxu0 %v2476
    %2480 = vmatprep.subr.mxu0 0.0
    %2481 = vmatpush1.xpose.msra.mxu0 0.0
    %2482 = vmatprep.subr.mxu0 0.0
    %2483 = vmatpush1.xpose.msra.mxu0 0.0
    %2484 = vmatprep.subr.mxu0 0.0
    %2485 = vmatpush1.xpose.msra.mxu0 0.0
    %2486 = vmatprep.subr.mxu0 0.0
    %2487 = vmatpush1.xpose.msra.mxu0 0.0
    %2488 = vmatprep.subr.mxu0 0.0
    %2489 = vmatpush1.xpose.msra.mxu0 0.0
    %2490 = vmatprep.subr.mxu0 0.0
    %2491 = vmatpush1.xpose.msra.mxu0 0.0
    %2492 = vmatprep.subr.mxu0 0.0
    %2493 = vmatpush1.xpose.msra.mxu0 0.0
    %2494 = vmatprep.subr.mxu0 0.0
    %2495 = vmatpush1.xpose.msra.mxu0 0.0
    %2496 = vmatprep.subr.mxu0 0.0
    %2497 = vmatpush1.xpose.msra.mxu0 0.0
    %2498 = vmatprep.subr.mxu0 0.0
    %2499 = vmatpush1.xpose.msra.mxu0 0.0
    %2500 = vmatprep.subr.mxu0 0.0
    %2501 = vmatpush1.xpose.msra.mxu0 0.0
    %2502 = vmatprep.subr.mxu0 0.0
    %2503 = vmatpush1.xpose.msra.mxu0 0.0
    %2504 = vmatprep.subr.mxu0 0.0
    %2505 = vmatpush1.xpose.msra.mxu0 0.0
    %2506 = vmatprep.subr.mxu0 0.0
    %2507 = vmatpush1.xpose.msra.mxu0 0.0
    %2508 = vmatprep.subr.mxu0 0.0
    %2509 = vmatpush1.xpose.msra.mxu0 0.0
    %2510 = vmatprep.subr.mxu0 0.0
    %2511 = vmatpush1.xpose.msra.mxu0 0.0
    %2512 = vmatprep.subr.mxu0 0.0
    %2513 = vmatpush1.xpose.msra.mxu0 0.0
    %2514 = vmatprep.subr.mxu0 0.0
    %2515 = vmatpush1.xpose.msra.mxu0 0.0
    %2516 = vmatprep.subr.mxu0 0.0
    %2517 = vmatpush1.xpose.msra.mxu0 0.0
    %2518 = vmatprep.subr.mxu0 0.0
    %2519 = vmatpush1.xpose.msra.mxu0 0.0
    %2520 = vmatprep.subr.mxu0 0.0
    %2521 = vmatpush1.xpose.msra.mxu0 0.0
    %2522 = vmatprep.subr.mxu0 0.0
    %2523 = vmatpush1.xpose.msra.mxu0 0.0
    %2524 = vmatprep.subr.mxu0 0.0
    %2525 = vmatpush1.xpose.msra.mxu0 0.0
    %2526 = vmatprep.subr.mxu0 0.0
    %2527 = vmatpush1.xpose.msra.mxu0 0.0
    %2528 = vmatprep.subr.mxu0 0.0
    %2529 = vmatpush1.xpose.msra.mxu0 0.0
    %2530 = vmatprep.subr.mxu0 0.0
    %2531 = vmatpush1.xpose.msra.mxu0 0.0
    %2532 = vmatprep.subr.mxu0 0.0
    %2533 = vmatpush1.xpose.msra.mxu0 0.0
    %2534 = vmatprep.subr.mxu0 0.0
    %2535 = vmatpush1.xpose.msra.mxu0 0.0
    %2536 = vmatprep.subr.mxu0 0.0
    %2537 = vmatpush1.xpose.msra.mxu0 0.0
    %2538 = vmatprep.subr.mxu0 0.0
    %2539 = vmatpush1.xpose.msra.mxu0 0.0
    %2540 = vmatprep.subr.mxu0 0.0
    %2541 = vmatpush1.xpose.msra.mxu0 0.0
    %2542 = vmatprep.mubr.f32.mxu0 0.0
    %2543 = vmatmul.mubr.f32.gmra.mrb[0].mxu0 %v2231
    %v2544 = vpop.f32.mrb[0].mxu0
    %v2545 = vadd.f32 %v2056, %v2544
    %v2546 = vpop.f32.mrb[0].mxu0
    %2547 = vdwg.mxu0
    %2548 = vst.msk [vmem:[%s6 + $0x1] sm:$0x1] %vm2306, %v2545
    // Predicated region
    $region30: #{caml_forward.1} parent=1 // pred_check
      _
    $region31: #{caml_forward.1} parent=1 // pred_check_branch
      %2550 = sbr.rel (0) target = $region33
    $region32: #{caml_forward.1} parent=1 // pred_region
      _
    $region33: #{caml_forward.1} parent=1 // pred_fallthru
      _
    // Predicated region
    $region34: #{caml_forward.1} parent=1 // pred_check
      _
    $region35: #{caml_forward.1} parent=1 // pred_check_branch
      %2552 = sbr.rel (0) target = $region37
    $region36: #{caml_forward.1} parent=1 // pred_region
      %s2554 = ssub.s32 256, 256
      %2555 = vsyncadd [#allocation5], %s2554
      %s2556 = sshll.u32 [#allocation4], 4
      %s2557 = int_to_ptr.vmem [resolvable:$true] %s2556
      %2562 = dma.vmem_to_hbm [thread:$0]  %s2557, 256, %s7, [#allocation5], 128, 128, 8
    $region37: #{caml_forward.1} parent=1 // pred_fallthru
      _
    // Predicated region
    $region38: #{caml_forward.1} parent=1 // pred_check
      _
    $region39: #{caml_forward.1} parent=1 // pred_check_branch
      %2564 = sbr.rel (0) target = $region41
    $region40: #{caml_forward.1} parent=1 // pred_region
      _
    $region41: #{caml_forward.1} parent=1 // pred_fallthru
      _
    // Predicated region
    $region42: #{caml_forward.1} parent=1 // pred_check
      _
    $region43: #{caml_forward.1} parent=1 // pred_check_branch
      %2566 = sbr.rel (0) target = $region45
    $region44: #{caml_forward.1} parent=1 // pred_region
      %2567 = dma.done [#allocation5], 256
    $region45: #{caml_forward.1} parent=1 // pred_fallthru
      _
    %2568 = vsyncpa [#allocation5], 1

</llo_original>
